<compile_context>
chip_gen: v6e
topology: v6e:2x2x1
jax: 0.10.0
libtpu: 0.0.40
codegen_flags: <defaults>
</compile_context>

<pallas_src>
import jax
import jax.numpy as jnp
from jax import lax
from jax.experimental import pallas as pl
from jax.experimental.pallas import tpu as pltpu

EPS = 1e-5
EXPANSION = 4

_CPARAMS = pltpu.CompilerParams(
    dimension_semantics=("parallel",),
    vmem_limit_bytes=32 * 1024 * 1024,
)


def _row_tile(m, target=256):
    """Largest multiple-of-8 divisor of m that is <= target (fallback: m)."""
    for t in range(min(target, m), 7, -8):
        if m % t == 0:
            return t
    return m


# ----------------- Kernel A: conv1 (1x1) + per-tile BN stats -----------------
def _conv1_stats_kernel(x_ref, w_ref, y_ref, st_ref):
    x = x_ref[...].astype(jnp.bfloat16)                      # bf16 MXU input
    y = jnp.dot(x, w_ref[...], preferred_element_type=jnp.float32)   # (MT, P) f32
    st_ref[0] = jnp.concatenate(
        [jnp.sum(y, axis=0, keepdims=True),
         jnp.sum(y * y, axis=0, keepdims=True)], axis=0)     # f32 partial stats
    y_ref[...] = y.astype(y_ref.dtype)


# ------ Kernel B: bn1+relu -> conv2 (3x3, im2col) + per-image BN stats -------
def _bn_relu_conv3x3_stats_kernel(y1_ref, s_ref, b_ref, w_ref, y2_ref, st_ref,
                                  xp_s):
    _, H, W, P = y1_ref.shape
    HW = H * W
    # Folded BN1 + ReLU in f32.
    t = y1_ref[0].astype(jnp.float32)                        # (H, W, P)
    t = jnp.maximum(t * s_ref[...].reshape(1, 1, P)
                    + b_ref[...].reshape(1, 1, P), 0.0)
    # In-kernel halo padding: zero the scratch (incl. border), store interior.
    xp_s[...] = jnp.zeros_like(xp_s)
    xp_s[1:H + 1, 1:W + 1, :] = t.astype(jnp.bfloat16)
    # im2col: one (HW, 9P) x (9P, P) MXU matmul instead of nine K=P matmuls.
    cols = [xp_s[kh:kh + H, kw:kw + W, :].reshape(HW, P)
            for kh in range(3) for kw in range(3)]
    col = jnp.concatenate(cols, axis=-1)                     # (HW, 9P) bf16
    y2 = jnp.dot(col, w_ref[...], preferred_element_type=jnp.float32)  # (HW, P)
    st_ref[0] = jnp.concatenate(
        [jnp.sum(y2, axis=0, keepdims=True),
         jnp.sum(y2 * y2, axis=0, keepdims=True)], axis=0)
    y2_ref[...] = y2.astype(y2_ref.dtype)                    # (HW, P) block of (M, P)


# --------- Kernel C: bn2+relu -> conv3 (1x1) + per-tile BN stats -------------
def _bn_relu_conv1x1_stats_kernel(y_in_ref, s_ref, b_ref, w_ref, y_ref, st_ref):
    t = y_in_ref[...].astype(jnp.float32)
    t = jnp.maximum(t * s_ref[...] + b_ref[...], 0.0)
    y = jnp.dot(t.astype(jnp.bfloat16), w_ref[...],
                preferred_element_type=jnp.float32)          # (MT, Cout) f32
    st_ref[0] = jnp.concatenate(
        [jnp.sum(y, axis=0, keepdims=True),
         jnp.sum(y * y, axis=0, keepdims=True)], axis=0)
    y_ref[...] = y.astype(y_ref.dtype)


# ------------- Kernel D: bn3 -> + identity residual -> relu ------------------
def _bn_residual_relu_kernel(y_ref, s_ref, b_ref, res_ref, o_ref):
    y = y_ref[...].astype(jnp.float32)
    o = jnp.maximum(y * s_ref[...] + b_ref[...]
                    + res_ref[...].astype(jnp.float32), 0.0)
    o_ref[...] = o.astype(o_ref.dtype)


def _fold_bn(partial_stats, gamma, beta, m):
    """Combine per-tile (sum, sumsq) partials into folded BN scale/shift (f32)."""
    s = jnp.sum(partial_stats.astype(jnp.float32), axis=0)   # (2, C)
    mean = s[0] / m
    var = jnp.maximum(s[1] / m - mean * mean, 0.0)            # biased variance
    scale = gamma.reshape(-1) * lax.rsqrt(var + EPS)
    shift = beta.reshape(-1) - mean * scale
    return scale.reshape(1, -1), shift.reshape(1, -1)


def bottleneck_forward_nhwc(x, params, row_tile=256):
    N, H, W, Cin = x.shape
    w1 = params["w1"].astype(jnp.bfloat16)
    w3 = params["w3"].astype(jnp.bfloat16)
    P = w1.shape[1]
    Cout = w3.shape[1]
    assert Cin == Cout, "downsample=None requires inplanes == planes * expansion"
    # (3,3,P,P) HWIO -> (9P, P), row order (kh, kw, cin) matching the im2col.
    w2col = params["w2"].reshape(9 * P, P).astype(jnp.bfloat16)

    M = N * H * W
    MT = _row_tile(M, row_tile)
    n_tiles = M // MT
    HW = H * W
    # f32 residual path; conv inputs are cast to bf16 inside the kernels.
    x2d = x.reshape(M, Cin).astype(jnp.float32)

    full = lambda shape: pl.BlockSpec(shape, lambda *_: (0,) * len(shape))

    # --- Stage A: conv1 (1x1) + stats1, tiled over M rows -------------------
    y1_2d, st1 = pl.pallas_call(
        _conv1_stats_kernel,
        grid=(n_tiles,),
        in_specs=[pl.BlockSpec((MT, Cin), lambda i: (i, 0)),
                  full((Cin, P))],
        out_specs=(pl.BlockSpec((MT, P), lambda i: (i, 0)),
                   pl.BlockSpec((1, 2, P), lambda i: (i, 0, 0))),
        out_shape=(jax.ShapeDtypeStruct((M, P), jnp.bfloat16),
                   jax.ShapeDtypeStruct((n_tiles, 2, P), jnp.float32)),
        compiler_params=_CPARAMS,
    )(x2d, w1)
    s1, b1 = _fold_bn(st1, params["g1"], params["b1"], M)

    # --- Stage B: bn1+relu -> conv2 (3x3) + stats2, tiled over images --------
    y1_4d = y1_2d.reshape(N, H, W, P)            # free: row-major contiguous
    y2_2d, st2 = pl.pallas_call(
        _bn_relu_conv3x3_stats_kernel,
        grid=(N,),
        in_specs=[pl.BlockSpec((1, H, W, P), lambda n: (n, 0, 0, 0)),
                  full((1, P)), full((1, P)),
                  full((9 * P, P))],
        out_specs=(pl.BlockSpec((HW, P), lambda n: (n, 0)),
                   pl.BlockSpec((1, 2, P), lambda n: (n, 0, 0))),
        out_shape=(jax.ShapeDtypeStruct((M, P), jnp.bfloat16),
                   jax.ShapeDtypeStruct((N, 2, P), jnp.float32)),
        scratch_shapes=[pltpu.VMEM((H + 2, W + 2, P), jnp.bfloat16)],
        compiler_params=_CPARAMS,
    )(y1_4d, s1, b1, w2col)
    s2, b2 = _fold_bn(st2, params["g2"], params["b2"], M)

    # --- Stage C: bn2+relu -> conv3 (1x1) + stats3, tiled over M rows --------
    y3_2d, st3 = pl.pallas_call(
        _bn_relu_conv1x1_stats_kernel,
        grid=(n_tiles,),
        in_specs=[pl.BlockSpec((MT, P), lambda i: (i, 0)),
                  full((1, P)), full((1, P)),
                  full((P, Cout))],
        out_specs=(pl.BlockSpec((MT, Cout), lambda i: (i, 0)),
                   pl.BlockSpec((1, 2, Cout), lambda i: (i, 0, 0))),
        out_shape=(jax.ShapeDtypeStruct((M, Cout), jnp.float32),
                   jax.ShapeDtypeStruct((n_tiles, 2, Cout), jnp.float32)),
        compiler_params=_CPARAMS,
    )(y2_2d, s2, b2, w3)
    s3, b3 = _fold_bn(st3, params["g3"], params["b3"], M)

    # --- Stage D: bn3 + identity residual + relu, tiled over M rows ----------
    out2d = pl.pallas_call(
        _bn_residual_relu_kernel,
        grid=(n_tiles,),
        in_specs=[pl.BlockSpec((MT, Cout), lambda i: (i, 0)),
                  full((1, Cout)), full((1, Cout)),
                  pl.BlockSpec((MT, Cin), lambda i: (i, 0))],
        out_specs=pl.BlockSpec((MT, Cout), lambda i: (i, 0)),
        out_shape=jax.ShapeDtypeStruct((M, Cout), jnp.float32),
        compiler_params=_CPARAMS,
    )(y3_2d, s3, b3, x2d)

    return out2d.reshape(N, H, W, Cout)


def bottleneck_forward(x_nchw, params, row_tile=256):
    # PyTorch-style NCHW at the boundary; kernels run NHWC.  In a real network,
    # keep activations NHWC end-to-end to avoid these edge transposes.
    x = jnp.transpose(x_nchw, (0, 2, 3, 1))
    out = bottleneck_forward_nhwc(x, params, row_tile=row_tile)
    return jnp.transpose(out, (0, 3, 1, 2))


def init_params(key, inplanes, planes):
    k1, k2, k3 = jax.random.split(key, 3)
    w1 = jax.random.normal(k1, (inplanes, planes), jnp.float32) / jnp.sqrt(float(inplanes))
    w2 = jax.random.normal(k2, (3, 3, planes, planes), jnp.float32) / jnp.sqrt(9.0 * planes)
    w3 = jax.random.normal(k3, (planes, planes * EXPANSION), jnp.float32) / jnp.sqrt(float(planes))
    ones = lambda c: jnp.ones((1, c), jnp.float32)    # BN gamma (PyTorch default)
    zeros = lambda c: jnp.zeros((1, c), jnp.float32)  # BN beta
    return dict(w1=w1, g1=ones(planes), b1=zeros(planes),
                w2=w2, g2=ones(planes), b2=zeros(planes),
                w3=w3, g3=ones(planes * EXPANSION), b3=zeros(planes * EXPANSION))


def bottleneck_reference(x_nchw, params):
    # Pure-JAX f32 reference (lax convolutions) for correctness checking.
    x = jnp.transpose(x_nchw, (0, 2, 3, 1)).astype(jnp.float32)
    dn = ("NHWC", "HWIO", "NHWC")

    def bn(y, g, b):
        mean = jnp.mean(y, axis=(0, 1, 2), keepdims=True)
        var = jnp.mean(jnp.square(y - mean), axis=(0, 1, 2), keepdims=True)
        return (y - mean) * lax.rsqrt(var + EPS) * g.reshape(1, 1, 1, -1) + b.reshape(1, 1, 1, -1)

    Cin = x.shape[-1]
    P = params["w1"].shape[1]
    y = lax.conv_general_dilated(x, params["w1"].reshape(1, 1, Cin, P),
                                 (1, 1), "VALID", dimension_numbers=dn)
    y = jax.nn.relu(bn(y, params["g1"], params["b1"]))
    y = lax.conv_general_dilated(y, params["w2"], (1, 1), ((1, 1), (1, 1)),
                                 dimension_numbers=dn)
    y = jax.nn.relu(bn(y, params["g2"], params["b2"]))
    y = lax.conv_general_dilated(y, params["w3"].reshape(1, 1, P, -1),
                                 (1, 1), "VALID", dimension_numbers=dn)
    y = jax.nn.relu(bn(y, params["g3"], params["b3"]) + x)
    return jnp.transpose(y, (0, 3, 1, 2))


if __name__ == "__main__":
    # downsample=None configuration: inplanes == planes * expansion, stride == 1.
    # Lane-dense channels (Cout = 128) per the perf review; small batch/spatial.
    inplanes, planes = 128, 32
    N, H, W = 2, 16, 16

    key = jax.random.PRNGKey(0)
    kx, kp = jax.random.split(key)
    x = jax.random.normal(kx, (N, inplanes, H, W), jnp.float32)  # NCHW, like PyTorch
    params = init_params(kp, inplanes, planes)

    fwd = jax.jit(bottleneck_forward)
    out = jax.block_until_ready(fwd(x, params))

    ref = bottleneck_reference(x, params)
    assert out.shape == (N, planes * EXPANSION, H, W), out.shape
    max_err = float(jnp.max(jnp.abs(out - ref)))
    # bf16 MXU inputs -> loosened tolerance vs the f32 reference.
    assert jnp.allclose(out, ref, atol=5e-2, rtol=5e-2), f"max abs err = {max_err}"

    print("KERNEL_OK")
</pallas_src>

<mosaic_0001>
module attributes {stable_mosaic.version = 11 : i64} {
  func.func @_conv1_stats_kernel(%arg0: i32, %arg1: memref<256x128xf32, #tpu.memory_space<vmem>>, %arg2: memref<128x32xbf16, #tpu.memory_space<vmem>>, %arg3: memref<256x32xbf16, #tpu.memory_space<vmem>>, %arg4: memref<1x2x32xf32, #tpu.memory_space<vmem>>) attributes {dimension_semantics = [#tpu.dimension_semantics<parallel>], iteration_bounds = array<i64: 2>, scalar_prefetch = 0 : i64, scratch_operands = 0 : i64, tpu.core_type = #tpu.core_type<tc>, window_params = [{transform_indices = @transform_0, window_bounds = array<i64: 256, 128>}, {pipeline_mode = #tpu.pipeline_mode<synchronous>, transform_indices = @transform_1, window_bounds = array<i64: 128, 32>}, {transform_indices = @transform_2, window_bounds = array<i64: 256, 32>}, {transform_indices = @transform_3, window_bounds = array<i64: 1, 2, 32>}]} {
    %c0 = arith.constant 0 : index
    %c0_0 = arith.constant 0 : index
    %0 = vector.load %arg1[%c0, %c0_0] : memref<256x128xf32, #tpu.memory_space<vmem>>, vector<256x128xf32>
    %1 = arith.truncf %0 : vector<256x128xf32> to vector<256x128xbf16>
    %c0_1 = arith.constant 0 : index
    %c0_2 = arith.constant 0 : index
    %2 = vector.load %arg2[%c0_1, %c0_2] : memref<128x32xbf16, #tpu.memory_space<vmem>>, vector<128x32xbf16>
    %cst = arith.constant dense<0.000000e+00> : vector<256x32xf32>
    %3 = tpu.matmul %1, %2, %cst {dimension_numbers = #tpu.dot_dimension_numbers<[1], [0], [0], [1], [0, 0, 1, 1], [], []>} : vector<256x128xbf16>, vector<128x32xbf16>, vector<256x32xf32> -> vector<256x32xf32>
    %cst_3 = arith.constant dense<0.000000e+00> : vector<32xf32>
    %4 = vector.multi_reduction <add>, %3, %cst_3 [0] : vector<256x32xf32> to vector<32xf32>
    %5 = vector.shape_cast %4 : vector<32xf32> to vector<1x32xf32>
    %6 = arith.mulf %3, %3 : vector<256x32xf32>
    %cst_4 = arith.constant dense<0.000000e+00> : vector<32xf32>
    %7 = vector.multi_reduction <add>, %6, %cst_4 [0] : vector<256x32xf32> to vector<32xf32>
    %8 = vector.shape_cast %7 : vector<32xf32> to vector<1x32xf32>
    %9 = tpu.concatenate %5, %8 in 0 : vector<1x32xf32>, vector<1x32xf32> -> vector<2x32xf32>
    %c0_5 = arith.constant 0 : index
    %c0_6 = arith.constant 0 : index
    %c0_7 = arith.constant 0 : index
    %10 = vector.load %arg4[%c0_5, %c0_6, %c0_7] : memref<1x2x32xf32, #tpu.memory_space<vmem>>, vector<1x2x32xf32>
    %11 = vector.shape_cast %10 : vector<1x2x32xf32> to vector<2x32xf32>
    %12 = vector.shape_cast %9 : vector<2x32xf32> to vector<1x2x32xf32>
    tpu.vector_store %arg4[%c0_5, %c0_6, %c0_7], %12 {strides = array<i32>} : memref<1x2x32xf32, #tpu.memory_space<vmem>>, vector<1x2x32xf32>,
    %13 = arith.truncf %3 : vector<256x32xf32> to vector<256x32xbf16>
    %c0_8 = arith.constant 0 : index
    %c0_9 = arith.constant 0 : index
    %14 = vector.load %arg3[%c0_8, %c0_9] : memref<256x32xbf16, #tpu.memory_space<vmem>>, vector<256x32xbf16>
    tpu.vector_store %arg3[%c0_8, %c0_9], %13 {strides = array<i32>} : memref<256x32xbf16, #tpu.memory_space<vmem>>, vector<256x32xbf16>,
    return
  }
  func.func @transform_0(%arg0: i32) -> (i32, i32) {
    %c0_i32 = arith.constant 0 : i32
    %c0_i32_0 = arith.constant 0 : i32
    return %arg0, %c0_i32 : i32, i32
  }
  func.func @transform_1(%arg0: i32) -> (i32, i32) {
    %c0_i32 = arith.constant 0 : i32
    %c0_i32_0 = arith.constant 0 : i32
    %c0_i32_1 = arith.constant 0 : i32
    return %c0_i32, %c0_i32_0 : i32, i32
  }
  func.func @transform_2(%arg0: i32) -> (i32, i32) {
    %c0_i32 = arith.constant 0 : i32
    %c0_i32_0 = arith.constant 0 : i32
    return %arg0, %c0_i32 : i32, i32
  }
  func.func @transform_3(%arg0: i32) -> (i32, i32, i32) {
    %c0_i32 = arith.constant 0 : i32
    %c0_i32_0 = arith.constant 0 : i32
    %c0_i32_1 = arith.constant 0 : i32
    return %arg0, %c0_i32, %c0_i32_0 : i32, i32, i32
  }
}

module attributes {stable_mosaic.version = 11 : i64} {
  func.func @_bn_relu_conv3x3_stats_kernel(%arg0: i32, %arg1: memref<1x16x16x32xbf16, #tpu.memory_space<vmem>>, %arg2: memref<1x32xf32, #tpu.memory_space<vmem>>, %arg3: memref<1x32xf32, #tpu.memory_space<vmem>>, %arg4: memref<288x32xbf16, #tpu.memory_space<vmem>>, %arg5: memref<256x32xbf16, #tpu.memory_space<vmem>>, %arg6: memref<1x2x32xf32, #tpu.memory_space<vmem>>, %arg7: memref<18x18x32xbf16, #tpu.memory_space<vmem>>) attributes {dimension_semantics = [#tpu.dimension_semantics<parallel>], iteration_bounds = array<i64: 2>, scalar_prefetch = 0 : i64, scratch_operands = 1 : i64, tpu.core_type = #tpu.core_type<tc>, window_params = [{transform_indices = @transform_0, window_bounds = array<i64: 1, 16, 16, 32>}, {pipeline_mode = #tpu.pipeline_mode<synchronous>, transform_indices = @transform_1, window_bounds = array<i64: 1, 32>}, {pipeline_mode = #tpu.pipeline_mode<synchronous>, transform_indices = @transform_2, window_bounds = array<i64: 1, 32>}, {pipeline_mode = #tpu.pipeline_mode<synchronous>, transform_indices = @transform_3, window_bounds = array<i64: 288, 32>}, {transform_indices = @transform_4, window_bounds = array<i64: 256, 32>}, {transform_indices = @transform_5, window_bounds = array<i64: 1, 2, 32>}]} {
    %c0 = arith.constant 0 : index
    %c0_0 = arith.constant 0 : index
    %c0_1 = arith.constant 0 : index
    %c0_2 = arith.constant 0 : index
    %0 = vector.load %arg1[%c0, %c0_0, %c0_1, %c0_2] : memref<1x16x16x32xbf16, #tpu.memory_space<vmem>>, vector<1x16x16x32xbf16>
    %1 = vector.shape_cast %0 : vector<1x16x16x32xbf16> to vector<16x16x32xbf16>
    %2 = arith.extf %1 : vector<16x16x32xbf16> to vector<16x16x32xf32>
    %c0_3 = arith.constant 0 : index
    %c0_4 = arith.constant 0 : index
    %3 = vector.load %arg2[%c0_3, %c0_4] : memref<1x32xf32, #tpu.memory_space<vmem>>, vector<1x32xf32>
    %4 = vector.shape_cast %3 : vector<1x32xf32> to vector<1x1x32xf32>
    %5 = vector.broadcast %4 : vector<1x1x32xf32> to vector<16x16x32xf32>
    %6 = arith.mulf %2, %5 : vector<16x16x32xf32>
    %c0_5 = arith.constant 0 : index
    %c0_6 = arith.constant 0 : index
    %7 = vector.load %arg3[%c0_5, %c0_6] : memref<1x32xf32, #tpu.memory_space<vmem>>, vector<1x32xf32>
    %8 = vector.shape_cast %7 : vector<1x32xf32> to vector<1x1x32xf32>
    %9 = vector.broadcast %8 : vector<1x1x32xf32> to vector<16x16x32xf32>
    %10 = arith.addf %6, %9 : vector<16x16x32xf32>
    %cst = arith.constant 0.000000e+00 : f32
    %11 = vector.broadcast %cst : f32 to vector<16x16x32xf32>
    %12 = arith.maximumf %10, %11 : vector<16x16x32xf32>
    %cst_7 = arith.constant 0.000000e+00 : bf16
    %13 = vector.broadcast %cst_7 : bf16 to vector<18x18x32xbf16>
    %c0_8 = arith.constant 0 : index
    %c0_9 = arith.constant 0 : index
    %c0_10 = arith.constant 0 : index
    %14 = vector.load %arg7[%c0_8, %c0_9, %c0_10] : memref<18x18x32xbf16, #tpu.memory_space<vmem>>, vector<18x18x32xbf16>
    tpu.vector_store %arg7[%c0_8, %c0_9, %c0_10], %13 {strides = array<i32>} : memref<18x18x32xbf16, #tpu.memory_space<vmem>>, vector<18x18x32xbf16>,
    %15 = arith.truncf %12 : vector<16x16x32xf32> to vector<16x16x32xbf16>
    %c1 = arith.constant 1 : index
    %c1_11 = arith.constant 1 : index
    %c0_12 = arith.constant 0 : index
    %16 = vector.load %arg7[%c1, %c1_11, %c0_12] : memref<18x18x32xbf16, #tpu.memory_space<vmem>>, vector<16x16x32xbf16>
    tpu.vector_store %arg7[%c1, %c1_11, %c0_12], %15 {strides = array<i32>} : memref<18x18x32xbf16, #tpu.memory_space<vmem>>, vector<16x16x32xbf16>,
    %c0_13 = arith.constant 0 : index
    %c0_14 = arith.constant 0 : index
    %c0_15 = arith.constant 0 : index
    %17 = vector.load %arg7[%c0_13, %c0_14, %c0_15] : memref<18x18x32xbf16, #tpu.memory_space<vmem>>, vector<16x16x32xbf16>
    %18 = vector.shape_cast %17 : vector<16x16x32xbf16> to vector<256x32xbf16>
    %c0_16 = arith.constant 0 : index
    %c1_17 = arith.constant 1 : index
    %c0_18 = arith.constant 0 : index
    %19 = vector.load %arg7[%c0_16, %c1_17, %c0_18] : memref<18x18x32xbf16, #tpu.memory_space<vmem>>, vector<16x16x32xbf16>
    %20 = vector.shape_cast %19 : vector<16x16x32xbf16> to vector<256x32xbf16>
    %c0_19 = arith.constant 0 : index
    %c2 = arith.constant 2 : index
    %c0_20 = arith.constant 0 : index
    %21 = vector.load %arg7[%c0_19, %c2, %c0_20] : memref<18x18x32xbf16, #tpu.memory_space<vmem>>, vector<16x16x32xbf16>
    %22 = vector.shape_cast %21 : vector<16x16x32xbf16> to vector<256x32xbf16>
    %c1_21 = arith.constant 1 : index
    %c0_22 = arith.constant 0 : index
    %c0_23 = arith.constant 0 : index
    %23 = vector.load %arg7[%c1_21, %c0_22, %c0_23] : memref<18x18x32xbf16, #tpu.memory_space<vmem>>, vector<16x16x32xbf16>
    %24 = vector.shape_cast %23 : vector<16x16x32xbf16> to vector<256x32xbf16>
    %c1_24 = arith.constant 1 : index
    %c1_25 = arith.constant 1 : index
    %c0_26 = arith.constant 0 : index
    %25 = vector.load %arg7[%c1_24, %c1_25, %c0_26] : memref<18x18x32xbf16, #tpu.memory_space<vmem>>, vector<16x16x32xbf16>
    %26 = vector.shape_cast %25 : vector<16x16x32xbf16> to vector<256x32xbf16>
    %c1_27 = arith.constant 1 : index
    %c2_28 = arith.constant 2 : index
    %c0_29 = arith.constant 0 : index
    %27 = vector.load %arg7[%c1_27, %c2_28, %c0_29] : memref<18x18x32xbf16, #tpu.memory_space<vmem>>, vector<16x16x32xbf16>
    %28 = vector.shape_cast %27 : vector<16x16x32xbf16> to vector<256x32xbf16>
    %c2_30 = arith.constant 2 : index
    %c0_31 = arith.constant 0 : index
    %c0_32 = arith.constant 0 : index
    %29 = vector.load %arg7[%c2_30, %c0_31, %c0_32] : memref<18x18x32xbf16, #tpu.memory_space<vmem>>, vector<16x16x32xbf16>
    %30 = vector.shape_cast %29 : vector<16x16x32xbf16> to vector<256x32xbf16>
    %c2_33 = arith.constant 2 : index
    %c1_34 = arith.constant 1 : index
    %c0_35 = arith.constant 0 : index
    %31 = vector.load %arg7[%c2_33, %c1_34, %c0_35] : memref<18x18x32xbf16, #tpu.memory_space<vmem>>, vector<16x16x32xbf16>
    %32 = vector.shape_cast %31 : vector<16x16x32xbf16> to vector<256x32xbf16>
    %c2_36 = arith.constant 2 : index
    %c2_37 = arith.constant 2 : index
    %c0_38 = arith.constant 0 : index
    %33 = vector.load %arg7[%c2_36, %c2_37, %c0_38] : memref<18x18x32xbf16, #tpu.memory_space<vmem>>, vector<16x16x32xbf16>
    %34 = vector.shape_cast %33 : vector<16x16x32xbf16> to vector<256x32xbf16>
    %35 = tpu.concatenate %18, %20, %22, %24, %26, %28, %30, %32, %34 in 1 : vector<256x32xbf16>, vector<256x32xbf16>, vector<256x32xbf16>, vector<256x32xbf16>, vector<256x32xbf16>, vector<256x32xbf16>, vector<256x32xbf16>, vector<256x32xbf16>, vector<256x32xbf16> -> vector<256x288xbf16>
    %c0_39 = arith.constant 0 : index
    %c0_40 = arith.constant 0 : index
    %36 = vector.load %arg4[%c0_39, %c0_40] : memref<288x32xbf16, #tpu.memory_space<vmem>>, vector<288x32xbf16>
    %cst_41 = arith.constant dense<0.000000e+00> : vector<256x32xf32>
    %37 = tpu.matmul %35, %36, %cst_41 {dimension_numbers = #tpu.dot_dimension_numbers<[1], [0], [0], [1], [0, 0, 1, 1], [], []>} : vector<256x288xbf16>, vector<288x32xbf16>, vector<256x32xf32> -> vector<256x32xf32>
    %cst_42 = arith.constant dense<0.000000e+00> : vector<32xf32>
    %38 = vector.multi_reduction <add>, %37, %cst_42 [0] : vector<256x32xf32> to vector<32xf32>
    %39 = vector.shape_cast %38 : vector<32xf32> to vector<1x32xf32>
    %40 = arith.mulf %37, %37 : vector<256x32xf32>
    %cst_43 = arith.constant dense<0.000000e+00> : vector<32xf32>
    %41 = vector.multi_reduction <add>, %40, %cst_43 [0] : vector<256x32xf32> to vector<32xf32>
    %42 = vector.shape_cast %41 : vector<32xf32> to vector<1x32xf32>
    %43 = tpu.concatenate %39, %42 in 0 : vector<1x32xf32>, vector<1x32xf32> -> vector<2x32xf32>
    %c0_44 = arith.constant 0 : index
    %c0_45 = arith.constant 0 : index
    %c0_46 = arith.constant 0 : index
    %44 = vector.load %arg6[%c0_44, %c0_45, %c0_46] : memref<1x2x32xf32, #tpu.memory_space<vmem>>, vector<1x2x32xf32>
    %45 = vector.shape_cast %44 : vector<1x2x32xf32> to vector<2x32xf32>
    %46 = vector.shape_cast %43 : vector<2x32xf32> to vector<1x2x32xf32>
    tpu.vector_store %arg6[%c0_44, %c0_45, %c0_46], %46 {strides = array<i32>} : memref<1x2x32xf32, #tpu.memory_space<vmem>>, vector<1x2x32xf32>,
    %47 = arith.truncf %37 : vector<256x32xf32> to vector<256x32xbf16>
    %c0_47 = arith.constant 0 : index
    %c0_48 = arith.constant 0 : index
    %48 = vector.load %arg5[%c0_47, %c0_48] : memref<256x32xbf16, #tpu.memory_space<vmem>>, vector<256x32xbf16>
    tpu.vector_store %arg5[%c0_47, %c0_48], %47 {strides = array<i32>} : memref<256x32xbf16, #tpu.memory_space<vmem>>, vector<256x32xbf16>,
    return
  }
  func.func @transform_0(%arg0: i32) -> (i32, i32, i32, i32) {
    %c0_i32 = arith.constant 0 : i32
    %c0_i32_0 = arith.constant 0 : i32
    %c0_i32_1 = arith.constant 0 : i32
    %c0_i32_2 = arith.constant 0 : i32
    return %arg0, %c0_i32, %c0_i32_0, %c0_i32_1 : i32, i32, i32, i32
  }
  func.func @transform_1(%arg0: i32) -> (i32, i32) {
    %c0_i32 = arith.constant 0 : i32
    %c0_i32_0 = arith.constant 0 : i32
    %c0_i32_1 = arith.constant 0 : i32
    return %c0_i32, %c0_i32_0 : i32, i32
  }
  func.func @transform_2(%arg0: i32) -> (i32, i32) {
    %c0_i32 = arith.constant 0 : i32
    %c0_i32_0 = arith.constant 0 : i32
    %c0_i32_1 = arith.constant 0 : i32
    return %c0_i32, %c0_i32_0 : i32, i32
  }
  func.func @transform_3(%arg0: i32) -> (i32, i32) {
    %c0_i32 = arith.constant 0 : i32
    %c0_i32_0 = arith.constant 0 : i32
    %c0_i32_1 = arith.constant 0 : i32
    return %c0_i32, %c0_i32_0 : i32, i32
  }
  func.func @transform_4(%arg0: i32) -> (i32, i32) {
    %c0_i32 = arith.constant 0 : i32
    %c0_i32_0 = arith.constant 0 : i32
    return %arg0, %c0_i32 : i32, i32
  }
  func.func @transform_5(%arg0: i32) -> (i32, i32, i32) {
    %c0_i32 = arith.constant 0 : i32
    %c0_i32_0 = arith.constant 0 : i32
    %c0_i32_1 = arith.constant 0 : i32
    return %arg0, %c0_i32, %c0_i32_0 : i32, i32, i32
  }
}

module attributes {stable_mosaic.version = 11 : i64} {
  func.func @_bn_relu_conv1x1_stats_kernel(%arg0: i32, %arg1: memref<256x32xbf16, #tpu.memory_space<vmem>>, %arg2: memref<1x32xf32, #tpu.memory_space<vmem>>, %arg3: memref<1x32xf32, #tpu.memory_space<vmem>>, %arg4: memref<32x128xbf16, #tpu.memory_space<vmem>>, %arg5: memref<256x128xf32, #tpu.memory_space<vmem>>, %arg6: memref<1x2x128xf32, #tpu.memory_space<vmem>>) attributes {dimension_semantics = [#tpu.dimension_semantics<parallel>], iteration_bounds = array<i64: 2>, scalar_prefetch = 0 : i64, scratch_operands = 0 : i64, tpu.core_type = #tpu.core_type<tc>, window_params = [{transform_indices = @transform_0, window_bounds = array<i64: 256, 32>}, {pipeline_mode = #tpu.pipeline_mode<synchronous>, transform_indices = @transform_1, window_bounds = array<i64: 1, 32>}, {pipeline_mode = #tpu.pipeline_mode<synchronous>, transform_indices = @transform_2, window_bounds = array<i64: 1, 32>}, {pipeline_mode = #tpu.pipeline_mode<synchronous>, transform_indices = @transform_3, window_bounds = array<i64: 32, 128>}, {transform_indices = @transform_4, window_bounds = array<i64: 256, 128>}, {transform_indices = @transform_5, window_bounds = array<i64: 1, 2, 128>}]} {
    %c0 = arith.constant 0 : index
    %c0_0 = arith.constant 0 : index
    %0 = vector.load %arg1[%c0, %c0_0] : memref<256x32xbf16, #tpu.memory_space<vmem>>, vector<256x32xbf16>
    %1 = arith.extf %0 : vector<256x32xbf16> to vector<256x32xf32>
    %c0_1 = arith.constant 0 : index
    %c0_2 = arith.constant 0 : index
    %2 = vector.load %arg2[%c0_1, %c0_2] : memref<1x32xf32, #tpu.memory_space<vmem>>, vector<1x32xf32>
    %3 = vector.broadcast %2 : vector<1x32xf32> to vector<256x32xf32>
    %4 = arith.mulf %1, %3 : vector<256x32xf32>
    %c0_3 = arith.constant 0 : index
    %c0_4 = arith.constant 0 : index
    %5 = vector.load %arg3[%c0_3, %c0_4] : memref<1x32xf32, #tpu.memory_space<vmem>>, vector<1x32xf32>
    %6 = vector.broadcast %5 : vector<1x32xf32> to vector<256x32xf32>
    %7 = arith.addf %4, %6 : vector<256x32xf32>
    %cst = arith.constant 0.000000e+00 : f32
    %8 = vector.broadcast %cst : f32 to vector<256x32xf32>
    %9 = arith.maximumf %7, %8 : vector<256x32xf32>
    %10 = arith.truncf %9 : vector<256x32xf32> to vector<256x32xbf16>
    %c0_5 = arith.constant 0 : index
    %c0_6 = arith.constant 0 : index
    %11 = vector.load %arg4[%c0_5, %c0_6] : memref<32x128xbf16, #tpu.memory_space<vmem>>, vector<32x128xbf16>
    %cst_7 = arith.constant dense<0.000000e+00> : vector<256x128xf32>
    %12 = tpu.matmul %10, %11, %cst_7 {dimension_numbers = #tpu.dot_dimension_numbers<[1], [0], [0], [1], [0, 0, 1, 1], [], []>} : vector<256x32xbf16>, vector<32x128xbf16>, vector<256x128xf32> -> vector<256x128xf32>
    %cst_8 = arith.constant dense<0.000000e+00> : vector<128xf32>
    %13 = vector.multi_reduction <add>, %12, %cst_8 [0] : vector<256x128xf32> to vector<128xf32>
    %14 = vector.shape_cast %13 : vector<128xf32> to vector<1x128xf32>
    %15 = arith.mulf %12, %12 : vector<256x128xf32>
    %cst_9 = arith.constant dense<0.000000e+00> : vector<128xf32>
    %16 = vector.multi_reduction <add>, %15, %cst_9 [0] : vector<256x128xf32> to vector<128xf32>
    %17 = vector.shape_cast %16 : vector<128xf32> to vector<1x128xf32>
    %18 = tpu.concatenate %14, %17 in 0 : vector<1x128xf32>, vector<1x128xf32> -> vector<2x128xf32>
    %c0_10 = arith.constant 0 : index
    %c0_11 = arith.constant 0 : index
    %c0_12 = arith.constant 0 : index
    %19 = vector.load %arg6[%c0_10, %c0_11, %c0_12] : memref<1x2x128xf32, #tpu.memory_space<vmem>>, vector<1x2x128xf32>
    %20 = vector.shape_cast %19 : vector<1x2x128xf32> to vector<2x128xf32>
    %21 = vector.shape_cast %18 : vector<2x128xf32> to vector<1x2x128xf32>
    tpu.vector_store %arg6[%c0_10, %c0_11, %c0_12], %21 {strides = array<i32>} : memref<1x2x128xf32, #tpu.memory_space<vmem>>, vector<1x2x128xf32>,
    %c0_13 = arith.constant 0 : index
    %c0_14 = arith.constant 0 : index
    %22 = vector.load %arg5[%c0_13, %c0_14] : memref<256x128xf32, #tpu.memory_space<vmem>>, vector<256x128xf32>
    tpu.vector_store %arg5[%c0_13, %c0_14], %12 {strides = array<i32>} : memref<256x128xf32, #tpu.memory_space<vmem>>, vector<256x128xf32>,
    return
  }
  func.func @transform_0(%arg0: i32) -> (i32, i32) {
    %c0_i32 = arith.constant 0 : i32
    %c0_i32_0 = arith.constant 0 : i32
    return %arg0, %c0_i32 : i32, i32
  }
  func.func @transform_1(%arg0: i32) -> (i32, i32) {
    %c0_i32 = arith.constant 0 : i32
    %c0_i32_0 = arith.constant 0 : i32
    %c0_i32_1 = arith.constant 0 : i32
    return %c0_i32, %c0_i32_0 : i32, i32
  }
  func.func @transform_2(%arg0: i32) -> (i32, i32) {
    %c0_i32 = arith.constant 0 : i32
    %c0_i32_0 = arith.constant 0 : i32
    %c0_i32_1 = arith.constant 0 : i32
    return %c0_i32, %c0_i32_0 : i32, i32
  }
  func.func @transform_3(%arg0: i32) -> (i32, i32) {
    %c0_i32 = arith.constant 0 : i32
    %c0_i32_0 = arith.constant 0 : i32
    %c0_i32_1 = arith.constant 0 : i32
    return %c0_i32, %c0_i32_0 : i32, i32
  }
  func.func @transform_4(%arg0: i32) -> (i32, i32) {
    %c0_i32 = arith.constant 0 : i32
    %c0_i32_0 = arith.constant 0 : i32
    return %arg0, %c0_i32 : i32, i32
  }
  func.func @transform_5(%arg0: i32) -> (i32, i32, i32) {
    %c0_i32 = arith.constant 0 : i32
    %c0_i32_0 = arith.constant 0 : i32
    %c0_i32_1 = arith.constant 0 : i32
    return %arg0, %c0_i32, %c0_i32_0 : i32, i32, i32
  }
}

module attributes {stable_mosaic.version = 11 : i64} {
  func.func @_bn_residual_relu_kernel(%arg0: i32, %arg1: memref<256x128xf32, #tpu.memory_space<vmem>>, %arg2: memref<1x128xf32, #tpu.memory_space<vmem>>, %arg3: memref<1x128xf32, #tpu.memory_space<vmem>>, %arg4: memref<256x128xf32, #tpu.memory_space<vmem>>, %arg5: memref<256x128xf32, #tpu.memory_space<vmem>>) attributes {dimension_semantics = [#tpu.dimension_semantics<parallel>], iteration_bounds = array<i64: 2>, scalar_prefetch = 0 : i64, scratch_operands = 0 : i64, tpu.core_type = #tpu.core_type<tc>, window_params = [{transform_indices = @transform_0, window_bounds = array<i64: 256, 128>}, {pipeline_mode = #tpu.pipeline_mode<synchronous>, transform_indices = @transform_1, window_bounds = array<i64: 1, 128>}, {pipeline_mode = #tpu.pipeline_mode<synchronous>, transform_indices = @transform_2, window_bounds = array<i64: 1, 128>}, {transform_indices = @transform_3, window_bounds = array<i64: 256, 128>}, {transform_indices = @transform_4, window_bounds = array<i64: 256, 128>}]} {
    %c0 = arith.constant 0 : index
    %c0_0 = arith.constant 0 : index
    %0 = vector.load %arg1[%c0, %c0_0] : memref<256x128xf32, #tpu.memory_space<vmem>>, vector<256x128xf32>
    %c0_1 = arith.constant 0 : index
    %c0_2 = arith.constant 0 : index
    %1 = vector.load %arg2[%c0_1, %c0_2] : memref<1x128xf32, #tpu.memory_space<vmem>>, vector<1x128xf32>
    %2 = vector.broadcast %1 : vector<1x128xf32> to vector<256x128xf32>
    %3 = arith.mulf %0, %2 : vector<256x128xf32>
    %c0_3 = arith.constant 0 : index
    %c0_4 = arith.constant 0 : index
    %4 = vector.load %arg3[%c0_3, %c0_4] : memref<1x128xf32, #tpu.memory_space<vmem>>, vector<1x128xf32>
    %5 = vector.broadcast %4 : vector<1x128xf32> to vector<256x128xf32>
    %6 = arith.addf %3, %5 : vector<256x128xf32>
    %c0_5 = arith.constant 0 : index
    %c0_6 = arith.constant 0 : index
    %7 = vector.load %arg4[%c0_5, %c0_6] : memref<256x128xf32, #tpu.memory_space<vmem>>, vector<256x128xf32>
    %8 = arith.addf %6, %7 : vector<256x128xf32>
    %cst = arith.constant 0.000000e+00 : f32
    %9 = vector.broadcast %cst : f32 to vector<256x128xf32>
    %10 = arith.maximumf %8, %9 : vector<256x128xf32>
    %c0_7 = arith.constant 0 : index
    %c0_8 = arith.constant 0 : index
    %11 = vector.load %arg5[%c0_7, %c0_8] : memref<256x128xf32, #tpu.memory_space<vmem>>, vector<256x128xf32>
    tpu.vector_store %arg5[%c0_7, %c0_8], %10 {strides = array<i32>} : memref<256x128xf32, #tpu.memory_space<vmem>>, vector<256x128xf32>,
    return
  }
  func.func @transform_0(%arg0: i32) -> (i32, i32) {
    %c0_i32 = arith.constant 0 : i32
    %c0_i32_0 = arith.constant 0 : i32
    return %arg0, %c0_i32 : i32, i32
  }
  func.func @transform_1(%arg0: i32) -> (i32, i32) {
    %c0_i32 = arith.constant 0 : i32
    %c0_i32_0 = arith.constant 0 : i32
    %c0_i32_1 = arith.constant 0 : i32
    return %c0_i32, %c0_i32_0 : i32, i32
  }
  func.func @transform_2(%arg0: i32) -> (i32, i32) {
    %c0_i32 = arith.constant 0 : i32
    %c0_i32_0 = arith.constant 0 : i32
    %c0_i32_1 = arith.constant 0 : i32
    return %c0_i32, %c0_i32_0 : i32, i32
  }
  func.func @transform_3(%arg0: i32) -> (i32, i32) {
    %c0_i32 = arith.constant 0 : i32
    %c0_i32_0 = arith.constant 0 : i32
    return %arg0, %c0_i32 : i32, i32
  }
  func.func @transform_4(%arg0: i32) -> (i32, i32) {
    %c0_i32 = arith.constant 0 : i32
    %c0_i32_0 = arith.constant 0 : i32
    return %arg0, %c0_i32 : i32, i32
  }
}

</mosaic_0001>

<llo_original>
// kernel: bottleneck_forward.7
$region0: #{bottleneck_forward.7}
  #allocation0 [shape = 'u32[]', space=smem, size = 0x4, offset = 0x4, fixed_abs, tag = 'smem constant byte address 0x4 - core index']
  #allocation1 [shape = 'u32[144,128]{1,0:T(1,128)}', space=vmem, size = 0x12000, scoped, tag = 'internal scratch']
  %s0 = inlined_call_operand.vmem [shape: f32[512,128], index: 0, kind: input, shape index: {}]
  %s1 = inlined_call_operand.vmem [shape: f32[1,128], index: 1, kind: input, shape index: {}]
  %s2 = inlined_call_operand.vmem [shape: f32[1,128], index: 2, kind: input, shape index: {}]
  %s3 = inlined_call_operand.vmem [shape: f32[512,128], index: 3, kind: input, shape index: {}]
  %s4 = inlined_call_operand.hbm [shape: f32[512,128], index: 4, kind: output, shape index: {}]
  %s5 = sld [smem:[#allocation0]]
  $region49: #{bottleneck_forward.7} parent=0
    _
  %s7 = ssub.s32 1, %s5
  %s8 = scalar_select 0, %s7, %s5
  $region1: #{bottleneck_forward.7} parent=0
    #allocation2 [shape = 'u8[262144]{0}', space=vmem, size = 0x40000, scoped, tag = 'output window, operand 0']
    #allocation3 [shape = 's32[2]{0}', space=sflag, size = 0x8, scoped, tag = 'scoped memory for bottleneck_forward.7']
    %9 = vsyncpa [#allocation3], 0
    %s10 = scalar_lea.sflag [#allocation3], 1
    %11 = vsyncpa %s10, 0
    loop: start=0, step=1, limit=4
    $region2: #{bottleneck_forward.7} parent=1 // loop_pre_header
      _
    $region3: #{bottleneck_forward.7} parent=1 // loop_header
      %s13 = sphi 0, %s17
      %p14 = scmp.ge.s32.totalorder %s13, 4
      %s23 = sphi 0, %s25
      %s26 = sphi 0, %s23
      %s27 = sphi 0, %s26
      %s43 = sphi 0, %s27
      %s47 = sphi 0, %s47
      %s49 = sphi 0, %s47
      %s50 = sphi 0, %s49
      %s64 = sphi 0, %s50
      %s68 = sphi 0, %s68
      %s70 = sphi 0, %s68
      %s71 = sphi 0, %s70
      %s85 = sphi 0, %s71
      %s91 = sphi 0, %s93
      %s94 = sphi 0, %s91
      %s95 = sphi 0, %s94
      %s111 = sphi 0, %s95
      %s117 = sphi 0, %s119
      %s120 = sphi 0, %s117
      %s121 = sphi 0, %s120
      %s137 = sphi 0, %s121
    $region4: #{bottleneck_forward.7} parent=1 // loop_header_branch
      %16 = sbr.rel (%p14) target = $region8
    $region5: #{bottleneck_forward.7} parent=1 // loop_body
      %s18 = ssub.s32 %s13, 1
      %s19 = ssub.s32 %s13, 2
      %s20 = sadd.s32 %s13, 1
      %s21 = ssub.s32 %s13, %s20
      %p22 = scmp.eq.s32.totalorder %s21, 0
      %s24 = sadd.s32 %s23, 1
      %s25 = scalar_select %p22, %s23, %s24
      %p28 = pneg %p22
      %p29 = scmp.eq.s32.totalorder %s13, 1
      %p30 = por %p28, %p29
      %p31 = scmp.ne.s32.totalorder %s23, %s26
      %p32 = scmp.eq.s32.totalorder %s13, 0
      %p33 = por %p31, %p32
      %p34 = scmp.ne.s32.totalorder %s23, %s26
      %p35 = scmp.eq.s32.totalorder %s18, 1
      %p36 = por %p34, %p35
      %p37 = scmp.ne.s32.totalorder %s26, %s27
      %p38 = scmp.eq.s32.totalorder %s18, 0
      %p39 = por %p37, %p38
      %p40 = scmp.ne.s32.totalorder %s26, %s27
      %p41 = scmp.eq.s32.totalorder %s19, 1
      %p42 = por %p40, %p41
      %p44 = scmp.ne.s32.totalorder %s27, %s43
      %p45 = scmp.eq.s32.totalorder %s19, 0
      %p46 = por %p44, %p45
      %s48 = sadd.s32 %s47, 1
      %p51 = scmp.eq.s32.totalorder %s13, 1
      %p52 = scmp.ne.s32.totalorder %s47, %s49
      %p53 = scmp.eq.s32.totalorder %s13, 0
      %p54 = por %p52, %p53
      %p55 = scmp.ne.s32.totalorder %s47, %s49
      %p56 = scmp.eq.s32.totalorder %s18, 1
      %p57 = por %p55, %p56
      %p58 = scmp.ne.s32.totalorder %s49, %s50
      %p59 = scmp.eq.s32.totalorder %s18, 0
      %p60 = por %p58, %p59
      %p61 = scmp.ne.s32.totalorder %s49, %s50
      %p62 = scmp.eq.s32.totalorder %s19, 1
      %p63 = por %p61, %p62
      %p65 = scmp.ne.s32.totalorder %s50, %s64
      %p66 = scmp.eq.s32.totalorder %s19, 0
      %p67 = por %p65, %p66
      %s69 = sadd.s32 %s68, 1
      %p72 = scmp.eq.s32.totalorder %s13, 1
      %p73 = scmp.ne.s32.totalorder %s68, %s70
      %p74 = scmp.eq.s32.totalorder %s13, 0
      %p75 = por %p73, %p74
      %p76 = scmp.ne.s32.totalorder %s68, %s70
      %p77 = scmp.eq.s32.totalorder %s18, 1
      %p78 = por %p76, %p77
      %p79 = scmp.ne.s32.totalorder %s70, %s71
      %p80 = scmp.eq.s32.totalorder %s18, 0
      %p81 = por %p79, %p80
      %p82 = scmp.ne.s32.totalorder %s70, %s71
      %p83 = scmp.eq.s32.totalorder %s19, 1
      %p84 = por %p82, %p83
      %p86 = scmp.ne.s32.totalorder %s71, %s85
      %p87 = scmp.eq.s32.totalorder %s19, 0
      %p88 = por %p86, %p87
      %s89 = ssub.s32 %s13, %s20
      %p90 = scmp.eq.s32.totalorder %s89, 0
      %s92 = sadd.s32 %s91, 1
      %s93 = scalar_select %p90, %s91, %s92
      %p96 = pneg %p90
      %p97 = scmp.eq.s32.totalorder %s13, 1
      %p98 = por %p96, %p97
      %p99 = scmp.ne.s32.totalorder %s91, %s94
      %p100 = scmp.eq.s32.totalorder %s13, 0
      %p101 = por %p99, %p100
      %p102 = scmp.ne.s32.totalorder %s91, %s94
      %p103 = scmp.eq.s32.totalorder %s18, 1
      %p104 = por %p102, %p103
      %p105 = scmp.ne.s32.totalorder %s94, %s95
      %p106 = scmp.eq.s32.totalorder %s18, 0
      %p107 = por %p105, %p106
      %p108 = scmp.ne.s32.totalorder %s94, %s95
      %p109 = scmp.eq.s32.totalorder %s19, 1
      %p110 = por %p108, %p109
      %p112 = scmp.ne.s32.totalorder %s95, %s111
      %p113 = scmp.eq.s32.totalorder %s19, 0
      %p114 = por %p112, %p113
      %s115 = ssub.s32 %s13, %s20
      %p116 = scmp.eq.s32.totalorder %s115, 0
      %s118 = sadd.s32 %s117, 1
      %s119 = scalar_select %p116, %s117, %s118
      %p122 = pneg %p116
      %p123 = scmp.eq.s32.totalorder %s13, 1
      %p124 = por %p122, %p123
      %p125 = scmp.ne.s32.totalorder %s117, %s120
      %p126 = scmp.eq.s32.totalorder %s13, 0
      %p127 = por %p125, %p126
      %p128 = scmp.ne.s32.totalorder %s117, %s120
      %p129 = scmp.eq.s32.totalorder %s18, 1
      %p130 = por %p128, %p129
      %p131 = scmp.ne.s32.totalorder %s120, %s121
      %p132 = scmp.eq.s32.totalorder %s18, 0
      %p133 = por %p131, %p132
      %p134 = scmp.ne.s32.totalorder %s120, %s121
      %p135 = scmp.eq.s32.totalorder %s19, 1
      %p136 = por %p134, %p135
      %p138 = scmp.ne.s32.totalorder %s121, %s137
      %p139 = scmp.eq.s32.totalorder %s19, 0
      %p140 = por %p138, %p139
      %p141 = scmp.le.s32.totalorder 1, %s13
      %p142 = scmp.lt.s32.totalorder %s13, 3
      %p143 = pnand %p141, %p142
      %p144 = pneg %p143
      // Predicated region
      $region9: #{bottleneck_forward.7} parent=5 // pred_check
        _
      $region10: #{bottleneck_forward.7} parent=5 // pred_check_branch
        %146 = sbr.rel (%p143) target = $region12
      $region11: #{bottleneck_forward.7} parent=5 // pred_region
        %s147 = ssub.s32 %s13, 1
        // Predicated region
        $region13: #{bottleneck_forward.7} parent=11 // pred_check
          %p148 = pneg %p60
        $region14: #{bottleneck_forward.7} parent=11 // pred_check_branch
          %150 = sbr.rel (%p148) target = $region16
        $region15: #{bottleneck_forward.7} parent=11 // pred_region
          _
        $region16: #{bottleneck_forward.7} parent=11 // pred_fallthru
          _
        // Predicated region
        $region17: #{bottleneck_forward.7} parent=11 // pred_check
          %p151 = pneg %p81
        $region18: #{bottleneck_forward.7} parent=11 // pred_check_branch
          %153 = sbr.rel (%p151) target = $region20
        $region19: #{bottleneck_forward.7} parent=11 // pred_region
          _
        $region20: #{bottleneck_forward.7} parent=11 // pred_fallthru
          _
      $region12: #{bottleneck_forward.7} parent=5 // pred_fallthru
        _
      %p154 = scmp.lt.s32.totalorder %s13, 2
      // Predicated region
      $region21: #{bottleneck_forward.7} parent=5 // pred_check
        %p155 = pneg %p154
      $region22: #{bottleneck_forward.7} parent=5 // pred_check_branch
        %157 = sbr.rel (%p155) target = $region24
      $region23: #{bottleneck_forward.7} parent=5 // pred_region
        // Predicated region
        $region25: #{bottleneck_forward.7} parent=23 // pred_check
          %p158 = pneg %p33
        $region26: #{bottleneck_forward.7} parent=23 // pred_check_branch
          %160 = sbr.rel (%p158) target = $region28
        $region27: #{bottleneck_forward.7} parent=23 // pred_region
          %s161 = smul.u32 32, %s13
          %p162 = scmp.lt.s32.totalorder %s161, 63
          %s163 = scalar_select %p162, %s161, 63
          %s164 = smul.addr %s163, 8
          %s165 = scalar_lea.vmem %s0, %s164
          %s166 = smul.u32 32, %s13
        $region28: #{bottleneck_forward.7} parent=23 // pred_fallthru
          _
        // Predicated region
        $region29: #{bottleneck_forward.7} parent=23 // pred_check
          %p167 = pneg %p101
        $region30: #{bottleneck_forward.7} parent=23 // pred_check_branch
          %169 = sbr.rel (%p167) target = $region32
        $region31: #{bottleneck_forward.7} parent=23 // pred_region
          %s170 = smul.u32 32, %s13
          %p171 = scmp.lt.s32.totalorder %s170, 63
          %s172 = scalar_select %p171, %s170, 63
          %s173 = smul.addr %s172, 8
          %s174 = scalar_lea.vmem %s3, %s173
          %s175 = smul.u32 32, %s13
        $region32: #{bottleneck_forward.7} parent=23 // pred_fallthru
          _
      $region24: #{bottleneck_forward.7} parent=5 // pred_fallthru
        _
      %p176 = scmp.le.s32.totalorder 1, %s13
      %p177 = scmp.lt.s32.totalorder %s13, 3
      %p178 = pnand %p176, %p177
      %p179 = pneg %p178
      // Predicated region
      $region33: #{bottleneck_forward.7} parent=5 // pred_check
        _
      $region34: #{bottleneck_forward.7} parent=5 // pred_check_branch
        %181 = sbr.rel (%p178) target = $region36
      $region35: #{bottleneck_forward.7} parent=5 // pred_region
        %s182 = ssub.s32 %s13, 1
        %s183 = smul.u32 32, %s18
        %p184 = scmp.lt.s32.totalorder %s183, 63
        %s185 = scalar_select %p184, %s183, 63
        %s186 = smul.addr %s185, 8
        %s187 = scalar_lea.vmem %s0, %s186
        %p188 = pneg %p39
        %p189 = pneg %p36
        %p190 = pneg %p60
        %p191 = pneg %p57
        %p192 = pneg %p81
        %p193 = pneg %p78
        %s194 = smul.u32 32, %s18
        %p195 = scmp.lt.s32.totalorder %s194, 63
        %s196 = scalar_select %p195, %s194, 63
        %s197 = smul.addr %s196, 8
        %s198 = scalar_lea.vmem %s3, %s197
        %p199 = pneg %p107
        %p200 = pneg %p104
        %p201 = pneg %p133
        %p202 = pneg %p130
        %s203 = sand.u32 %s120, 1
        %s204 = scalar_lea.sflag [#allocation3], %s203
        %s205 = sand.u32 %s120, 1
        %s206 = smul.addr %s205, 256
        %s207 = scalar_lea.vmem [#allocation2], %s206
        %s208 = smul.u32 32, %s18
        %p209 = scmp.lt.s32.totalorder %s208, 63
        %s210 = scalar_select %p209, %s208, 63
        %s211 = smul.addr %s210, 8
        %s212 = scalar_lea.vmem %s0, %s211
        %s213 = smul.u32 32, %s18
        %s214 = smul.u32 32, %s18
        %p215 = scmp.lt.s32.totalorder %s214, 63
        %s216 = scalar_select %p215, %s214, 63
        %s217 = smul.addr %s216, 8
        %s218 = scalar_lea.vmem %s3, %s217
        %s219 = smul.u32 32, %s18
        %s220 = smul.u32 32, %s18
        %v221 = vld [vmem:[%s212] sm:$0xff]
        %v222 = vld [vmem:[%s212 + $0x8] sm:$0xff]
        %v223 = vld [vmem:[%s212 + $0x10] sm:$0xff]
        %v224 = vld [vmem:[%s212 + $0x18] sm:$0xff]
        %v225 = vld [vmem:[%s212 + $0x20] sm:$0xff]
        %v226 = vld [vmem:[%s212 + $0x28] sm:$0xff]
        %v227 = vld [vmem:[%s212 + $0x30] sm:$0xff]
        %v228 = vld [vmem:[%s212 + $0x38] sm:$0xff]
        %v229 = vld [vmem:[%s212 + $0x40] sm:$0xff]
        %v230 = vld [vmem:[%s212 + $0x48] sm:$0xff]
        %v231 = vld [vmem:[%s212 + $0x50] sm:$0xff]
        %v232 = vld [vmem:[%s212 + $0x58] sm:$0xff]
        %v233 = vld [vmem:[%s212 + $0x60] sm:$0xff]
        %v234 = vld [vmem:[%s212 + $0x68] sm:$0xff]
        %v235 = vld [vmem:[%s212 + $0x70] sm:$0xff]
        %v236 = vld [vmem:[%s212 + $0x78] sm:$0xff]
        %v237 = vld [vmem:[%s212 + $0x80] sm:$0xff]
        %v238 = vld [vmem:[%s212 + $0x88] sm:$0xff]
        %v239 = vld [vmem:[%s212 + $0x90] sm:$0xff]
        %v240 = vld [vmem:[%s212 + $0x98] sm:$0xff]
        %v241 = vld [vmem:[%s212 + $0xa0] sm:$0xff]
        %v242 = vld [vmem:[%s212 + $0xa8] sm:$0xff]
        %v243 = vld [vmem:[%s212 + $0xb0] sm:$0xff]
        %v244 = vld [vmem:[%s212 + $0xb8] sm:$0xff]
        %v245 = vld [vmem:[%s212 + $0xc0] sm:$0xff]
        %v246 = vld [vmem:[%s212 + $0xc8] sm:$0xff]
        %v247 = vld [vmem:[%s212 + $0xd0] sm:$0xff]
        %v248 = vld [vmem:[%s212 + $0xd8] sm:$0xff]
        %v249 = vld [vmem:[%s212 + $0xe0] sm:$0xff]
        %v250 = vld [vmem:[%s212 + $0xe8] sm:$0xff]
        %v251 = vld [vmem:[%s212 + $0xf0] sm:$0xff]
        %v252 = vld [vmem:[%s212 + $0xf8] sm:$0xff]
        %v253 = vld [vmem:[%s1] sm:$0x1]
        %v255 = vlaneseq
        %v256 = vshrl.u32 %v255, 7
        %v257 = vsub.s32 0, %v256
        %v258 = vrot.slane %v253, %v257
        %v260 = vmul.f32 %v221, %v258
        %v261 = vmul.f32 %v222, %v258
        %v262 = vmul.f32 %v223, %v258
        %v263 = vmul.f32 %v224, %v258
        %v264 = vmul.f32 %v225, %v258
        %v265 = vmul.f32 %v226, %v258
        %v266 = vmul.f32 %v227, %v258
        %v267 = vmul.f32 %v228, %v258
        %v268 = vmul.f32 %v229, %v258
        %v269 = vmul.f32 %v230, %v258
        %v270 = vmul.f32 %v231, %v258
        %v271 = vmul.f32 %v232, %v258
        %v272 = vmul.f32 %v233, %v258
        %v273 = vmul.f32 %v234, %v258
        %v274 = vmul.f32 %v235, %v258
        %v275 = vmul.f32 %v236, %v258
        %v276 = vmul.f32 %v237, %v258
        %v277 = vmul.f32 %v238, %v258
        %v278 = vmul.f32 %v239, %v258
        %v279 = vmul.f32 %v240, %v258
        %v280 = vmul.f32 %v241, %v258
        %v281 = vmul.f32 %v242, %v258
        %v282 = vmul.f32 %v243, %v258
        %v283 = vmul.f32 %v244, %v258
        %v284 = vmul.f32 %v245, %v258
        %v285 = vmul.f32 %v246, %v258
        %v286 = vmul.f32 %v247, %v258
        %v287 = vmul.f32 %v248, %v258
        %v288 = vmul.f32 %v249, %v258
        %v289 = vmul.f32 %v250, %v258
        %v290 = vmul.f32 %v251, %v258
        %v291 = vmul.f32 %v252, %v258
        %v292 = vld [vmem:[%s2] sm:$0x1]
        %v294 = vlaneseq
        %v295 = vshrl.u32 %v294, 7
        %v296 = vsub.s32 0, %v295
        %v297 = vrot.slane %v292, %v296
        %v299 = vadd.f32 %v260, %v297
        %v300 = vadd.f32 %v261, %v297
        %v301 = vadd.f32 %v262, %v297
        %v302 = vadd.f32 %v263, %v297
        %v303 = vadd.f32 %v264, %v297
        %v304 = vadd.f32 %v265, %v297
        %v305 = vadd.f32 %v266, %v297
        %v306 = vadd.f32 %v267, %v297
        %v307 = vadd.f32 %v268, %v297
        %v308 = vadd.f32 %v269, %v297
        %v309 = vadd.f32 %v270, %v297
        %v310 = vadd.f32 %v271, %v297
        %v311 = vadd.f32 %v272, %v297
        %v312 = vadd.f32 %v273, %v297
        %v313 = vadd.f32 %v274, %v297
        %v314 = vadd.f32 %v275, %v297
        %v315 = vadd.f32 %v276, %v297
        %v316 = vadd.f32 %v277, %v297
        %v317 = vadd.f32 %v278, %v297
        %v318 = vadd.f32 %v279, %v297
        %v319 = vadd.f32 %v280, %v297
        %v320 = vadd.f32 %v281, %v297
        %v321 = vadd.f32 %v282, %v297
        %v322 = vadd.f32 %v283, %v297
        %v323 = vadd.f32 %v284, %v297
        %v324 = vadd.f32 %v285, %v297
        %v325 = vadd.f32 %v286, %v297
        %v326 = vadd.f32 %v287, %v297
        %v327 = vadd.f32 %v288, %v297
        %v328 = vadd.f32 %v289, %v297
        %v329 = vadd.f32 %v290, %v297
        %v330 = vadd.f32 %v291, %v297
        %v331 = vld [vmem:[%s218] sm:$0xff]
        %v332 = vld [vmem:[%s218 + $0x8] sm:$0xff]
        %v333 = vld [vmem:[%s218 + $0x10] sm:$0xff]
        %v334 = vld [vmem:[%s218 + $0x18] sm:$0xff]
        %v335 = vld [vmem:[%s218 + $0x20] sm:$0xff]
        %v336 = vld [vmem:[%s218 + $0x28] sm:$0xff]
        %v337 = vld [vmem:[%s218 + $0x30] sm:$0xff]
        %v338 = vld [vmem:[%s218 + $0x38] sm:$0xff]
        %v339 = vld [vmem:[%s218 + $0x40] sm:$0xff]
        %v340 = vld [vmem:[%s218 + $0x48] sm:$0xff]
        %v341 = vld [vmem:[%s218 + $0x50] sm:$0xff]
        %v342 = vld [vmem:[%s218 + $0x58] sm:$0xff]
        %v343 = vld [vmem:[%s218 + $0x60] sm:$0xff]
        %v344 = vld [vmem:[%s218 + $0x68] sm:$0xff]
        %v345 = vld [vmem:[%s218 + $0x70] sm:$0xff]
        %v346 = vld [vmem:[%s218 + $0x78] sm:$0xff]
        %v347 = vld [vmem:[%s218 + $0x80] sm:$0xff]
        %v348 = vld [vmem:[%s218 + $0x88] sm:$0xff]
        %v349 = vld [vmem:[%s218 + $0x90] sm:$0xff]
        %v350 = vld [vmem:[%s218 + $0x98] sm:$0xff]
        %v351 = vld [vmem:[%s218 + $0xa0] sm:$0xff]
        %v352 = vld [vmem:[%s218 + $0xa8] sm:$0xff]
        %v353 = vld [vmem:[%s218 + $0xb0] sm:$0xff]
        %v354 = vld [vmem:[%s218 + $0xb8] sm:$0xff]
        %v355 = vld [vmem:[%s218 + $0xc0] sm:$0xff]
        %v356 = vld [vmem:[%s218 + $0xc8] sm:$0xff]
        %v357 = vld [vmem:[%s218 + $0xd0] sm:$0xff]
        %v358 = vld [vmem:[%s218 + $0xd8] sm:$0xff]
        %v359 = vld [vmem:[%s218 + $0xe0] sm:$0xff]
        %v360 = vld [vmem:[%s218 + $0xe8] sm:$0xff]
        %v361 = vld [vmem:[%s218 + $0xf0] sm:$0xff]
        %v362 = vld [vmem:[%s218 + $0xf8] sm:$0xff]
        %v363 = vadd.f32 %v299, %v331
        %v364 = vadd.f32 %v300, %v332
        %v365 = vadd.f32 %v301, %v333
        %v366 = vadd.f32 %v302, %v334
        %v367 = vadd.f32 %v303, %v335
        %v368 = vadd.f32 %v304, %v336
        %v369 = vadd.f32 %v305, %v337
        %v370 = vadd.f32 %v306, %v338
        %v371 = vadd.f32 %v307, %v339
        %v372 = vadd.f32 %v308, %v340
        %v373 = vadd.f32 %v309, %v341
        %v374 = vadd.f32 %v310, %v342
        %v375 = vadd.f32 %v311, %v343
        %v376 = vadd.f32 %v312, %v344
        %v377 = vadd.f32 %v313, %v345
        %v378 = vadd.f32 %v314, %v346
        %v379 = vadd.f32 %v315, %v347
        %v380 = vadd.f32 %v316, %v348
        %v381 = vadd.f32 %v317, %v349
        %v382 = vadd.f32 %v318, %v350
        %v383 = vadd.f32 %v319, %v351
        %v384 = vadd.f32 %v320, %v352
        %v385 = vadd.f32 %v321, %v353
        %v386 = vadd.f32 %v322, %v354
        %v387 = vadd.f32 %v323, %v355
        %v388 = vadd.f32 %v324, %v356
        %v389 = vadd.f32 %v325, %v357
        %v390 = vadd.f32 %v326, %v358
        %v391 = vadd.f32 %v327, %v359
        %v392 = vadd.f32 %v328, %v360
        %v393 = vadd.f32 %v329, %v361
        %v394 = vadd.f32 %v330, %v362
        %v395 = vmax.f32 %v363, 0.0
        %v396 = vmax.f32 %v364, 0.0
        %v397 = vmax.f32 %v365, 0.0
        %v398 = vmax.f32 %v366, 0.0
        %v399 = vmax.f32 %v367, 0.0
        %v400 = vmax.f32 %v368, 0.0
        %v401 = vmax.f32 %v369, 0.0
        %v402 = vmax.f32 %v370, 0.0
        %v403 = vmax.f32 %v371, 0.0
        %v404 = vmax.f32 %v372, 0.0
        %v405 = vmax.f32 %v373, 0.0
        %v406 = vmax.f32 %v374, 0.0
        %v407 = vmax.f32 %v375, 0.0
        %v408 = vmax.f32 %v376, 0.0
        %v409 = vmax.f32 %v377, 0.0
        %v410 = vmax.f32 %v378, 0.0
        %v411 = vmax.f32 %v379, 0.0
        %v412 = vmax.f32 %v380, 0.0
        %v413 = vmax.f32 %v381, 0.0
        %v414 = vmax.f32 %v382, 0.0
        %v415 = vmax.f32 %v383, 0.0
        %v416 = vmax.f32 %v384, 0.0
        %v417 = vmax.f32 %v385, 0.0
        %v418 = vmax.f32 %v386, 0.0
        %v419 = vmax.f32 %v387, 0.0
        %v420 = vmax.f32 %v388, 0.0
        %v421 = vmax.f32 %v389, 0.0
        %v422 = vmax.f32 %v390, 0.0
        %v423 = vmax.f32 %v391, 0.0
        %v424 = vmax.f32 %v392, 0.0
        %v425 = vmax.f32 %v393, 0.0
        %v426 = vmax.f32 %v394, 0.0
        %427 = vst [vmem:[%s207] sm:$0xff] %v395
        %428 = vst [vmem:[%s207 + $0x8] sm:$0xff] %v396
        %429 = vst [vmem:[%s207 + $0x10] sm:$0xff] %v397
        %430 = vst [vmem:[%s207 + $0x18] sm:$0xff] %v398
        %431 = vst [vmem:[%s207 + $0x20] sm:$0xff] %v399
        %432 = vst [vmem:[%s207 + $0x28] sm:$0xff] %v400
        %433 = vst [vmem:[%s207 + $0x30] sm:$0xff] %v401
        %434 = vst [vmem:[%s207 + $0x38] sm:$0xff] %v402
        %435 = vst [vmem:[%s207 + $0x40] sm:$0xff] %v403
        %436 = vst [vmem:[%s207 + $0x48] sm:$0xff] %v404
        %437 = vst [vmem:[%s207 + $0x50] sm:$0xff] %v405
        %438 = vst [vmem:[%s207 + $0x58] sm:$0xff] %v406
        %439 = vst [vmem:[%s207 + $0x60] sm:$0xff] %v407
        %440 = vst [vmem:[%s207 + $0x68] sm:$0xff] %v408
        %441 = vst [vmem:[%s207 + $0x70] sm:$0xff] %v409
        %442 = vst [vmem:[%s207 + $0x78] sm:$0xff] %v410
        %443 = vst [vmem:[%s207 + $0x80] sm:$0xff] %v411
        %444 = vst [vmem:[%s207 + $0x88] sm:$0xff] %v412
        %445 = vst [vmem:[%s207 + $0x90] sm:$0xff] %v413
        %446 = vst [vmem:[%s207 + $0x98] sm:$0xff] %v414
        %447 = vst [vmem:[%s207 + $0xa0] sm:$0xff] %v415
        %448 = vst [vmem:[%s207 + $0xa8] sm:$0xff] %v416
        %449 = vst [vmem:[%s207 + $0xb0] sm:$0xff] %v417
        %450 = vst [vmem:[%s207 + $0xb8] sm:$0xff] %v418
        %451 = vst [vmem:[%s207 + $0xc0] sm:$0xff] %v419
        %452 = vst [vmem:[%s207 + $0xc8] sm:$0xff] %v420
        %453 = vst [vmem:[%s207 + $0xd0] sm:$0xff] %v421
        %454 = vst [vmem:[%s207 + $0xd8] sm:$0xff] %v422
        %455 = vst [vmem:[%s207 + $0xe0] sm:$0xff] %v423
        %456 = vst [vmem:[%s207 + $0xe8] sm:$0xff] %v424
        %457 = vst [vmem:[%s207 + $0xf0] sm:$0xff] %v425
        %458 = vst [vmem:[%s207 + $0xf8] sm:$0xff] %v426
        %s459 = sand.u32 %s120, 1
        %s460 = scalar_lea.sflag [#allocation3], %s459
        %s461 = sand.u32 %s120, 1
        %s462 = smul.addr %s461, 256
        %s463 = scalar_lea.vmem [#allocation2], %s462
        // Predicated region
        $region37: #{bottleneck_forward.7} parent=35 // pred_check
          %p464 = pneg %p130
        $region38: #{bottleneck_forward.7} parent=35 // pred_check_branch
          %466 = sbr.rel (%p464) target = $region40
        $region39: #{bottleneck_forward.7} parent=35 // pred_region
          %s467 = smul.u32 32, %s18
          %s469 = ssub.s32 4096, 4096
          %470 = vsyncadd %s460, %s469
          %s471 = smul.addr %s467, 128
          %s472 = scalar_lea.hbm %s4, %s471
          %s473 = sshll.u32 %s463, 4
          %s474 = int_to_ptr.vmem [resolvable:$true] %s473
          %479 = dma.vmem_to_hbm [thread:$0]  %s474, 4096, %s472, %s460, 128, 128, 8
        $region40: #{bottleneck_forward.7} parent=35 // pred_fallthru
          _
      $region36: #{bottleneck_forward.7} parent=5 // pred_fallthru
        _
      %p480 = scmp.le.s32.totalorder 2, %s13
      // Predicated region
      $region41: #{bottleneck_forward.7} parent=5 // pred_check
        %p481 = pneg %p480
      $region42: #{bottleneck_forward.7} parent=5 // pred_check_branch
        %483 = sbr.rel (%p481) target = $region44
      $region43: #{bottleneck_forward.7} parent=5 // pred_region
        %s484 = ssub.s32 %s13, 2
        // Predicated region
        $region45: #{bottleneck_forward.7} parent=43 // pred_check
          %p485 = pneg %p136
        $region46: #{bottleneck_forward.7} parent=43 // pred_check_branch
          %487 = sbr.rel (%p485) target = $region48
        $region47: #{bottleneck_forward.7} parent=43 // pred_region
          %s488 = sand.u32 %s121, 1
          %s489 = scalar_lea.sflag [#allocation3], %s488
          %s490 = sand.u32 %s121, 1
          %s491 = smul.addr %s490, 256
          %s492 = scalar_lea.vmem [#allocation2], %s491
          %493 = dma.done %s489, 4096
        $region48: #{bottleneck_forward.7} parent=43 // pred_fallthru
          _
      $region44: #{bottleneck_forward.7} parent=5 // pred_fallthru
        _
    $region6: #{bottleneck_forward.7} parent=1 // loop_footer
      %s17 = sadd.s32 1, %s13
    $region7: #{bottleneck_forward.7} parent=1 // loop_footer_branch
      %12 = sbr.rel target = $region3
    $region8: #{bottleneck_forward.7} parent=1 // loop_exit
      _
    %494 = vsyncpa [#allocation3], 1
    %s495 = scalar_lea.sflag [#allocation3], 1
    %496 = vsyncpa %s495, 1

// kernel: bottleneck_forward.6
$region0: #{bottleneck_forward.6}
  #allocation0 [shape = 'u32[]', space=smem, size = 0x4, offset = 0x4, fixed_abs, tag = 'smem constant byte address 0x4 - core index']
  #allocation1 [shape = 'u32[144,128]{1,0:T(1,128)}', space=vmem, size = 0x12000, scoped, tag = 'internal scratch']
  %s0 = inlined_call_operand.vmem [shape: bf16[512,32], index: 0, kind: input, shape index: {}]
  %s1 = inlined_call_operand.vmem [shape: f32[1,32], index: 1, kind: input, shape index: {}]
  %s2 = inlined_call_operand.vmem [shape: f32[1,32], index: 2, kind: input, shape index: {}]
  %s3 = inlined_call_operand.vmem [shape: bf16[32,128], index: 3, kind: input, shape index: {}]
  %s4 = inlined_call_operand.vmem [shape: f32[512,128], index: 4, kind: output, shape index: {0}]
  %s5 = inlined_call_operand.vmem [shape: f32[2,2,128], index: 5, kind: output, shape index: {1}]
  %6 = xla_tuple %s4, %s5
  %s7 = sld [smem:[#allocation0]]
  $region57: #{bottleneck_forward.6} parent=0
    _
  %s9 = ssub.s32 1, %s7
  %s10 = scalar_select 0, %s9, %s7
  loop: start=0, step=1, limit=4
  $region2: #{bottleneck_forward.6} parent=0 // loop_pre_header
    _
  $region3: #{bottleneck_forward.6} parent=0 // loop_header
    %s12 = sphi 0, %s16
    %p13 = scmp.ge.s32.totalorder %s12, 4
    %s22 = sphi 0, %s24
    %s25 = sphi 0, %s22
    %s26 = sphi 0, %s25
    %s42 = sphi 0, %s26
    %s46 = sphi 0, %s46
    %s48 = sphi 0, %s46
    %s49 = sphi 0, %s48
    %s63 = sphi 0, %s49
    %s67 = sphi 0, %s67
    %s69 = sphi 0, %s67
    %s70 = sphi 0, %s69
    %s84 = sphi 0, %s70
    %s88 = sphi 0, %s88
    %s90 = sphi 0, %s88
    %s91 = sphi 0, %s90
    %s105 = sphi 0, %s91
    %s111 = sphi 0, %s113
    %s114 = sphi 0, %s111
    %s115 = sphi 0, %s114
    %s131 = sphi 0, %s115
    %s137 = sphi 0, %s139
    %s140 = sphi 0, %s137
    %s141 = sphi 0, %s140
    %s157 = sphi 0, %s141
  $region4: #{bottleneck_forward.6} parent=0 // loop_header_branch
    %15 = sbr.rel (%p13) target = $region8
  $region5: #{bottleneck_forward.6} parent=0 // loop_body
    %s17 = ssub.s32 %s12, 1
    %s18 = ssub.s32 %s12, 2
    %s19 = sadd.s32 %s12, 1
    %s20 = ssub.s32 %s12, %s19
    %p21 = scmp.eq.s32.totalorder %s20, 0
    %s23 = sadd.s32 %s22, 1
    %s24 = scalar_select %p21, %s22, %s23
    %p27 = pneg %p21
    %p28 = scmp.eq.s32.totalorder %s12, 1
    %p29 = por %p27, %p28
    %p30 = scmp.ne.s32.totalorder %s22, %s25
    %p31 = scmp.eq.s32.totalorder %s12, 0
    %p32 = por %p30, %p31
    %p33 = scmp.ne.s32.totalorder %s22, %s25
    %p34 = scmp.eq.s32.totalorder %s17, 1
    %p35 = por %p33, %p34
    %p36 = scmp.ne.s32.totalorder %s25, %s26
    %p37 = scmp.eq.s32.totalorder %s17, 0
    %p38 = por %p36, %p37
    %p39 = scmp.ne.s32.totalorder %s25, %s26
    %p40 = scmp.eq.s32.totalorder %s18, 1
    %p41 = por %p39, %p40
    %p43 = scmp.ne.s32.totalorder %s26, %s42
    %p44 = scmp.eq.s32.totalorder %s18, 0
    %p45 = por %p43, %p44
    %s47 = sadd.s32 %s46, 1
    %p50 = scmp.eq.s32.totalorder %s12, 1
    %p51 = scmp.ne.s32.totalorder %s46, %s48
    %p52 = scmp.eq.s32.totalorder %s12, 0
    %p53 = por %p51, %p52
    %p54 = scmp.ne.s32.totalorder %s46, %s48
    %p55 = scmp.eq.s32.totalorder %s17, 1
    %p56 = por %p54, %p55
    %p57 = scmp.ne.s32.totalorder %s48, %s49
    %p58 = scmp.eq.s32.totalorder %s17, 0
    %p59 = por %p57, %p58
    %p60 = scmp.ne.s32.totalorder %s48, %s49
    %p61 = scmp.eq.s32.totalorder %s18, 1
    %p62 = por %p60, %p61
    %p64 = scmp.ne.s32.totalorder %s49, %s63
    %p65 = scmp.eq.s32.totalorder %s18, 0
    %p66 = por %p64, %p65
    %s68 = sadd.s32 %s67, 1
    %p71 = scmp.eq.s32.totalorder %s12, 1
    %p72 = scmp.ne.s32.totalorder %s67, %s69
    %p73 = scmp.eq.s32.totalorder %s12, 0
    %p74 = por %p72, %p73
    %p75 = scmp.ne.s32.totalorder %s67, %s69
    %p76 = scmp.eq.s32.totalorder %s17, 1
    %p77 = por %p75, %p76
    %p78 = scmp.ne.s32.totalorder %s69, %s70
    %p79 = scmp.eq.s32.totalorder %s17, 0
    %p80 = por %p78, %p79
    %p81 = scmp.ne.s32.totalorder %s69, %s70
    %p82 = scmp.eq.s32.totalorder %s18, 1
    %p83 = por %p81, %p82
    %p85 = scmp.ne.s32.totalorder %s70, %s84
    %p86 = scmp.eq.s32.totalorder %s18, 0
    %p87 = por %p85, %p86
    %s89 = sadd.s32 %s88, 1
    %p92 = scmp.eq.s32.totalorder %s12, 1
    %p93 = scmp.ne.s32.totalorder %s88, %s90
    %p94 = scmp.eq.s32.totalorder %s12, 0
    %p95 = por %p93, %p94
    %p96 = scmp.ne.s32.totalorder %s88, %s90
    %p97 = scmp.eq.s32.totalorder %s17, 1
    %p98 = por %p96, %p97
    %p99 = scmp.ne.s32.totalorder %s90, %s91
    %p100 = scmp.eq.s32.totalorder %s17, 0
    %p101 = por %p99, %p100
    %p102 = scmp.ne.s32.totalorder %s90, %s91
    %p103 = scmp.eq.s32.totalorder %s18, 1
    %p104 = por %p102, %p103
    %p106 = scmp.ne.s32.totalorder %s91, %s105
    %p107 = scmp.eq.s32.totalorder %s18, 0
    %p108 = por %p106, %p107
    %s109 = ssub.s32 %s12, %s19
    %p110 = scmp.eq.s32.totalorder %s109, 0
    %s112 = sadd.s32 %s111, 1
    %s113 = scalar_select %p110, %s111, %s112
    %p116 = pneg %p110
    %p117 = scmp.eq.s32.totalorder %s12, 1
    %p118 = por %p116, %p117
    %p119 = scmp.ne.s32.totalorder %s111, %s114
    %p120 = scmp.eq.s32.totalorder %s12, 0
    %p121 = por %p119, %p120
    %p122 = scmp.ne.s32.totalorder %s111, %s114
    %p123 = scmp.eq.s32.totalorder %s17, 1
    %p124 = por %p122, %p123
    %p125 = scmp.ne.s32.totalorder %s114, %s115
    %p126 = scmp.eq.s32.totalorder %s17, 0
    %p127 = por %p125, %p126
    %p128 = scmp.ne.s32.totalorder %s114, %s115
    %p129 = scmp.eq.s32.totalorder %s18, 1
    %p130 = por %p128, %p129
    %p132 = scmp.ne.s32.totalorder %s115, %s131
    %p133 = scmp.eq.s32.totalorder %s18, 0
    %p134 = por %p132, %p133
    %s135 = ssub.s32 %s12, %s19
    %p136 = scmp.eq.s32.totalorder %s135, 0
    %s138 = sadd.s32 %s137, 1
    %s139 = scalar_select %p136, %s137, %s138
    %p142 = pneg %p136
    %p143 = scmp.eq.s32.totalorder %s12, 1
    %p144 = por %p142, %p143
    %p145 = scmp.ne.s32.totalorder %s137, %s140
    %p146 = scmp.eq.s32.totalorder %s12, 0
    %p147 = por %p145, %p146
    %p148 = scmp.ne.s32.totalorder %s137, %s140
    %p149 = scmp.eq.s32.totalorder %s17, 1
    %p150 = por %p148, %p149
    %p151 = scmp.ne.s32.totalorder %s140, %s141
    %p152 = scmp.eq.s32.totalorder %s17, 0
    %p153 = por %p151, %p152
    %p154 = scmp.ne.s32.totalorder %s140, %s141
    %p155 = scmp.eq.s32.totalorder %s18, 1
    %p156 = por %p154, %p155
    %p158 = scmp.ne.s32.totalorder %s141, %s157
    %p159 = scmp.eq.s32.totalorder %s18, 0
    %p160 = por %p158, %p159
    %p161 = scmp.le.s32.totalorder 1, %s12
    %p162 = scmp.lt.s32.totalorder %s12, 3
    %p163 = pnand %p161, %p162
    %p164 = pneg %p163
    // Predicated region
    $region9: #{bottleneck_forward.6} parent=5 // pred_check
      _
    $region10: #{bottleneck_forward.6} parent=5 // pred_check_branch
      %166 = sbr.rel (%p163) target = $region12
    $region11: #{bottleneck_forward.6} parent=5 // pred_region
      %s167 = ssub.s32 %s12, 1
      // Predicated region
      $region13: #{bottleneck_forward.6} parent=11 // pred_check
        %p168 = pneg %p59
      $region14: #{bottleneck_forward.6} parent=11 // pred_check_branch
        %170 = sbr.rel (%p168) target = $region16
      $region15: #{bottleneck_forward.6} parent=11 // pred_region
        _
      $region16: #{bottleneck_forward.6} parent=11 // pred_fallthru
        _
      // Predicated region
      $region17: #{bottleneck_forward.6} parent=11 // pred_check
        %p171 = pneg %p80
      $region18: #{bottleneck_forward.6} parent=11 // pred_check_branch
        %173 = sbr.rel (%p171) target = $region20
      $region19: #{bottleneck_forward.6} parent=11 // pred_region
        _
      $region20: #{bottleneck_forward.6} parent=11 // pred_fallthru
        _
      // Predicated region
      $region21: #{bottleneck_forward.6} parent=11 // pred_check
        %p174 = pneg %p101
      $region22: #{bottleneck_forward.6} parent=11 // pred_check_branch
        %176 = sbr.rel (%p174) target = $region24
      $region23: #{bottleneck_forward.6} parent=11 // pred_region
        _
      $region24: #{bottleneck_forward.6} parent=11 // pred_fallthru
        _
    $region12: #{bottleneck_forward.6} parent=5 // pred_fallthru
      _
    %p177 = scmp.lt.s32.totalorder %s12, 2
    // Predicated region
    $region25: #{bottleneck_forward.6} parent=5 // pred_check
      %p178 = pneg %p177
    $region26: #{bottleneck_forward.6} parent=5 // pred_check_branch
      %180 = sbr.rel (%p178) target = $region28
    $region27: #{bottleneck_forward.6} parent=5 // pred_region
      // Predicated region
      $region29: #{bottleneck_forward.6} parent=27 // pred_check
        %p181 = pneg %p32
      $region30: #{bottleneck_forward.6} parent=27 // pred_check_branch
        %183 = sbr.rel (%p181) target = $region32
      $region31: #{bottleneck_forward.6} parent=27 // pred_region
        %s184 = smul.u32 32, %s12
        %p185 = scmp.lt.s32.totalorder %s184, 63
        %s186 = scalar_select %p185, %s184, 63
        %s187 = smul.addr %s186, 4
        %s188 = scalar_lea.vmem %s0, %s187
        %s189 = smul.u32 32, %s12
      $region32: #{bottleneck_forward.6} parent=27 // pred_fallthru
        _
    $region28: #{bottleneck_forward.6} parent=5 // pred_fallthru
      _
    %p190 = scmp.le.s32.totalorder 1, %s12
    %p191 = scmp.lt.s32.totalorder %s12, 3
    %p192 = pnand %p190, %p191
    %p193 = pneg %p192
    // Predicated region
    $region33: #{bottleneck_forward.6} parent=5 // pred_check
      _
    $region34: #{bottleneck_forward.6} parent=5 // pred_check_branch
      %195 = sbr.rel (%p192) target = $region36
    $region35: #{bottleneck_forward.6} parent=5 // pred_region
      %s196 = ssub.s32 %s12, 1
      %s197 = smul.u32 32, %s17
      %p198 = scmp.lt.s32.totalorder %s197, 63
      %s199 = scalar_select %p198, %s197, 63
      %s200 = smul.addr %s199, 4
      %s201 = scalar_lea.vmem %s0, %s200
      %p202 = pneg %p38
      %p203 = pneg %p35
      %p204 = pneg %p59
      %p205 = pneg %p56
      %p206 = pneg %p80
      %p207 = pneg %p77
      %p208 = pneg %p101
      %p209 = pneg %p98
      %p210 = pneg %p127
      %p211 = pneg %p124
      %s212 = smul.u32 32, %s17
      %p213 = scmp.lt.s32.totalorder %s212, 63
      %s214 = scalar_select %p213, %s212, 63
      %s215 = smul.addr %s214, 8
      %s216 = scalar_lea.vmem %s4, %s215
      %p217 = pneg %p153
      %p218 = pneg %p150
      %p219 = scmp.lt.s32.totalorder %s17, 1
      %s220 = scalar_select %p219, %s17, 1
      %s221 = smul.addr %s220, 2
      %s222 = scalar_lea.vmem %s5, %s221
      %s223 = smul.u32 32, %s17
      %p224 = scmp.lt.s32.totalorder %s223, 63
      %s225 = scalar_select %p224, %s223, 63
      %s226 = smul.addr %s225, 4
      %s227 = scalar_lea.vmem %s0, %s226
      %s228 = smul.u32 32, %s17
      %s229 = smul.u32 32, %s17
      %p230 = scmp.lt.s32.totalorder %s229, 63
      %s231 = scalar_select %p230, %s229, 63
      %s232 = smul.addr %s231, 8
      %s233 = scalar_lea.vmem %s4, %s232
      %s234 = smul.u32 32, %s17
      %p235 = scmp.lt.s32.totalorder %s17, 1
      %s236 = scalar_select %p235, %s17, 1
      %s237 = smul.addr %s236, 2
      %s238 = scalar_lea.vmem %s5, %s237
      %v240 = vld [vmem:[%s227] sm:$0xf]
      %v241 = vld [vmem:[%s227 + $0x4] sm:$0xf]
      %v242 = vld [vmem:[%s227 + $0x8] sm:$0xf]
      %v243 = vld [vmem:[%s227 + $0xc] sm:$0xf]
      %v244 = vld [vmem:[%s227 + $0x10] sm:$0xf]
      %v245 = vld [vmem:[%s227 + $0x14] sm:$0xf]
      %v246 = vld [vmem:[%s227 + $0x18] sm:$0xf]
      %v247 = vld [vmem:[%s227 + $0x1c] sm:$0xf]
      %v248 = vld [vmem:[%s227 + $0x20] sm:$0xf]
      %v249 = vld [vmem:[%s227 + $0x24] sm:$0xf]
      %v250 = vld [vmem:[%s227 + $0x28] sm:$0xf]
      %v251 = vld [vmem:[%s227 + $0x2c] sm:$0xf]
      %v252 = vld [vmem:[%s227 + $0x30] sm:$0xf]
      %v253 = vld [vmem:[%s227 + $0x34] sm:$0xf]
      %v254 = vld [vmem:[%s227 + $0x38] sm:$0xf]
      %v255 = vld [vmem:[%s227 + $0x3c] sm:$0xf]
      %v256 = vld [vmem:[%s227 + $0x40] sm:$0xf]
      %v257 = vld [vmem:[%s227 + $0x44] sm:$0xf]
      %v258 = vld [vmem:[%s227 + $0x48] sm:$0xf]
      %v259 = vld [vmem:[%s227 + $0x4c] sm:$0xf]
      %v260 = vld [vmem:[%s227 + $0x50] sm:$0xf]
      %v261 = vld [vmem:[%s227 + $0x54] sm:$0xf]
      %v262 = vld [vmem:[%s227 + $0x58] sm:$0xf]
      %v263 = vld [vmem:[%s227 + $0x5c] sm:$0xf]
      %v264 = vld [vmem:[%s227 + $0x60] sm:$0xf]
      %v265 = vld [vmem:[%s227 + $0x64] sm:$0xf]
      %v266 = vld [vmem:[%s227 + $0x68] sm:$0xf]
      %v267 = vld [vmem:[%s227 + $0x6c] sm:$0xf]
      %v268 = vld [vmem:[%s227 + $0x70] sm:$0xf]
      %v269 = vld [vmem:[%s227 + $0x74] sm:$0xf]
      %v270 = vld [vmem:[%s227 + $0x78] sm:$0xf]
      %v271 = vld [vmem:[%s227 + $0x7c] sm:$0xf]
      %v272 = vunpack.c.l.bf16 %v240
      %v273 = vunpack.c.l.bf16 %v241
      %v274 = vunpack.c.l.bf16 %v242
      %v275 = vunpack.c.l.bf16 %v243
      %v276 = vunpack.c.l.bf16 %v244
      %v277 = vunpack.c.l.bf16 %v245
      %v278 = vunpack.c.l.bf16 %v246
      %v279 = vunpack.c.l.bf16 %v247
      %v280 = vunpack.c.l.bf16 %v248
      %v281 = vunpack.c.l.bf16 %v249
      %v282 = vunpack.c.l.bf16 %v250
      %v283 = vunpack.c.l.bf16 %v251
      %v284 = vunpack.c.l.bf16 %v252
      %v285 = vunpack.c.l.bf16 %v253
      %v286 = vunpack.c.l.bf16 %v254
      %v287 = vunpack.c.l.bf16 %v255
      %v288 = vunpack.c.l.bf16 %v256
      %v289 = vunpack.c.l.bf16 %v257
      %v290 = vunpack.c.l.bf16 %v258
      %v291 = vunpack.c.l.bf16 %v259
      %v292 = vunpack.c.l.bf16 %v260
      %v293 = vunpack.c.l.bf16 %v261
      %v294 = vunpack.c.l.bf16 %v262
      %v295 = vunpack.c.l.bf16 %v263
      %v296 = vunpack.c.l.bf16 %v264
      %v297 = vunpack.c.l.bf16 %v265
      %v298 = vunpack.c.l.bf16 %v266
      %v299 = vunpack.c.l.bf16 %v267
      %v300 = vunpack.c.l.bf16 %v268
      %v301 = vunpack.c.l.bf16 %v269
      %v302 = vunpack.c.l.bf16 %v270
      %v303 = vunpack.c.l.bf16 %v271
      %v304 = vld [vmem:[%s1] sm:$0x1]
      %v306 = vlaneseq
      %v307 = vshrl.u32 %v306, 7
      %v308 = vsub.s32 0, %v307
      %v309 = vrot.slane %v304, %v308
      %v311 = vmul.f32 %v272, %v309
      %v312 = vmul.f32 %v273, %v309
      %v313 = vmul.f32 %v274, %v309
      %v314 = vmul.f32 %v275, %v309
      %v315 = vmul.f32 %v276, %v309
      %v316 = vmul.f32 %v277, %v309
      %v317 = vmul.f32 %v278, %v309
      %v318 = vmul.f32 %v279, %v309
      %v319 = vmul.f32 %v280, %v309
      %v320 = vmul.f32 %v281, %v309
      %v321 = vmul.f32 %v282, %v309
      %v322 = vmul.f32 %v283, %v309
      %v323 = vmul.f32 %v284, %v309
      %v324 = vmul.f32 %v285, %v309
      %v325 = vmul.f32 %v286, %v309
      %v326 = vmul.f32 %v287, %v309
      %v327 = vmul.f32 %v288, %v309
      %v328 = vmul.f32 %v289, %v309
      %v329 = vmul.f32 %v290, %v309
      %v330 = vmul.f32 %v291, %v309
      %v331 = vmul.f32 %v292, %v309
      %v332 = vmul.f32 %v293, %v309
      %v333 = vmul.f32 %v294, %v309
      %v334 = vmul.f32 %v295, %v309
      %v335 = vmul.f32 %v296, %v309
      %v336 = vmul.f32 %v297, %v309
      %v337 = vmul.f32 %v298, %v309
      %v338 = vmul.f32 %v299, %v309
      %v339 = vmul.f32 %v300, %v309
      %v340 = vmul.f32 %v301, %v309
      %v341 = vmul.f32 %v302, %v309
      %v342 = vmul.f32 %v303, %v309
      %v343 = vld [vmem:[%s2] sm:$0x1]
      %v345 = vlaneseq
      %v346 = vshrl.u32 %v345, 7
      %v347 = vsub.s32 0, %v346
      %v348 = vrot.slane %v343, %v347
      %v350 = vadd.f32 %v311, %v348
      %v351 = vadd.f32 %v312, %v348
      %v352 = vadd.f32 %v313, %v348
      %v353 = vadd.f32 %v314, %v348
      %v354 = vadd.f32 %v315, %v348
      %v355 = vadd.f32 %v316, %v348
      %v356 = vadd.f32 %v317, %v348
      %v357 = vadd.f32 %v318, %v348
      %v358 = vadd.f32 %v319, %v348
      %v359 = vadd.f32 %v320, %v348
      %v360 = vadd.f32 %v321, %v348
      %v361 = vadd.f32 %v322, %v348
      %v362 = vadd.f32 %v323, %v348
      %v363 = vadd.f32 %v324, %v348
      %v364 = vadd.f32 %v325, %v348
      %v365 = vadd.f32 %v326, %v348
      %v366 = vadd.f32 %v327, %v348
      %v367 = vadd.f32 %v328, %v348
      %v368 = vadd.f32 %v329, %v348
      %v369 = vadd.f32 %v330, %v348
      %v370 = vadd.f32 %v331, %v348
      %v371 = vadd.f32 %v332, %v348
      %v372 = vadd.f32 %v333, %v348
      %v373 = vadd.f32 %v334, %v348
      %v374 = vadd.f32 %v335, %v348
      %v375 = vadd.f32 %v336, %v348
      %v376 = vadd.f32 %v337, %v348
      %v377 = vadd.f32 %v338, %v348
      %v378 = vadd.f32 %v339, %v348
      %v379 = vadd.f32 %v340, %v348
      %v380 = vadd.f32 %v341, %v348
      %v381 = vadd.f32 %v342, %v348
      %v382 = vmax.f32 %v350, 0.0
      %v383 = vmax.f32 %v351, 0.0
      %v384 = vmax.f32 %v352, 0.0
      %v385 = vmax.f32 %v353, 0.0
      %v386 = vmax.f32 %v354, 0.0
      %v387 = vmax.f32 %v355, 0.0
      %v388 = vmax.f32 %v356, 0.0
      %v389 = vmax.f32 %v357, 0.0
      %v390 = vmax.f32 %v358, 0.0
      %v391 = vmax.f32 %v359, 0.0
      %v392 = vmax.f32 %v360, 0.0
      %v393 = vmax.f32 %v361, 0.0
      %v394 = vmax.f32 %v362, 0.0
      %v395 = vmax.f32 %v363, 0.0
      %v396 = vmax.f32 %v364, 0.0
      %v397 = vmax.f32 %v365, 0.0
      %v398 = vmax.f32 %v366, 0.0
      %v399 = vmax.f32 %v367, 0.0
      %v400 = vmax.f32 %v368, 0.0
      %v401 = vmax.f32 %v369, 0.0
      %v402 = vmax.f32 %v370, 0.0
      %v403 = vmax.f32 %v371, 0.0
      %v404 = vmax.f32 %v372, 0.0
      %v405 = vmax.f32 %v373, 0.0
      %v406 = vmax.f32 %v374, 0.0
      %v407 = vmax.f32 %v375, 0.0
      %v408 = vmax.f32 %v376, 0.0
      %v409 = vmax.f32 %v377, 0.0
      %v410 = vmax.f32 %v378, 0.0
      %v411 = vmax.f32 %v379, 0.0
      %v412 = vmax.f32 %v380, 0.0
      %v413 = vmax.f32 %v381, 0.0
      %v414 = vpack.c.bf16 %v383, %v382
      %v415 = vpack.c.bf16 %v385, %v384
      %v416 = vpack.c.bf16 %v387, %v386
      %v417 = vpack.c.bf16 %v389, %v388
      %v418 = vpack.c.bf16 %v391, %v390
      %v419 = vpack.c.bf16 %v393, %v392
      %v420 = vpack.c.bf16 %v395, %v394
      %v421 = vpack.c.bf16 %v397, %v396
      %v422 = vpack.c.bf16 %v399, %v398
      %v423 = vpack.c.bf16 %v401, %v400
      %v424 = vpack.c.bf16 %v403, %v402
      %v425 = vpack.c.bf16 %v405, %v404
      %v426 = vpack.c.bf16 %v407, %v406
      %v427 = vpack.c.bf16 %v409, %v408
      %v428 = vpack.c.bf16 %v411, %v410
      %v429 = vpack.c.bf16 %v413, %v412
      %v430 = vld [vmem:[%s3] sm:$0xf]
      %v431 = vld [vmem:[%s3 + $0x4] sm:$0xf]
      %v432 = vld [vmem:[%s3 + $0x8] sm:$0xf]
      %v433 = vld [vmem:[%s3 + $0xc] sm:$0xf]
      %v438 = vunpack.c.l.b16 %v430
      %v439 = vunpack.c.l.b16 %v431
      %v440 = vunpack.c.l.b16 %v432
      %v441 = vunpack.c.l.b16 %v433
      %v442 = vpack.c.b16 %v439, %v438
      %v443 = vpack.c.b16 %v441, %v440
      %vm446 = vcmask 261120
      %v448 = vsel %vm446, %v414, 0
      %v451 = vsel %vm446, %v415, 0
      %v454 = vsel %vm446, %v416, 0
      %v457 = vsel %vm446, %v417, 0
      %v460 = vsel %vm446, %v418, 0
      %v463 = vsel %vm446, %v419, 0
      %v466 = vsel %vm446, %v420, 0
      %v469 = vsel %vm446, %v421, 0
      %v472 = vsel %vm446, %v422, 0
      %v475 = vsel %vm446, %v423, 0
      %v478 = vsel %vm446, %v424, 0
      %v481 = vsel %vm446, %v425, 0
      %v484 = vsel %vm446, %v426, 0
      %v487 = vsel %vm446, %v427, 0
      %v490 = vsel %vm446, %v428, 0
      %v493 = vsel %vm446, %v429, 0
      %495 = vmatprep.subr.bf16.mxu0 0
      %496 = vmatpush1.bf16.msra.mxu0 0
      %497 = vmatprep.subr.bf16.mxu0 0
      %498 = vmatpush1.bf16.msra.mxu0 0
      %499 = vmatprep.subr.bf16.mxu0 0
      %500 = vmatpush1.bf16.msra.mxu0 0
      %501 = vmatprep.subr.bf16.mxu0 0
      %502 = vmatpush1.bf16.msra.mxu0 0
      %503 = vmatprep.subr.bf16.mxu0 0
      %504 = vmatpush1.bf16.msra.mxu0 0
      %505 = vmatprep.subr.bf16.mxu0 0
      %506 = vmatpush1.bf16.msra.mxu0 0
      %507 = vmatprep.subr.bf16.mxu0 0
      %508 = vmatpush1.bf16.msra.mxu0 %v443
      %509 = vmatprep.subr.bf16.mxu0 0
      %510 = vmatpush1.bf16.msra.mxu0 %v442
      %511 = vmatprep.subr.bf16.mxu0 0
      %512 = vmatpush2.bf16.msra.mxu0 0
      %513 = vmatprep.subr.bf16.mxu0 0
      %514 = vmatpush2.bf16.msra.mxu0 0
      %515 = vmatprep.subr.bf16.mxu0 0
      %516 = vmatpush2.bf16.msra.mxu0 0
      %517 = vmatprep.subr.bf16.mxu0 0
      %518 = vmatpush2.bf16.msra.mxu0 0
      %519 = vmatprep.subr.bf16.mxu0 0
      %520 = vmatpush2.bf16.msra.mxu0 0
      %521 = vmatprep.subr.bf16.mxu0 0
      %522 = vmatpush2.bf16.msra.mxu0 0
      %523 = vmatprep.subr.bf16.mxu0 0
      %524 = vmatpush2.bf16.msra.mxu0 0
      %525 = vmatprep.subr.bf16.mxu0 0
      %526 = vmatpush2.bf16.msra.mxu0 0
      %527 = vmatprep.mubr.bf16.mxu0 0
      %528 = vmatmul.mubr.bf16.gmra.mxu0 %v448
      %v529 = vpop.f32.mrf.mxu0
      %v530 = vadd.f32 0.0, %v529
      %v531 = vpop.f32.mrf.mxu0
      %v532 = vpop.f32.mrf.mxu0
      %v533 = vadd.f32 0.0, %v532
      %v534 = vpop.f32.mrf.mxu0
      %535 = vmatprep.mubr.bf16.mxu0 0
      %536 = vmatmul.mubr.bf16.gmra.mxu0 %v451
      %v537 = vpop.f32.mrf.mxu0
      %v538 = vadd.f32 0.0, %v537
      %v539 = vpop.f32.mrf.mxu0
      %v540 = vpop.f32.mrf.mxu0
      %v541 = vadd.f32 0.0, %v540
      %v542 = vpop.f32.mrf.mxu0
      %543 = vmatprep.mubr.bf16.mxu0 0
      %544 = vmatmul.mubr.bf16.gmra.mxu0 %v454
      %v545 = vpop.f32.mrf.mxu0
      %v546 = vadd.f32 0.0, %v545
      %v547 = vpop.f32.mrf.mxu0
      %v548 = vpop.f32.mrf.mxu0
      %v549 = vadd.f32 0.0, %v548
      %v550 = vpop.f32.mrf.mxu0
      %551 = vmatprep.mubr.bf16.mxu0 0
      %552 = vmatmul.mubr.bf16.gmra.mxu0 %v457
      %v553 = vpop.f32.mrf.mxu0
      %v554 = vadd.f32 0.0, %v553
      %v555 = vpop.f32.mrf.mxu0
      %v556 = vpop.f32.mrf.mxu0
      %v557 = vadd.f32 0.0, %v556
      %v558 = vpop.f32.mrf.mxu0
      %559 = vmatprep.mubr.bf16.mxu0 0
      %560 = vmatmul.mubr.bf16.gmra.mxu0 %v460
      %v561 = vpop.f32.mrf.mxu0
      %v562 = vadd.f32 0.0, %v561
      %v563 = vpop.f32.mrf.mxu0
      %v564 = vpop.f32.mrf.mxu0
      %v565 = vadd.f32 0.0, %v564
      %v566 = vpop.f32.mrf.mxu0
      %567 = vmatprep.mubr.bf16.mxu0 0
      %568 = vmatmul.mubr.bf16.gmra.mxu0 %v463
      %v569 = vpop.f32.mrf.mxu0
      %v570 = vadd.f32 0.0, %v569
      %v571 = vpop.f32.mrf.mxu0
      %v572 = vpop.f32.mrf.mxu0
      %v573 = vadd.f32 0.0, %v572
      %v574 = vpop.f32.mrf.mxu0
      %575 = vmatprep.mubr.bf16.mxu0 0
      %576 = vmatmul.mubr.bf16.gmra.mxu0 %v466
      %v577 = vpop.f32.mrf.mxu0
      %v578 = vadd.f32 0.0, %v577
      %v579 = vpop.f32.mrf.mxu0
      %v580 = vpop.f32.mrf.mxu0
      %v581 = vadd.f32 0.0, %v580
      %v582 = vpop.f32.mrf.mxu0
      %583 = vmatprep.mubr.bf16.mxu0 0
      %584 = vmatmul.mubr.bf16.gmra.mxu0 %v469
      %v585 = vpop.f32.mrf.mxu0
      %v586 = vadd.f32 0.0, %v585
      %v587 = vpop.f32.mrf.mxu0
      %v588 = vpop.f32.mrf.mxu0
      %v589 = vadd.f32 0.0, %v588
      %v590 = vpop.f32.mrf.mxu0
      %591 = vmatprep.mubr.bf16.mxu0 0
      %592 = vmatmul.mubr.bf16.gmra.mxu0 %v472
      %v593 = vpop.f32.mrf.mxu0
      %v594 = vadd.f32 0.0, %v593
      %v595 = vpop.f32.mrf.mxu0
      %v596 = vpop.f32.mrf.mxu0
      %v597 = vadd.f32 0.0, %v596
      %v598 = vpop.f32.mrf.mxu0
      %599 = vmatprep.mubr.bf16.mxu0 0
      %600 = vmatmul.mubr.bf16.gmra.mxu0 %v475
      %v601 = vpop.f32.mrf.mxu0
      %v602 = vadd.f32 0.0, %v601
      %v603 = vpop.f32.mrf.mxu0
      %v604 = vpop.f32.mrf.mxu0
      %v605 = vadd.f32 0.0, %v604
      %v606 = vpop.f32.mrf.mxu0
      %607 = vmatprep.mubr.bf16.mxu0 0
      %608 = vmatmul.mubr.bf16.gmra.mxu0 %v478
      %v609 = vpop.f32.mrf.mxu0
      %v610 = vadd.f32 0.0, %v609
      %v611 = vpop.f32.mrf.mxu0
      %v612 = vpop.f32.mrf.mxu0
      %v613 = vadd.f32 0.0, %v612
      %v614 = vpop.f32.mrf.mxu0
      %615 = vmatprep.mubr.bf16.mxu0 0
      %616 = vmatmul.mubr.bf16.gmra.mxu0 %v481
      %v617 = vpop.f32.mrf.mxu0
      %v618 = vadd.f32 0.0, %v617
      %v619 = vpop.f32.mrf.mxu0
      %v620 = vpop.f32.mrf.mxu0
      %v621 = vadd.f32 0.0, %v620
      %v622 = vpop.f32.mrf.mxu0
      %623 = vmatprep.mubr.bf16.mxu0 0
      %624 = vmatmul.mubr.bf16.gmra.mxu0 %v484
      %v625 = vpop.f32.mrf.mxu0
      %v626 = vadd.f32 0.0, %v625
      %v627 = vpop.f32.mrf.mxu0
      %v628 = vpop.f32.mrf.mxu0
      %v629 = vadd.f32 0.0, %v628
      %v630 = vpop.f32.mrf.mxu0
      %631 = vmatprep.mubr.bf16.mxu0 0
      %632 = vmatmul.mubr.bf16.gmra.mxu0 %v487
      %v633 = vpop.f32.mrf.mxu0
      %v634 = vadd.f32 0.0, %v633
      %v635 = vpop.f32.mrf.mxu0
      %v636 = vpop.f32.mrf.mxu0
      %v637 = vadd.f32 0.0, %v636
      %v638 = vpop.f32.mrf.mxu0
      %639 = vmatprep.mubr.bf16.mxu0 0
      %640 = vmatmul.mubr.bf16.gmra.mxu0 %v490
      %v641 = vpop.f32.mrf.mxu0
      %v642 = vadd.f32 0.0, %v641
      %v643 = vpop.f32.mrf.mxu0
      %v644 = vpop.f32.mrf.mxu0
      %v645 = vadd.f32 0.0, %v644
      %v646 = vpop.f32.mrf.mxu0
      %647 = vmatprep.mubr.bf16.mxu0 0
      %648 = vmatmul.mubr.bf16.gmra.mxu0 %v493
      %v649 = vpop.f32.mrf.mxu0
      %v650 = vadd.f32 0.0, %v649
      %v651 = vpop.f32.mrf.mxu0
      %v652 = vpop.f32.mrf.mxu0
      %v653 = vadd.f32 0.0, %v652
      %v654 = vpop.f32.mrf.mxu0
      %655 = vdwg.mxu0
      %v656 = vadd.f32 %v530, %v533
      %v657 = vadd.f32 %v656, %v538
      %v658 = vadd.f32 %v657, %v541
      %v659 = vadd.f32 %v658, %v546
      %v660 = vadd.f32 %v659, %v549
      %v661 = vadd.f32 %v660, %v554
      %v662 = vadd.f32 %v661, %v557
      %v663 = vadd.f32 %v662, %v562
      %v664 = vadd.f32 %v663, %v565
      %v665 = vadd.f32 %v664, %v570
      %v666 = vadd.f32 %v665, %v573
      %v667 = vadd.f32 %v666, %v578
      %v668 = vadd.f32 %v667, %v581
      %v669 = vadd.f32 %v668, %v586
      %v670 = vadd.f32 %v669, %v589
      %v671 = vadd.f32 %v670, %v594
      %v672 = vadd.f32 %v671, %v597
      %v673 = vadd.f32 %v672, %v602
      %v674 = vadd.f32 %v673, %v605
      %v675 = vadd.f32 %v674, %v610
      %v676 = vadd.f32 %v675, %v613
      %v677 = vadd.f32 %v676, %v618
      %v678 = vadd.f32 %v677, %v621
      %v679 = vadd.f32 %v678, %v626
      %v680 = vadd.f32 %v679, %v629
      %v681 = vadd.f32 %v680, %v634
      %v682 = vadd.f32 %v681, %v637
      %v683 = vadd.f32 %v682, %v642
      %v684 = vadd.f32 %v683, %v645
      %v685 = vadd.f32 %v684, %v650
      %v686 = vadd.f32 %v685, %v653
      %v687 = vrot.slane %v686, 4
      %v688 = vadd.f32 %v686, %v687
      %v689 = vrot.slane %v688, 2
      %v690 = vadd.f32 %v688, %v689
      %v691 = vrot.slane %v690, 1
      %v692 = vadd.f32 %v690, %v691
      %v693 = vmul.f32 %v530, %v530
      %v694 = vmul.f32 %v533, %v533
      %v695 = vmul.f32 %v538, %v538
      %v696 = vmul.f32 %v541, %v541
      %v697 = vmul.f32 %v546, %v546
      %v698 = vmul.f32 %v549, %v549
      %v699 = vmul.f32 %v554, %v554
      %v700 = vmul.f32 %v557, %v557
      %v701 = vmul.f32 %v562, %v562
      %v702 = vmul.f32 %v565, %v565
      %v703 = vmul.f32 %v570, %v570
      %v704 = vmul.f32 %v573, %v573
      %v705 = vmul.f32 %v578, %v578
      %v706 = vmul.f32 %v581, %v581
      %v707 = vmul.f32 %v586, %v586
      %v708 = vmul.f32 %v589, %v589
      %v709 = vmul.f32 %v594, %v594
      %v710 = vmul.f32 %v597, %v597
      %v711 = vmul.f32 %v602, %v602
      %v712 = vmul.f32 %v605, %v605
      %v713 = vmul.f32 %v610, %v610
      %v714 = vmul.f32 %v613, %v613
      %v715 = vmul.f32 %v618, %v618
      %v716 = vmul.f32 %v621, %v621
      %v717 = vmul.f32 %v626, %v626
      %v718 = vmul.f32 %v629, %v629
      %v719 = vmul.f32 %v634, %v634
      %v720 = vmul.f32 %v637, %v637
      %v721 = vmul.f32 %v642, %v642
      %v722 = vmul.f32 %v645, %v645
      %v723 = vmul.f32 %v650, %v650
      %v724 = vmul.f32 %v653, %v653
      %v725 = vadd.f32 %v693, %v694
      %v726 = vadd.f32 %v725, %v695
      %v727 = vadd.f32 %v726, %v696
      %v728 = vadd.f32 %v727, %v697
      %v729 = vadd.f32 %v728, %v698
      %v730 = vadd.f32 %v729, %v699
      %v731 = vadd.f32 %v730, %v700
      %v732 = vadd.f32 %v731, %v701
      %v733 = vadd.f32 %v732, %v702
      %v734 = vadd.f32 %v733, %v703
      %v735 = vadd.f32 %v734, %v704
      %v736 = vadd.f32 %v735, %v705
      %v737 = vadd.f32 %v736, %v706
      %v738 = vadd.f32 %v737, %v707
      %v739 = vadd.f32 %v738, %v708
      %v740 = vadd.f32 %v739, %v709
      %v741 = vadd.f32 %v740, %v710
      %v742 = vadd.f32 %v741, %v711
      %v743 = vadd.f32 %v742, %v712
      %v744 = vadd.f32 %v743, %v713
      %v745 = vadd.f32 %v744, %v714
      %v746 = vadd.f32 %v745, %v715
      %v747 = vadd.f32 %v746, %v716
      %v748 = vadd.f32 %v747, %v717
      %v749 = vadd.f32 %v748, %v718
      %v750 = vadd.f32 %v749, %v719
      %v751 = vadd.f32 %v750, %v720
      %v752 = vadd.f32 %v751, %v721
      %v753 = vadd.f32 %v752, %v722
      %v754 = vadd.f32 %v753, %v723
      %v755 = vadd.f32 %v754, %v724
      %v756 = vrot.slane %v755, 4
      %v757 = vadd.f32 %v755, %v756
      %v758 = vrot.slane %v757, 2
      %v759 = vadd.f32 %v757, %v758
      %v760 = vrot.slane %v759, 1
      %v761 = vadd.f32 %v759, %v760
      %vm762 = vcmask 1040384
      %v763 = vsel %vm762, %v692, %v761
      %764 = vst [vmem:[%s238] sm:$0x3] %v763
      %765 = vst [vmem:[%s233] sm:$0xff] %v530
      %766 = vst [vmem:[%s233 + $0x8] sm:$0xff] %v533
      %767 = vst [vmem:[%s233 + $0x10] sm:$0xff] %v538
      %768 = vst [vmem:[%s233 + $0x18] sm:$0xff] %v541
      %769 = vst [vmem:[%s233 + $0x20] sm:$0xff] %v546
      %770 = vst [vmem:[%s233 + $0x28] sm:$0xff] %v549
      %771 = vst [vmem:[%s233 + $0x30] sm:$0xff] %v554
      %772 = vst [vmem:[%s233 + $0x38] sm:$0xff] %v557
      %773 = vst [vmem:[%s233 + $0x40] sm:$0xff] %v562
      %774 = vst [vmem:[%s233 + $0x48] sm:$0xff] %v565
      %775 = vst [vmem:[%s233 + $0x50] sm:$0xff] %v570
      %776 = vst [vmem:[%s233 + $0x58] sm:$0xff] %v573
      %777 = vst [vmem:[%s233 + $0x60] sm:$0xff] %v578
      %778 = vst [vmem:[%s233 + $0x68] sm:$0xff] %v581
      %779 = vst [vmem:[%s233 + $0x70] sm:$0xff] %v586
      %780 = vst [vmem:[%s233 + $0x78] sm:$0xff] %v589
      %781 = vst [vmem:[%s233 + $0x80] sm:$0xff] %v594
      %782 = vst [vmem:[%s233 + $0x88] sm:$0xff] %v597
      %783 = vst [vmem:[%s233 + $0x90] sm:$0xff] %v602
      %784 = vst [vmem:[%s233 + $0x98] sm:$0xff] %v605
      %785 = vst [vmem:[%s233 + $0xa0] sm:$0xff] %v610
      %786 = vst [vmem:[%s233 + $0xa8] sm:$0xff] %v613
      %787 = vst [vmem:[%s233 + $0xb0] sm:$0xff] %v618
      %788 = vst [vmem:[%s233 + $0xb8] sm:$0xff] %v621
      %789 = vst [vmem:[%s233 + $0xc0] sm:$0xff] %v626
      %790 = vst [vmem:[%s233 + $0xc8] sm:$0xff] %v629
      %791 = vst [vmem:[%s233 + $0xd0] sm:$0xff] %v634
      %792 = vst [vmem:[%s233 + $0xd8] sm:$0xff] %v637
      %793 = vst [vmem:[%s233 + $0xe0] sm:$0xff] %v642
      %794 = vst [vmem:[%s233 + $0xe8] sm:$0xff] %v645
      %795 = vst [vmem:[%s233 + $0xf0] sm:$0xff] %v650
      %796 = vst [vmem:[%s233 + $0xf8] sm:$0xff] %v653
      %s797 = smul.u32 32, %s17
      %p798 = scmp.lt.s32.totalorder %s797, 63
      %s799 = scalar_select %p798, %s797, 63
      %s800 = smul.addr %s799, 8
      %s801 = scalar_lea.vmem %s4, %s800
      %p802 = scmp.lt.s32.totalorder %s17, 1
      %s803 = scalar_select %p802, %s17, 1
      %s804 = smul.addr %s803, 2
      %s805 = scalar_lea.vmem %s5, %s804
      // Predicated region
      $region37: #{bottleneck_forward.6} parent=35 // pred_check
        %p806 = pneg %p124
      $region38: #{bottleneck_forward.6} parent=35 // pred_check_branch
        %808 = sbr.rel (%p806) target = $region40
      $region39: #{bottleneck_forward.6} parent=35 // pred_region
        %s809 = smul.u32 32, %s17
      $region40: #{bottleneck_forward.6} parent=35 // pred_fallthru
        _
      // Predicated region
      $region41: #{bottleneck_forward.6} parent=35 // pred_check
        %p810 = pneg %p150
      $region42: #{bottleneck_forward.6} parent=35 // pred_check_branch
        %812 = sbr.rel (%p810) target = $region44
      $region43: #{bottleneck_forward.6} parent=35 // pred_region
        _
      $region44: #{bottleneck_forward.6} parent=35 // pred_fallthru
        _
    $region36: #{bottleneck_forward.6} parent=5 // pred_fallthru
      _
    %p813 = scmp.le.s32.totalorder 2, %s12
    // Predicated region
    $region45: #{bottleneck_forward.6} parent=5 // pred_check
      %p814 = pneg %p813
    $region46: #{bottleneck_forward.6} parent=5 // pred_check_branch
      %816 = sbr.rel (%p814) target = $region48
    $region47: #{bottleneck_forward.6} parent=5 // pred_region
      %s817 = ssub.s32 %s12, 2
      // Predicated region
      $region49: #{bottleneck_forward.6} parent=47 // pred_check
        %p818 = pneg %p130
      $region50: #{bottleneck_forward.6} parent=47 // pred_check_branch
        %820 = sbr.rel (%p818) target = $region52
      $region51: #{bottleneck_forward.6} parent=47 // pred_region
        %s821 = smul.u32 32, %s18
        %p822 = scmp.lt.s32.totalorder %s821, 63
        %s823 = scalar_select %p822, %s821, 63
        %s824 = smul.addr %s823, 8
        %s825 = scalar_lea.vmem %s4, %s824
      $region52: #{bottleneck_forward.6} parent=47 // pred_fallthru
        _
      // Predicated region
      $region53: #{bottleneck_forward.6} parent=47 // pred_check
        %p826 = pneg %p156
      $region54: #{bottleneck_forward.6} parent=47 // pred_check_branch
        %828 = sbr.rel (%p826) target = $region56
      $region55: #{bottleneck_forward.6} parent=47 // pred_region
        %p829 = scmp.lt.s32.totalorder %s18, 1
        %s830 = scalar_select %p829, %s18, 1
        %s831 = smul.addr %s830, 2
        %s832 = scalar_lea.vmem %s5, %s831
      $region56: #{bottleneck_forward.6} parent=47 // pred_fallthru
        _
    $region48: #{bottleneck_forward.6} parent=5 // pred_fallthru
      _
  $region6: #{bottleneck_forward.6} parent=0 // loop_footer
    %s16 = sadd.s32 1, %s12
  $region7: #{bottleneck_forward.6} parent=0 // loop_footer_branch
    %11 = sbr.rel target = $region3
  $region8: #{bottleneck_forward.6} parent=0 // loop_exit
    _

// kernel: bottleneck_forward.4
$region0: #{bottleneck_forward.4}
  #allocation0 [shape = 'u32[]', space=smem, size = 0x4, offset = 0x4, fixed_abs, tag = 'smem constant byte address 0x4 - core index']
  #allocation1 [shape = 'u32[144,128]{1,0:T(1,128)}', space=vmem, size = 0x12000, scoped, tag = 'internal scratch']
  %s0 = inlined_call_operand.vmem [shape: f32[512,128], index: 0, kind: input, shape index: {}]
  %s1 = inlined_call_operand.vmem [shape: bf16[128,32], index: 1, kind: input, shape index: {}]
  %s2 = inlined_call_operand.vmem [shape: bf16[512,32], index: 2, kind: output, shape index: {0}]
  %s3 = inlined_call_operand.vmem [shape: f32[2,2,32], index: 3, kind: output, shape index: {1}]
  %4 = xla_tuple %s2, %s3
  %s5 = sld [smem:[#allocation0]]
  $region49: #{bottleneck_forward.4} parent=0
    _
  %s7 = ssub.s32 1, %s5
  %s8 = scalar_select 0, %s7, %s5
  loop: start=0, step=1, limit=4
  $region2: #{bottleneck_forward.4} parent=0 // loop_pre_header
    _
  $region3: #{bottleneck_forward.4} parent=0 // loop_header
    %s10 = sphi 0, %s14
    %p11 = scmp.ge.s32.totalorder %s10, 4
    %s20 = sphi 0, %s22
    %s23 = sphi 0, %s20
    %s24 = sphi 0, %s23
    %s40 = sphi 0, %s24
    %s44 = sphi 0, %s44
    %s46 = sphi 0, %s44
    %s47 = sphi 0, %s46
    %s61 = sphi 0, %s47
    %s67 = sphi 0, %s69
    %s70 = sphi 0, %s67
    %s71 = sphi 0, %s70
    %s87 = sphi 0, %s71
    %s93 = sphi 0, %s95
    %s96 = sphi 0, %s93
    %s97 = sphi 0, %s96
    %s113 = sphi 0, %s97
  $region4: #{bottleneck_forward.4} parent=0 // loop_header_branch
    %13 = sbr.rel (%p11) target = $region8
  $region5: #{bottleneck_forward.4} parent=0 // loop_body
    %s15 = ssub.s32 %s10, 1
    %s16 = ssub.s32 %s10, 2
    %s17 = sadd.s32 %s10, 1
    %s18 = ssub.s32 %s10, %s17
    %p19 = scmp.eq.s32.totalorder %s18, 0
    %s21 = sadd.s32 %s20, 1
    %s22 = scalar_select %p19, %s20, %s21
    %p25 = pneg %p19
    %p26 = scmp.eq.s32.totalorder %s10, 1
    %p27 = por %p25, %p26
    %p28 = scmp.ne.s32.totalorder %s20, %s23
    %p29 = scmp.eq.s32.totalorder %s10, 0
    %p30 = por %p28, %p29
    %p31 = scmp.ne.s32.totalorder %s20, %s23
    %p32 = scmp.eq.s32.totalorder %s15, 1
    %p33 = por %p31, %p32
    %p34 = scmp.ne.s32.totalorder %s23, %s24
    %p35 = scmp.eq.s32.totalorder %s15, 0
    %p36 = por %p34, %p35
    %p37 = scmp.ne.s32.totalorder %s23, %s24
    %p38 = scmp.eq.s32.totalorder %s16, 1
    %p39 = por %p37, %p38
    %p41 = scmp.ne.s32.totalorder %s24, %s40
    %p42 = scmp.eq.s32.totalorder %s16, 0
    %p43 = por %p41, %p42
    %s45 = sadd.s32 %s44, 1
    %p48 = scmp.eq.s32.totalorder %s10, 1
    %p49 = scmp.ne.s32.totalorder %s44, %s46
    %p50 = scmp.eq.s32.totalorder %s10, 0
    %p51 = por %p49, %p50
    %p52 = scmp.ne.s32.totalorder %s44, %s46
    %p53 = scmp.eq.s32.totalorder %s15, 1
    %p54 = por %p52, %p53
    %p55 = scmp.ne.s32.totalorder %s46, %s47
    %p56 = scmp.eq.s32.totalorder %s15, 0
    %p57 = por %p55, %p56
    %p58 = scmp.ne.s32.totalorder %s46, %s47
    %p59 = scmp.eq.s32.totalorder %s16, 1
    %p60 = por %p58, %p59
    %p62 = scmp.ne.s32.totalorder %s47, %s61
    %p63 = scmp.eq.s32.totalorder %s16, 0
    %p64 = por %p62, %p63
    %s65 = ssub.s32 %s10, %s17
    %p66 = scmp.eq.s32.totalorder %s65, 0
    %s68 = sadd.s32 %s67, 1
    %s69 = scalar_select %p66, %s67, %s68
    %p72 = pneg %p66
    %p73 = scmp.eq.s32.totalorder %s10, 1
    %p74 = por %p72, %p73
    %p75 = scmp.ne.s32.totalorder %s67, %s70
    %p76 = scmp.eq.s32.totalorder %s10, 0
    %p77 = por %p75, %p76
    %p78 = scmp.ne.s32.totalorder %s67, %s70
    %p79 = scmp.eq.s32.totalorder %s15, 1
    %p80 = por %p78, %p79
    %p81 = scmp.ne.s32.totalorder %s70, %s71
    %p82 = scmp.eq.s32.totalorder %s15, 0
    %p83 = por %p81, %p82
    %p84 = scmp.ne.s32.totalorder %s70, %s71
    %p85 = scmp.eq.s32.totalorder %s16, 1
    %p86 = por %p84, %p85
    %p88 = scmp.ne.s32.totalorder %s71, %s87
    %p89 = scmp.eq.s32.totalorder %s16, 0
    %p90 = por %p88, %p89
    %s91 = ssub.s32 %s10, %s17
    %p92 = scmp.eq.s32.totalorder %s91, 0
    %s94 = sadd.s32 %s93, 1
    %s95 = scalar_select %p92, %s93, %s94
    %p98 = pneg %p92
    %p99 = scmp.eq.s32.totalorder %s10, 1
    %p100 = por %p98, %p99
    %p101 = scmp.ne.s32.totalorder %s93, %s96
    %p102 = scmp.eq.s32.totalorder %s10, 0
    %p103 = por %p101, %p102
    %p104 = scmp.ne.s32.totalorder %s93, %s96
    %p105 = scmp.eq.s32.totalorder %s15, 1
    %p106 = por %p104, %p105
    %p107 = scmp.ne.s32.totalorder %s96, %s97
    %p108 = scmp.eq.s32.totalorder %s15, 0
    %p109 = por %p107, %p108
    %p110 = scmp.ne.s32.totalorder %s96, %s97
    %p111 = scmp.eq.s32.totalorder %s16, 1
    %p112 = por %p110, %p111
    %p114 = scmp.ne.s32.totalorder %s97, %s113
    %p115 = scmp.eq.s32.totalorder %s16, 0
    %p116 = por %p114, %p115
    %p117 = scmp.le.s32.totalorder 1, %s10
    %p118 = scmp.lt.s32.totalorder %s10, 3
    %p119 = pnand %p117, %p118
    %p120 = pneg %p119
    // Predicated region
    $region9: #{bottleneck_forward.4} parent=5 // pred_check
      _
    $region10: #{bottleneck_forward.4} parent=5 // pred_check_branch
      %122 = sbr.rel (%p119) target = $region12
    $region11: #{bottleneck_forward.4} parent=5 // pred_region
      %s123 = ssub.s32 %s10, 1
      // Predicated region
      $region13: #{bottleneck_forward.4} parent=11 // pred_check
        %p124 = pneg %p57
      $region14: #{bottleneck_forward.4} parent=11 // pred_check_branch
        %126 = sbr.rel (%p124) target = $region16
      $region15: #{bottleneck_forward.4} parent=11 // pred_region
        _
      $region16: #{bottleneck_forward.4} parent=11 // pred_fallthru
        _
    $region12: #{bottleneck_forward.4} parent=5 // pred_fallthru
      _
    %p127 = scmp.lt.s32.totalorder %s10, 2
    // Predicated region
    $region17: #{bottleneck_forward.4} parent=5 // pred_check
      %p128 = pneg %p127
    $region18: #{bottleneck_forward.4} parent=5 // pred_check_branch
      %130 = sbr.rel (%p128) target = $region20
    $region19: #{bottleneck_forward.4} parent=5 // pred_region
      // Predicated region
      $region21: #{bottleneck_forward.4} parent=19 // pred_check
        %p131 = pneg %p30
      $region22: #{bottleneck_forward.4} parent=19 // pred_check_branch
        %133 = sbr.rel (%p131) target = $region24
      $region23: #{bottleneck_forward.4} parent=19 // pred_region
        %s134 = smul.u32 32, %s10
        %p135 = scmp.lt.s32.totalorder %s134, 63
        %s136 = scalar_select %p135, %s134, 63
        %s137 = smul.addr %s136, 8
        %s138 = scalar_lea.vmem %s0, %s137
        %s139 = smul.u32 32, %s10
      $region24: #{bottleneck_forward.4} parent=19 // pred_fallthru
        _
    $region20: #{bottleneck_forward.4} parent=5 // pred_fallthru
      _
    %p140 = scmp.le.s32.totalorder 1, %s10
    %p141 = scmp.lt.s32.totalorder %s10, 3
    %p142 = pnand %p140, %p141
    %p143 = pneg %p142
    // Predicated region
    $region25: #{bottleneck_forward.4} parent=5 // pred_check
      _
    $region26: #{bottleneck_forward.4} parent=5 // pred_check_branch
      %145 = sbr.rel (%p142) target = $region28
    $region27: #{bottleneck_forward.4} parent=5 // pred_region
      %s146 = ssub.s32 %s10, 1
      %s147 = smul.u32 32, %s15
      %p148 = scmp.lt.s32.totalorder %s147, 63
      %s149 = scalar_select %p148, %s147, 63
      %s150 = smul.addr %s149, 8
      %s151 = scalar_lea.vmem %s0, %s150
      %p152 = pneg %p36
      %p153 = pneg %p33
      %p154 = pneg %p57
      %p155 = pneg %p54
      %p156 = pneg %p83
      %p157 = pneg %p80
      %s158 = smul.u32 32, %s15
      %p159 = scmp.lt.s32.totalorder %s158, 63
      %s160 = scalar_select %p159, %s158, 63
      %s161 = smul.addr %s160, 4
      %s162 = scalar_lea.vmem %s2, %s161
      %p163 = pneg %p109
      %p164 = pneg %p106
      %p165 = scmp.lt.s32.totalorder %s15, 1
      %s166 = scalar_select %p165, %s15, 1
      %s167 = smul.addr %s166, 2
      %s168 = scalar_lea.vmem %s3, %s167
      %s169 = smul.u32 32, %s15
      %p170 = scmp.lt.s32.totalorder %s169, 63
      %s171 = scalar_select %p170, %s169, 63
      %s172 = smul.addr %s171, 8
      %s173 = scalar_lea.vmem %s0, %s172
      %s174 = smul.u32 32, %s15
      %s175 = smul.u32 32, %s15
      %p176 = scmp.lt.s32.totalorder %s175, 63
      %s177 = scalar_select %p176, %s175, 63
      %s178 = smul.addr %s177, 4
      %s179 = scalar_lea.vmem %s2, %s178
      %s180 = smul.u32 32, %s15
      %p181 = scmp.lt.s32.totalorder %s15, 1
      %s182 = scalar_select %p181, %s15, 1
      %s183 = smul.addr %s182, 2
      %s184 = scalar_lea.vmem %s3, %s183
      %v186 = vld [vmem:[%s173] sm:$0xff]
      %v187 = vld [vmem:[%s173 + $0x8] sm:$0xff]
      %v188 = vld [vmem:[%s173 + $0x10] sm:$0xff]
      %v189 = vld [vmem:[%s173 + $0x18] sm:$0xff]
      %v190 = vld [vmem:[%s173 + $0x20] sm:$0xff]
      %v191 = vld [vmem:[%s173 + $0x28] sm:$0xff]
      %v192 = vld [vmem:[%s173 + $0x30] sm:$0xff]
      %v193 = vld [vmem:[%s173 + $0x38] sm:$0xff]
      %v194 = vld [vmem:[%s173 + $0x40] sm:$0xff]
      %v195 = vld [vmem:[%s173 + $0x48] sm:$0xff]
      %v196 = vld [vmem:[%s173 + $0x50] sm:$0xff]
      %v197 = vld [vmem:[%s173 + $0x58] sm:$0xff]
      %v198 = vld [vmem:[%s173 + $0x60] sm:$0xff]
      %v199 = vld [vmem:[%s173 + $0x68] sm:$0xff]
      %v200 = vld [vmem:[%s173 + $0x70] sm:$0xff]
      %v201 = vld [vmem:[%s173 + $0x78] sm:$0xff]
      %v202 = vld [vmem:[%s173 + $0x80] sm:$0xff]
      %v203 = vld [vmem:[%s173 + $0x88] sm:$0xff]
      %v204 = vld [vmem:[%s173 + $0x90] sm:$0xff]
      %v205 = vld [vmem:[%s173 + $0x98] sm:$0xff]
      %v206 = vld [vmem:[%s173 + $0xa0] sm:$0xff]
      %v207 = vld [vmem:[%s173 + $0xa8] sm:$0xff]
      %v208 = vld [vmem:[%s173 + $0xb0] sm:$0xff]
      %v209 = vld [vmem:[%s173 + $0xb8] sm:$0xff]
      %v210 = vld [vmem:[%s173 + $0xc0] sm:$0xff]
      %v211 = vld [vmem:[%s173 + $0xc8] sm:$0xff]
      %v212 = vld [vmem:[%s173 + $0xd0] sm:$0xff]
      %v213 = vld [vmem:[%s173 + $0xd8] sm:$0xff]
      %v214 = vld [vmem:[%s173 + $0xe0] sm:$0xff]
      %v215 = vld [vmem:[%s173 + $0xe8] sm:$0xff]
      %v216 = vld [vmem:[%s173 + $0xf0] sm:$0xff]
      %v217 = vld [vmem:[%s173 + $0xf8] sm:$0xff]
      %v218 = vpack.c.bf16 %v187, %v186
      %v219 = vpack.c.bf16 %v189, %v188
      %v220 = vpack.c.bf16 %v191, %v190
      %v221 = vpack.c.bf16 %v193, %v192
      %v222 = vpack.c.bf16 %v195, %v194
      %v223 = vpack.c.bf16 %v197, %v196
      %v224 = vpack.c.bf16 %v199, %v198
      %v225 = vpack.c.bf16 %v201, %v200
      %v226 = vpack.c.bf16 %v203, %v202
      %v227 = vpack.c.bf16 %v205, %v204
      %v228 = vpack.c.bf16 %v207, %v206
      %v229 = vpack.c.bf16 %v209, %v208
      %v230 = vpack.c.bf16 %v211, %v210
      %v231 = vpack.c.bf16 %v213, %v212
      %v232 = vpack.c.bf16 %v215, %v214
      %v233 = vpack.c.bf16 %v217, %v216
      %v234 = vld [vmem:[%s1] sm:$0xf]
      %v235 = vld [vmem:[%s1 + $0x4] sm:$0xf]
      %v236 = vld [vmem:[%s1 + $0x8] sm:$0xf]
      %v237 = vld [vmem:[%s1 + $0xc] sm:$0xf]
      %v238 = vld [vmem:[%s1 + $0x10] sm:$0xf]
      %v239 = vld [vmem:[%s1 + $0x14] sm:$0xf]
      %v240 = vld [vmem:[%s1 + $0x18] sm:$0xf]
      %v241 = vld [vmem:[%s1 + $0x1c] sm:$0xf]
      %v242 = vld [vmem:[%s1 + $0x20] sm:$0xf]
      %v243 = vld [vmem:[%s1 + $0x24] sm:$0xf]
      %v244 = vld [vmem:[%s1 + $0x28] sm:$0xf]
      %v245 = vld [vmem:[%s1 + $0x2c] sm:$0xf]
      %v246 = vld [vmem:[%s1 + $0x30] sm:$0xf]
      %v247 = vld [vmem:[%s1 + $0x34] sm:$0xf]
      %v248 = vld [vmem:[%s1 + $0x38] sm:$0xf]
      %v249 = vld [vmem:[%s1 + $0x3c] sm:$0xf]
      %v266 = vunpack.c.l.b16 %v234
      %v267 = vunpack.c.l.b16 %v235
      %v268 = vunpack.c.l.b16 %v236
      %v269 = vunpack.c.l.b16 %v237
      %v270 = vunpack.c.l.b16 %v238
      %v271 = vunpack.c.l.b16 %v239
      %v272 = vunpack.c.l.b16 %v240
      %v273 = vunpack.c.l.b16 %v241
      %v274 = vunpack.c.l.b16 %v242
      %v275 = vunpack.c.l.b16 %v243
      %v276 = vunpack.c.l.b16 %v244
      %v277 = vunpack.c.l.b16 %v245
      %v278 = vunpack.c.l.b16 %v246
      %v279 = vunpack.c.l.b16 %v247
      %v280 = vunpack.c.l.b16 %v248
      %v281 = vunpack.c.l.b16 %v249
      %v282 = vpack.c.b16 %v267, %v266
      %v283 = vpack.c.b16 %v269, %v268
      %v284 = vpack.c.b16 %v271, %v270
      %v285 = vpack.c.b16 %v273, %v272
      %v286 = vpack.c.b16 %v275, %v274
      %v287 = vpack.c.b16 %v277, %v276
      %v288 = vpack.c.b16 %v279, %v278
      %v289 = vpack.c.b16 %v281, %v280
      %298 = vmatprep.subr.bf16.mxu0 0
      %299 = vmatpush1.bf16.msra.mxu0 %v289
      %300 = vmatprep.subr.bf16.mxu0 0
      %301 = vmatpush1.bf16.msra.mxu0 %v288
      %302 = vmatprep.subr.bf16.mxu0 0
      %303 = vmatpush1.bf16.msra.mxu0 %v287
      %304 = vmatprep.subr.bf16.mxu0 0
      %305 = vmatpush1.bf16.msra.mxu0 %v286
      %306 = vmatprep.subr.bf16.mxu0 0
      %307 = vmatpush1.bf16.msra.mxu0 %v285
      %308 = vmatprep.subr.bf16.mxu0 0
      %309 = vmatpush1.bf16.msra.mxu0 %v284
      %310 = vmatprep.subr.bf16.mxu0 0
      %311 = vmatpush1.bf16.msra.mxu0 %v283
      %312 = vmatprep.subr.bf16.mxu0 0
      %313 = vmatpush1.bf16.msra.mxu0 %v282
      %314 = vmatprep.subr.bf16.mxu0 0
      %315 = vmatpush2.bf16.msra.mxu0 0
      %316 = vmatprep.subr.bf16.mxu0 0
      %317 = vmatpush2.bf16.msra.mxu0 0
      %318 = vmatprep.subr.bf16.mxu0 0
      %319 = vmatpush2.bf16.msra.mxu0 0
      %320 = vmatprep.subr.bf16.mxu0 0
      %321 = vmatpush2.bf16.msra.mxu0 0
      %322 = vmatprep.subr.bf16.mxu0 0
      %323 = vmatpush2.bf16.msra.mxu0 0
      %324 = vmatprep.subr.bf16.mxu0 0
      %325 = vmatpush2.bf16.msra.mxu0 0
      %326 = vmatprep.subr.bf16.mxu0 0
      %327 = vmatpush2.bf16.msra.mxu0 0
      %328 = vmatprep.subr.bf16.mxu0 0
      %329 = vmatpush2.bf16.msra.mxu0 0
      %330 = vmatprep.mubr.bf16.mxu0 0
      %331 = vmatmul.mubr.bf16.gmra.mxu0 %v218
      %v332 = vpop.f32.mrf.mxu0
      %v333 = vadd.f32 0.0, %v332
      %v334 = vpop.f32.mrf.mxu0
      %v335 = vpop.f32.mrf.mxu0
      %v336 = vadd.f32 0.0, %v335
      %v337 = vpop.f32.mrf.mxu0
      %338 = vmatprep.mubr.bf16.mxu0 0
      %339 = vmatmul.mubr.bf16.gmra.mxu0 %v219
      %v340 = vpop.f32.mrf.mxu0
      %v341 = vadd.f32 0.0, %v340
      %v342 = vpop.f32.mrf.mxu0
      %v343 = vpop.f32.mrf.mxu0
      %v344 = vadd.f32 0.0, %v343
      %v345 = vpop.f32.mrf.mxu0
      %346 = vmatprep.mubr.bf16.mxu0 0
      %347 = vmatmul.mubr.bf16.gmra.mxu0 %v220
      %v348 = vpop.f32.mrf.mxu0
      %v349 = vadd.f32 0.0, %v348
      %v350 = vpop.f32.mrf.mxu0
      %v351 = vpop.f32.mrf.mxu0
      %v352 = vadd.f32 0.0, %v351
      %v353 = vpop.f32.mrf.mxu0
      %354 = vmatprep.mubr.bf16.mxu0 0
      %355 = vmatmul.mubr.bf16.gmra.mxu0 %v221
      %v356 = vpop.f32.mrf.mxu0
      %v357 = vadd.f32 0.0, %v356
      %v358 = vpop.f32.mrf.mxu0
      %v359 = vpop.f32.mrf.mxu0
      %v360 = vadd.f32 0.0, %v359
      %v361 = vpop.f32.mrf.mxu0
      %362 = vmatprep.mubr.bf16.mxu0 0
      %363 = vmatmul.mubr.bf16.gmra.mxu0 %v222
      %v364 = vpop.f32.mrf.mxu0
      %v365 = vadd.f32 0.0, %v364
      %v366 = vpop.f32.mrf.mxu0
      %v367 = vpop.f32.mrf.mxu0
      %v368 = vadd.f32 0.0, %v367
      %v369 = vpop.f32.mrf.mxu0
      %370 = vmatprep.mubr.bf16.mxu0 0
      %371 = vmatmul.mubr.bf16.gmra.mxu0 %v223
      %v372 = vpop.f32.mrf.mxu0
      %v373 = vadd.f32 0.0, %v372
      %v374 = vpop.f32.mrf.mxu0
      %v375 = vpop.f32.mrf.mxu0
      %v376 = vadd.f32 0.0, %v375
      %v377 = vpop.f32.mrf.mxu0
      %378 = vmatprep.mubr.bf16.mxu0 0
      %379 = vmatmul.mubr.bf16.gmra.mxu0 %v224
      %v380 = vpop.f32.mrf.mxu0
      %v381 = vadd.f32 0.0, %v380
      %v382 = vpop.f32.mrf.mxu0
      %v383 = vpop.f32.mrf.mxu0
      %v384 = vadd.f32 0.0, %v383
      %v385 = vpop.f32.mrf.mxu0
      %386 = vmatprep.mubr.bf16.mxu0 0
      %387 = vmatmul.mubr.bf16.gmra.mxu0 %v225
      %v388 = vpop.f32.mrf.mxu0
      %v389 = vadd.f32 0.0, %v388
      %v390 = vpop.f32.mrf.mxu0
      %v391 = vpop.f32.mrf.mxu0
      %v392 = vadd.f32 0.0, %v391
      %v393 = vpop.f32.mrf.mxu0
      %394 = vmatprep.mubr.bf16.mxu0 0
      %395 = vmatmul.mubr.bf16.gmra.mxu0 %v226
      %v396 = vpop.f32.mrf.mxu0
      %v397 = vadd.f32 0.0, %v396
      %v398 = vpop.f32.mrf.mxu0
      %v399 = vpop.f32.mrf.mxu0
      %v400 = vadd.f32 0.0, %v399
      %v401 = vpop.f32.mrf.mxu0
      %402 = vmatprep.mubr.bf16.mxu0 0
      %403 = vmatmul.mubr.bf16.gmra.mxu0 %v227
      %v404 = vpop.f32.mrf.mxu0
      %v405 = vadd.f32 0.0, %v404
      %v406 = vpop.f32.mrf.mxu0
      %v407 = vpop.f32.mrf.mxu0
      %v408 = vadd.f32 0.0, %v407
      %v409 = vpop.f32.mrf.mxu0
      %410 = vmatprep.mubr.bf16.mxu0 0
      %411 = vmatmul.mubr.bf16.gmra.mxu0 %v228
      %v412 = vpop.f32.mrf.mxu0
      %v413 = vadd.f32 0.0, %v412
      %v414 = vpop.f32.mrf.mxu0
      %v415 = vpop.f32.mrf.mxu0
      %v416 = vadd.f32 0.0, %v415
      %v417 = vpop.f32.mrf.mxu0
      %418 = vmatprep.mubr.bf16.mxu0 0
      %419 = vmatmul.mubr.bf16.gmra.mxu0 %v229
      %v420 = vpop.f32.mrf.mxu0
      %v421 = vadd.f32 0.0, %v420
      %v422 = vpop.f32.mrf.mxu0
      %v423 = vpop.f32.mrf.mxu0
      %v424 = vadd.f32 0.0, %v423
      %v425 = vpop.f32.mrf.mxu0
      %426 = vmatprep.mubr.bf16.mxu0 0
      %427 = vmatmul.mubr.bf16.gmra.mxu0 %v230
      %v428 = vpop.f32.mrf.mxu0
      %v429 = vadd.f32 0.0, %v428
      %v430 = vpop.f32.mrf.mxu0
      %v431 = vpop.f32.mrf.mxu0
      %v432 = vadd.f32 0.0, %v431
      %v433 = vpop.f32.mrf.mxu0
      %434 = vmatprep.mubr.bf16.mxu0 0
      %435 = vmatmul.mubr.bf16.gmra.mxu0 %v231
      %v436 = vpop.f32.mrf.mxu0
      %v437 = vadd.f32 0.0, %v436
      %v438 = vpop.f32.mrf.mxu0
      %v439 = vpop.f32.mrf.mxu0
      %v440 = vadd.f32 0.0, %v439
      %v441 = vpop.f32.mrf.mxu0
      %442 = vmatprep.mubr.bf16.mxu0 0
      %443 = vmatmul.mubr.bf16.gmra.mxu0 %v232
      %v444 = vpop.f32.mrf.mxu0
      %v445 = vadd.f32 0.0, %v444
      %v446 = vpop.f32.mrf.mxu0
      %v447 = vpop.f32.mrf.mxu0
      %v448 = vadd.f32 0.0, %v447
      %v449 = vpop.f32.mrf.mxu0
      %450 = vmatprep.mubr.bf16.mxu0 0
      %451 = vmatmul.mubr.bf16.gmra.mxu0 %v233
      %v452 = vpop.f32.mrf.mxu0
      %v453 = vadd.f32 0.0, %v452
      %v454 = vpop.f32.mrf.mxu0
      %v455 = vpop.f32.mrf.mxu0
      %v456 = vadd.f32 0.0, %v455
      %v457 = vpop.f32.mrf.mxu0
      %458 = vdwg.mxu0
      %vm459 = vcmask 261120
      %v460 = vsel %vm459, %v333, 0.0
      %v461 = vsel %vm459, %v336, 0.0
      %v462 = vadd.f32 %v460, %v461
      %v463 = vsel %vm459, %v341, 0.0
      %v464 = vadd.f32 %v462, %v463
      %v465 = vsel %vm459, %v344, 0.0
      %v466 = vadd.f32 %v464, %v465
      %v467 = vsel %vm459, %v349, 0.0
      %v468 = vadd.f32 %v466, %v467
      %v469 = vsel %vm459, %v352, 0.0
      %v470 = vadd.f32 %v468, %v469
      %v471 = vsel %vm459, %v357, 0.0
      %v472 = vadd.f32 %v470, %v471
      %v473 = vsel %vm459, %v360, 0.0
      %v474 = vadd.f32 %v472, %v473
      %v475 = vsel %vm459, %v365, 0.0
      %v476 = vadd.f32 %v474, %v475
      %v477 = vsel %vm459, %v368, 0.0
      %v478 = vadd.f32 %v476, %v477
      %v479 = vsel %vm459, %v373, 0.0
      %v480 = vadd.f32 %v478, %v479
      %v481 = vsel %vm459, %v376, 0.0
      %v482 = vadd.f32 %v480, %v481
      %v483 = vsel %vm459, %v381, 0.0
      %v484 = vadd.f32 %v482, %v483
      %v485 = vsel %vm459, %v384, 0.0
      %v486 = vadd.f32 %v484, %v485
      %v487 = vsel %vm459, %v389, 0.0
      %v488 = vadd.f32 %v486, %v487
      %v489 = vsel %vm459, %v392, 0.0
      %v490 = vadd.f32 %v488, %v489
      %v491 = vsel %vm459, %v397, 0.0
      %v492 = vadd.f32 %v490, %v491
      %v493 = vsel %vm459, %v400, 0.0
      %v494 = vadd.f32 %v492, %v493
      %v495 = vsel %vm459, %v405, 0.0
      %v496 = vadd.f32 %v494, %v495
      %v497 = vsel %vm459, %v408, 0.0
      %v498 = vadd.f32 %v496, %v497
      %v499 = vsel %vm459, %v413, 0.0
      %v500 = vadd.f32 %v498, %v499
      %v501 = vsel %vm459, %v416, 0.0
      %v502 = vadd.f32 %v500, %v501
      %v503 = vsel %vm459, %v421, 0.0
      %v504 = vadd.f32 %v502, %v503
      %v505 = vsel %vm459, %v424, 0.0
      %v506 = vadd.f32 %v504, %v505
      %v507 = vsel %vm459, %v429, 0.0
      %v508 = vadd.f32 %v506, %v507
      %v509 = vsel %vm459, %v432, 0.0
      %v510 = vadd.f32 %v508, %v509
      %v511 = vsel %vm459, %v437, 0.0
      %v512 = vadd.f32 %v510, %v511
      %v513 = vsel %vm459, %v440, 0.0
      %v514 = vadd.f32 %v512, %v513
      %v515 = vsel %vm459, %v445, 0.0
      %v516 = vadd.f32 %v514, %v515
      %v517 = vsel %vm459, %v448, 0.0
      %v518 = vadd.f32 %v516, %v517
      %v519 = vsel %vm459, %v453, 0.0
      %v520 = vadd.f32 %v518, %v519
      %v521 = vsel %vm459, %v456, 0.0
      %v522 = vadd.f32 %v520, %v521
      %v523 = vrot.slane %v522, 4
      %v524 = vadd.f32 %v522, %v523
      %v525 = vrot.slane %v524, 2
      %v526 = vadd.f32 %v524, %v525
      %v527 = vrot.slane %v526, 1
      %v528 = vadd.f32 %v526, %v527
      %v529 = vmul.f32 %v333, %v333
      %v530 = vmul.f32 %v336, %v336
      %v531 = vmul.f32 %v341, %v341
      %v532 = vmul.f32 %v344, %v344
      %v533 = vmul.f32 %v349, %v349
      %v534 = vmul.f32 %v352, %v352
      %v535 = vmul.f32 %v357, %v357
      %v536 = vmul.f32 %v360, %v360
      %v537 = vmul.f32 %v365, %v365
      %v538 = vmul.f32 %v368, %v368
      %v539 = vmul.f32 %v373, %v373
      %v540 = vmul.f32 %v376, %v376
      %v541 = vmul.f32 %v381, %v381
      %v542 = vmul.f32 %v384, %v384
      %v543 = vmul.f32 %v389, %v389
      %v544 = vmul.f32 %v392, %v392
      %v545 = vmul.f32 %v397, %v397
      %v546 = vmul.f32 %v400, %v400
      %v547 = vmul.f32 %v405, %v405
      %v548 = vmul.f32 %v408, %v408
      %v549 = vmul.f32 %v413, %v413
      %v550 = vmul.f32 %v416, %v416
      %v551 = vmul.f32 %v421, %v421
      %v552 = vmul.f32 %v424, %v424
      %v553 = vmul.f32 %v429, %v429
      %v554 = vmul.f32 %v432, %v432
      %v555 = vmul.f32 %v437, %v437
      %v556 = vmul.f32 %v440, %v440
      %v557 = vmul.f32 %v445, %v445
      %v558 = vmul.f32 %v448, %v448
      %v559 = vmul.f32 %v453, %v453
      %v560 = vmul.f32 %v456, %v456
      %v561 = vsel %vm459, %v529, 0.0
      %v562 = vsel %vm459, %v530, 0.0
      %v563 = vadd.f32 %v561, %v562
      %v564 = vsel %vm459, %v531, 0.0
      %v565 = vadd.f32 %v563, %v564
      %v566 = vsel %vm459, %v532, 0.0
      %v567 = vadd.f32 %v565, %v566
      %v568 = vsel %vm459, %v533, 0.0
      %v569 = vadd.f32 %v567, %v568
      %v570 = vsel %vm459, %v534, 0.0
      %v571 = vadd.f32 %v569, %v570
      %v572 = vsel %vm459, %v535, 0.0
      %v573 = vadd.f32 %v571, %v572
      %v574 = vsel %vm459, %v536, 0.0
      %v575 = vadd.f32 %v573, %v574
      %v576 = vsel %vm459, %v537, 0.0
      %v577 = vadd.f32 %v575, %v576
      %v578 = vsel %vm459, %v538, 0.0
      %v579 = vadd.f32 %v577, %v578
      %v580 = vsel %vm459, %v539, 0.0
      %v581 = vadd.f32 %v579, %v580
      %v582 = vsel %vm459, %v540, 0.0
      %v583 = vadd.f32 %v581, %v582
      %v584 = vsel %vm459, %v541, 0.0
      %v585 = vadd.f32 %v583, %v584
      %v586 = vsel %vm459, %v542, 0.0
      %v587 = vadd.f32 %v585, %v586
      %v588 = vsel %vm459, %v543, 0.0
      %v589 = vadd.f32 %v587, %v588
      %v590 = vsel %vm459, %v544, 0.0
      %v591 = vadd.f32 %v589, %v590
      %v592 = vsel %vm459, %v545, 0.0
      %v593 = vadd.f32 %v591, %v592
      %v594 = vsel %vm459, %v546, 0.0
      %v595 = vadd.f32 %v593, %v594
      %v596 = vsel %vm459, %v547, 0.0
      %v597 = vadd.f32 %v595, %v596
      %v598 = vsel %vm459, %v548, 0.0
      %v599 = vadd.f32 %v597, %v598
      %v600 = vsel %vm459, %v549, 0.0
      %v601 = vadd.f32 %v599, %v600
      %v602 = vsel %vm459, %v550, 0.0
      %v603 = vadd.f32 %v601, %v602
      %v604 = vsel %vm459, %v551, 0.0
      %v605 = vadd.f32 %v603, %v604
      %v606 = vsel %vm459, %v552, 0.0
      %v607 = vadd.f32 %v605, %v606
      %v608 = vsel %vm459, %v553, 0.0
      %v609 = vadd.f32 %v607, %v608
      %v610 = vsel %vm459, %v554, 0.0
      %v611 = vadd.f32 %v609, %v610
      %v612 = vsel %vm459, %v555, 0.0
      %v613 = vadd.f32 %v611, %v612
      %v614 = vsel %vm459, %v556, 0.0
      %v615 = vadd.f32 %v613, %v614
      %v616 = vsel %vm459, %v557, 0.0
      %v617 = vadd.f32 %v615, %v616
      %v618 = vsel %vm459, %v558, 0.0
      %v619 = vadd.f32 %v617, %v618
      %v620 = vsel %vm459, %v559, 0.0
      %v621 = vadd.f32 %v619, %v620
      %v622 = vsel %vm459, %v560, 0.0
      %v623 = vadd.f32 %v621, %v622
      %v624 = vrot.slane %v623, 4
      %v625 = vadd.f32 %v623, %v624
      %v626 = vrot.slane %v625, 2
      %v627 = vadd.f32 %v625, %v626
      %v628 = vrot.slane %v627, 1
      %v629 = vadd.f32 %v627, %v628
      %vm630 = vcmask 1040384
      %v631 = vsel %vm630, %v528, %v629
      %vm632 = vcmask 254976
      %633 = vst.msk [vmem:[%s184] sm:$0x3] %vm632, %v631
      %v634 = vpack.c.bf16 %v336, %v333
      %v635 = vpack.c.bf16 %v344, %v341
      %v636 = vpack.c.bf16 %v352, %v349
      %v637 = vpack.c.bf16 %v360, %v357
      %v638 = vpack.c.bf16 %v368, %v365
      %v639 = vpack.c.bf16 %v376, %v373
      %v640 = vpack.c.bf16 %v384, %v381
      %v641 = vpack.c.bf16 %v392, %v389
      %v642 = vpack.c.bf16 %v400, %v397
      %v643 = vpack.c.bf16 %v408, %v405
      %v644 = vpack.c.bf16 %v416, %v413
      %v645 = vpack.c.bf16 %v424, %v421
      %v646 = vpack.c.bf16 %v432, %v429
      %v647 = vpack.c.bf16 %v440, %v437
      %v648 = vpack.c.bf16 %v448, %v445
      %v649 = vpack.c.bf16 %v456, %v453
      %v666 = vunpack.c.l.b16 %v634
      %v667 = vunpack.c.h.b16 %v634
      %v668 = vunpack.c.l.b16 %v635
      %v669 = vunpack.c.h.b16 %v635
      %v670 = vunpack.c.l.b16 %v636
      %v671 = vunpack.c.h.b16 %v636
      %v672 = vunpack.c.l.b16 %v637
      %v673 = vunpack.c.h.b16 %v637
      %v674 = vunpack.c.l.b16 %v638
      %v675 = vunpack.c.h.b16 %v638
      %v676 = vunpack.c.l.b16 %v639
      %v677 = vunpack.c.h.b16 %v639
      %v678 = vunpack.c.l.b16 %v640
      %v679 = vunpack.c.h.b16 %v640
      %v680 = vunpack.c.l.b16 %v641
      %v681 = vunpack.c.h.b16 %v641
      %v682 = vunpack.c.l.b16 %v642
      %v683 = vunpack.c.h.b16 %v642
      %v684 = vunpack.c.l.b16 %v643
      %v685 = vunpack.c.h.b16 %v643
      %v686 = vunpack.c.l.b16 %v644
      %v687 = vunpack.c.h.b16 %v644
      %v688 = vunpack.c.l.b16 %v645
      %v689 = vunpack.c.h.b16 %v645
      %v690 = vunpack.c.l.b16 %v646
      %v691 = vunpack.c.h.b16 %v646
      %v692 = vunpack.c.l.b16 %v647
      %v693 = vunpack.c.h.b16 %v647
      %v694 = vunpack.c.l.b16 %v648
      %v695 = vunpack.c.h.b16 %v648
      %v696 = vunpack.c.l.b16 %v649
      %v697 = vunpack.c.h.b16 %v649
      %v698 = vpack.c.b16 %v666, %v666
      %v699 = vpack.c.b16 %v667, %v667
      %v700 = vpack.c.b16 %v668, %v668
      %v701 = vpack.c.b16 %v669, %v669
      %v702 = vpack.c.b16 %v670, %v670
      %v703 = vpack.c.b16 %v671, %v671
      %v704 = vpack.c.b16 %v672, %v672
      %v705 = vpack.c.b16 %v673, %v673
      %v706 = vpack.c.b16 %v674, %v674
      %v707 = vpack.c.b16 %v675, %v675
      %v708 = vpack.c.b16 %v676, %v676
      %v709 = vpack.c.b16 %v677, %v677
      %v710 = vpack.c.b16 %v678, %v678
      %v711 = vpack.c.b16 %v679, %v679
      %v712 = vpack.c.b16 %v680, %v680
      %v713 = vpack.c.b16 %v681, %v681
      %v714 = vpack.c.b16 %v682, %v682
      %v715 = vpack.c.b16 %v683, %v683
      %v716 = vpack.c.b16 %v684, %v684
      %v717 = vpack.c.b16 %v685, %v685
      %v718 = vpack.c.b16 %v686, %v686
      %v719 = vpack.c.b16 %v687, %v687
      %v720 = vpack.c.b16 %v688, %v688
      %v721 = vpack.c.b16 %v689, %v689
      %v722 = vpack.c.b16 %v690, %v690
      %v723 = vpack.c.b16 %v691, %v691
      %v724 = vpack.c.b16 %v692, %v692
      %v725 = vpack.c.b16 %v693, %v693
      %v726 = vpack.c.b16 %v694, %v694
      %v727 = vpack.c.b16 %v695, %v695
      %v728 = vpack.c.b16 %v696, %v696
      %v729 = vpack.c.b16 %v697, %v697
      %vm762 = vcmask 257024
      %763 = vst.msk [vmem:[%s179] sm:$0xf] %vm762, %v698
      %764 = vst.msk [vmem:[%s179 + $0x4] sm:$0xf] %vm762, %v699
      %765 = vst.msk [vmem:[%s179 + $0x8] sm:$0xf] %vm762, %v700
      %766 = vst.msk [vmem:[%s179 + $0xc] sm:$0xf] %vm762, %v701
      %767 = vst.msk [vmem:[%s179 + $0x10] sm:$0xf] %vm762, %v702
      %768 = vst.msk [vmem:[%s179 + $0x14] sm:$0xf] %vm762, %v703
      %769 = vst.msk [vmem:[%s179 + $0x18] sm:$0xf] %vm762, %v704
      %770 = vst.msk [vmem:[%s179 + $0x1c] sm:$0xf] %vm762, %v705
      %771 = vst.msk [vmem:[%s179 + $0x20] sm:$0xf] %vm762, %v706
      %772 = vst.msk [vmem:[%s179 + $0x24] sm:$0xf] %vm762, %v707
      %773 = vst.msk [vmem:[%s179 + $0x28] sm:$0xf] %vm762, %v708
      %774 = vst.msk [vmem:[%s179 + $0x2c] sm:$0xf] %vm762, %v709
      %775 = vst.msk [vmem:[%s179 + $0x30] sm:$0xf] %vm762, %v710
      %776 = vst.msk [vmem:[%s179 + $0x34] sm:$0xf] %vm762, %v711
      %777 = vst.msk [vmem:[%s179 + $0x38] sm:$0xf] %vm762, %v712
      %778 = vst.msk [vmem:[%s179 + $0x3c] sm:$0xf] %vm762, %v713
      %779 = vst.msk [vmem:[%s179 + $0x40] sm:$0xf] %vm762, %v714
      %780 = vst.msk [vmem:[%s179 + $0x44] sm:$0xf] %vm762, %v715
      %781 = vst.msk [vmem:[%s179 + $0x48] sm:$0xf] %vm762, %v716
      %782 = vst.msk [vmem:[%s179 + $0x4c] sm:$0xf] %vm762, %v717
      %783 = vst.msk [vmem:[%s179 + $0x50] sm:$0xf] %vm762, %v718
      %784 = vst.msk [vmem:[%s179 + $0x54] sm:$0xf] %vm762, %v719
      %785 = vst.msk [vmem:[%s179 + $0x58] sm:$0xf] %vm762, %v720
      %786 = vst.msk [vmem:[%s179 + $0x5c] sm:$0xf] %vm762, %v721
      %787 = vst.msk [vmem:[%s179 + $0x60] sm:$0xf] %vm762, %v722
      %788 = vst.msk [vmem:[%s179 + $0x64] sm:$0xf] %vm762, %v723
      %789 = vst.msk [vmem:[%s179 + $0x68] sm:$0xf] %vm762, %v724
      %790 = vst.msk [vmem:[%s179 + $0x6c] sm:$0xf] %vm762, %v725
      %791 = vst.msk [vmem:[%s179 + $0x70] sm:$0xf] %vm762, %v726
      %792 = vst.msk [vmem:[%s179 + $0x74] sm:$0xf] %vm762, %v727
      %793 = vst.msk [vmem:[%s179 + $0x78] sm:$0xf] %vm762, %v728
      %794 = vst.msk [vmem:[%s179 + $0x7c] sm:$0xf] %vm762, %v729
      %s795 = smul.u32 32, %s15
      %p796 = scmp.lt.s32.totalorder %s795, 63
      %s797 = scalar_select %p796, %s795, 63
      %s798 = smul.addr %s797, 4
      %s799 = scalar_lea.vmem %s2, %s798
      %p800 = scmp.lt.s32.totalorder %s15, 1
      %s801 = scalar_select %p800, %s15, 1
      %s802 = smul.addr %s801, 2
      %s803 = scalar_lea.vmem %s3, %s802
      // Predicated region
      $region29: #{bottleneck_forward.4} parent=27 // pred_check
        %p804 = pneg %p80
      $region30: #{bottleneck_forward.4} parent=27 // pred_check_branch
        %806 = sbr.rel (%p804) target = $region32
      $region31: #{bottleneck_forward.4} parent=27 // pred_region
        %s807 = smul.u32 32, %s15
      $region32: #{bottleneck_forward.4} parent=27 // pred_fallthru
        _
      // Predicated region
      $region33: #{bottleneck_forward.4} parent=27 // pred_check
        %p808 = pneg %p106
      $region34: #{bottleneck_forward.4} parent=27 // pred_check_branch
        %810 = sbr.rel (%p808) target = $region36
      $region35: #{bottleneck_forward.4} parent=27 // pred_region
        _
      $region36: #{bottleneck_forward.4} parent=27 // pred_fallthru
        _
    $region28: #{bottleneck_forward.4} parent=5 // pred_fallthru
      _
    %p811 = scmp.le.s32.totalorder 2, %s10
    // Predicated region
    $region37: #{bottleneck_forward.4} parent=5 // pred_check
      %p812 = pneg %p811
    $region38: #{bottleneck_forward.4} parent=5 // pred_check_branch
      %814 = sbr.rel (%p812) target = $region40
    $region39: #{bottleneck_forward.4} parent=5 // pred_region
      %s815 = ssub.s32 %s10, 2
      // Predicated region
      $region41: #{bottleneck_forward.4} parent=39 // pred_check
        %p816 = pneg %p86
      $region42: #{bottleneck_forward.4} parent=39 // pred_check_branch
        %818 = sbr.rel (%p816) target = $region44
      $region43: #{bottleneck_forward.4} parent=39 // pred_region
        %s819 = smul.u32 32, %s16
        %p820 = scmp.lt.s32.totalorder %s819, 63
        %s821 = scalar_select %p820, %s819, 63
        %s822 = smul.addr %s821, 4
        %s823 = scalar_lea.vmem %s2, %s822
      $region44: #{bottleneck_forward.4} parent=39 // pred_fallthru
        _
      // Predicated region
      $region45: #{bottleneck_forward.4} parent=39 // pred_check
        %p824 = pneg %p112
      $region46: #{bottleneck_forward.4} parent=39 // pred_check_branch
        %826 = sbr.rel (%p824) target = $region48
      $region47: #{bottleneck_forward.4} parent=39 // pred_region
        %p827 = scmp.lt.s32.totalorder %s16, 1
        %s828 = scalar_select %p827, %s16, 1
        %s829 = smul.addr %s828, 2
        %s830 = scalar_lea.vmem %s3, %s829
      $region48: #{bottleneck_forward.4} parent=39 // pred_fallthru
        _
    $region40: #{bottleneck_forward.4} parent=5 // pred_fallthru
      _
  $region6: #{bottleneck_forward.4} parent=0 // loop_footer
    %s14 = sadd.s32 1, %s10
  $region7: #{bottleneck_forward.4} parent=0 // loop_footer_branch
    %9 = sbr.rel target = $region3
  $region8: #{bottleneck_forward.4} parent=0 // loop_exit
    _

// kernel: bottleneck_forward.5
$region0: #{bottleneck_forward.5}
  #allocation0 [shape = 'u32[]', space=smem, size = 0x4, offset = 0x4, fixed_abs, tag = 'smem constant byte address 0x4 - core index']
  #allocation1 [shape = 'u32[144,128]{1,0:T(1,128)}', space=vmem, size = 0x12000, scoped, tag = 'internal scratch']
  #allocation2 [shape = 'bf16[18,18,32]{2,1,0:T(8,128)(2,1)}', space=vmem, size = 0x1b000, scoped, tag = 'scratch operand']
  %s0 = inlined_call_operand.vmem [shape: bf16[2,16,16,32], index: 0, kind: input, shape index: {}]
  %s1 = inlined_call_operand.vmem [shape: f32[1,32], index: 1, kind: input, shape index: {}]
  %s2 = inlined_call_operand.vmem [shape: f32[1,32], index: 2, kind: input, shape index: {}]
  %s3 = inlined_call_operand.vmem [shape: bf16[288,32], index: 3, kind: input, shape index: {}]
  %s4 = inlined_call_operand.vmem [shape: bf16[512,32], index: 4, kind: output, shape index: {0}]
  %s5 = inlined_call_operand.vmem [shape: f32[2,2,32], index: 5, kind: output, shape index: {1}]
  %6 = xla_tuple %s4, %s5
  %s7 = sld [smem:[#allocation0]]
  $region57: #{bottleneck_forward.5} parent=0
    _
  %s9 = ssub.s32 1, %s7
  %s10 = scalar_select 0, %s9, %s7
  loop: start=0, step=1, limit=4
  $region2: #{bottleneck_forward.5} parent=0 // loop_pre_header
    _
  $region3: #{bottleneck_forward.5} parent=0 // loop_header
    %s12 = sphi 0, %s16
    %p13 = scmp.ge.s32.totalorder %s12, 4
    %s22 = sphi 0, %s24
    %s25 = sphi 0, %s22
    %s26 = sphi 0, %s25
    %s42 = sphi 0, %s26
    %s46 = sphi 0, %s46
    %s48 = sphi 0, %s46
    %s49 = sphi 0, %s48
    %s63 = sphi 0, %s49
    %s67 = sphi 0, %s67
    %s69 = sphi 0, %s67
    %s70 = sphi 0, %s69
    %s84 = sphi 0, %s70
    %s88 = sphi 0, %s88
    %s90 = sphi 0, %s88
    %s91 = sphi 0, %s90
    %s105 = sphi 0, %s91
    %s111 = sphi 0, %s113
    %s114 = sphi 0, %s111
    %s115 = sphi 0, %s114
    %s131 = sphi 0, %s115
    %s137 = sphi 0, %s139
    %s140 = sphi 0, %s137
    %s141 = sphi 0, %s140
    %s157 = sphi 0, %s141
  $region4: #{bottleneck_forward.5} parent=0 // loop_header_branch
    %15 = sbr.rel (%p13) target = $region8
  $region5: #{bottleneck_forward.5} parent=0 // loop_body
    %s17 = ssub.s32 %s12, 1
    %s18 = ssub.s32 %s12, 2
    %s19 = sadd.s32 %s12, 1
    %s20 = ssub.s32 %s12, %s19
    %p21 = scmp.eq.s32.totalorder %s20, 0
    %s23 = sadd.s32 %s22, 1
    %s24 = scalar_select %p21, %s22, %s23
    %p27 = pneg %p21
    %p28 = scmp.eq.s32.totalorder %s12, 1
    %p29 = por %p27, %p28
    %p30 = scmp.ne.s32.totalorder %s22, %s25
    %p31 = scmp.eq.s32.totalorder %s12, 0
    %p32 = por %p30, %p31
    %p33 = scmp.ne.s32.totalorder %s22, %s25
    %p34 = scmp.eq.s32.totalorder %s17, 1
    %p35 = por %p33, %p34
    %p36 = scmp.ne.s32.totalorder %s25, %s26
    %p37 = scmp.eq.s32.totalorder %s17, 0
    %p38 = por %p36, %p37
    %p39 = scmp.ne.s32.totalorder %s25, %s26
    %p40 = scmp.eq.s32.totalorder %s18, 1
    %p41 = por %p39, %p40
    %p43 = scmp.ne.s32.totalorder %s26, %s42
    %p44 = scmp.eq.s32.totalorder %s18, 0
    %p45 = por %p43, %p44
    %s47 = sadd.s32 %s46, 1
    %p50 = scmp.eq.s32.totalorder %s12, 1
    %p51 = scmp.ne.s32.totalorder %s46, %s48
    %p52 = scmp.eq.s32.totalorder %s12, 0
    %p53 = por %p51, %p52
    %p54 = scmp.ne.s32.totalorder %s46, %s48
    %p55 = scmp.eq.s32.totalorder %s17, 1
    %p56 = por %p54, %p55
    %p57 = scmp.ne.s32.totalorder %s48, %s49
    %p58 = scmp.eq.s32.totalorder %s17, 0
    %p59 = por %p57, %p58
    %p60 = scmp.ne.s32.totalorder %s48, %s49
    %p61 = scmp.eq.s32.totalorder %s18, 1
    %p62 = por %p60, %p61
    %p64 = scmp.ne.s32.totalorder %s49, %s63
    %p65 = scmp.eq.s32.totalorder %s18, 0
    %p66 = por %p64, %p65
    %s68 = sadd.s32 %s67, 1
    %p71 = scmp.eq.s32.totalorder %s12, 1
    %p72 = scmp.ne.s32.totalorder %s67, %s69
    %p73 = scmp.eq.s32.totalorder %s12, 0
    %p74 = por %p72, %p73
    %p75 = scmp.ne.s32.totalorder %s67, %s69
    %p76 = scmp.eq.s32.totalorder %s17, 1
    %p77 = por %p75, %p76
    %p78 = scmp.ne.s32.totalorder %s69, %s70
    %p79 = scmp.eq.s32.totalorder %s17, 0
    %p80 = por %p78, %p79
    %p81 = scmp.ne.s32.totalorder %s69, %s70
    %p82 = scmp.eq.s32.totalorder %s18, 1
    %p83 = por %p81, %p82
    %p85 = scmp.ne.s32.totalorder %s70, %s84
    %p86 = scmp.eq.s32.totalorder %s18, 0
    %p87 = por %p85, %p86
    %s89 = sadd.s32 %s88, 1
    %p92 = scmp.eq.s32.totalorder %s12, 1
    %p93 = scmp.ne.s32.totalorder %s88, %s90
    %p94 = scmp.eq.s32.totalorder %s12, 0
    %p95 = por %p93, %p94
    %p96 = scmp.ne.s32.totalorder %s88, %s90
    %p97 = scmp.eq.s32.totalorder %s17, 1
    %p98 = por %p96, %p97
    %p99 = scmp.ne.s32.totalorder %s90, %s91
    %p100 = scmp.eq.s32.totalorder %s17, 0
    %p101 = por %p99, %p100
    %p102 = scmp.ne.s32.totalorder %s90, %s91
    %p103 = scmp.eq.s32.totalorder %s18, 1
    %p104 = por %p102, %p103
    %p106 = scmp.ne.s32.totalorder %s91, %s105
    %p107 = scmp.eq.s32.totalorder %s18, 0
    %p108 = por %p106, %p107
    %s109 = ssub.s32 %s12, %s19
    %p110 = scmp.eq.s32.totalorder %s109, 0
    %s112 = sadd.s32 %s111, 1
    %s113 = scalar_select %p110, %s111, %s112
    %p116 = pneg %p110
    %p117 = scmp.eq.s32.totalorder %s12, 1
    %p118 = por %p116, %p117
    %p119 = scmp.ne.s32.totalorder %s111, %s114
    %p120 = scmp.eq.s32.totalorder %s12, 0
    %p121 = por %p119, %p120
    %p122 = scmp.ne.s32.totalorder %s111, %s114
    %p123 = scmp.eq.s32.totalorder %s17, 1
    %p124 = por %p122, %p123
    %p125 = scmp.ne.s32.totalorder %s114, %s115
    %p126 = scmp.eq.s32.totalorder %s17, 0
    %p127 = por %p125, %p126
    %p128 = scmp.ne.s32.totalorder %s114, %s115
    %p129 = scmp.eq.s32.totalorder %s18, 1
    %p130 = por %p128, %p129
    %p132 = scmp.ne.s32.totalorder %s115, %s131
    %p133 = scmp.eq.s32.totalorder %s18, 0
    %p134 = por %p132, %p133
    %s135 = ssub.s32 %s12, %s19
    %p136 = scmp.eq.s32.totalorder %s135, 0
    %s138 = sadd.s32 %s137, 1
    %s139 = scalar_select %p136, %s137, %s138
    %p142 = pneg %p136
    %p143 = scmp.eq.s32.totalorder %s12, 1
    %p144 = por %p142, %p143
    %p145 = scmp.ne.s32.totalorder %s137, %s140
    %p146 = scmp.eq.s32.totalorder %s12, 0
    %p147 = por %p145, %p146
    %p148 = scmp.ne.s32.totalorder %s137, %s140
    %p149 = scmp.eq.s32.totalorder %s17, 1
    %p150 = por %p148, %p149
    %p151 = scmp.ne.s32.totalorder %s140, %s141
    %p152 = scmp.eq.s32.totalorder %s17, 0
    %p153 = por %p151, %p152
    %p154 = scmp.ne.s32.totalorder %s140, %s141
    %p155 = scmp.eq.s32.totalorder %s18, 1
    %p156 = por %p154, %p155
    %p158 = scmp.ne.s32.totalorder %s141, %s157
    %p159 = scmp.eq.s32.totalorder %s18, 0
    %p160 = por %p158, %p159
    %p161 = scmp.le.s32.totalorder 1, %s12
    %p162 = scmp.lt.s32.totalorder %s12, 3
    %p163 = pnand %p161, %p162
    %p164 = pneg %p163
    // Predicated region
    $region9: #{bottleneck_forward.5} parent=5 // pred_check
      _
    $region10: #{bottleneck_forward.5} parent=5 // pred_check_branch
      %166 = sbr.rel (%p163) target = $region12
    $region11: #{bottleneck_forward.5} parent=5 // pred_region
      %s167 = ssub.s32 %s12, 1
      // Predicated region
      $region13: #{bottleneck_forward.5} parent=11 // pred_check
        %p168 = pneg %p59
      $region14: #{bottleneck_forward.5} parent=11 // pred_check_branch
        %170 = sbr.rel (%p168) target = $region16
      $region15: #{bottleneck_forward.5} parent=11 // pred_region
        _
      $region16: #{bottleneck_forward.5} parent=11 // pred_fallthru
        _
      // Predicated region
      $region17: #{bottleneck_forward.5} parent=11 // pred_check
        %p171 = pneg %p80
      $region18: #{bottleneck_forward.5} parent=11 // pred_check_branch
        %173 = sbr.rel (%p171) target = $region20
      $region19: #{bottleneck_forward.5} parent=11 // pred_region
        _
      $region20: #{bottleneck_forward.5} parent=11 // pred_fallthru
        _
      // Predicated region
      $region21: #{bottleneck_forward.5} parent=11 // pred_check
        %p174 = pneg %p101
      $region22: #{bottleneck_forward.5} parent=11 // pred_check_branch
        %176 = sbr.rel (%p174) target = $region24
      $region23: #{bottleneck_forward.5} parent=11 // pred_region
        _
      $region24: #{bottleneck_forward.5} parent=11 // pred_fallthru
        _
    $region12: #{bottleneck_forward.5} parent=5 // pred_fallthru
      _
    %p177 = scmp.lt.s32.totalorder %s12, 2
    // Predicated region
    $region25: #{bottleneck_forward.5} parent=5 // pred_check
      %p178 = pneg %p177
    $region26: #{bottleneck_forward.5} parent=5 // pred_check_branch
      %180 = sbr.rel (%p178) target = $region28
    $region27: #{bottleneck_forward.5} parent=5 // pred_region
      // Predicated region
      $region29: #{bottleneck_forward.5} parent=27 // pred_check
        %p181 = pneg %p32
      $region30: #{bottleneck_forward.5} parent=27 // pred_check_branch
        %183 = sbr.rel (%p181) target = $region32
      $region31: #{bottleneck_forward.5} parent=27 // pred_region
        %p184 = scmp.lt.s32.totalorder %s12, 1
        %s185 = scalar_select %p184, %s12, 1
        %s186 = smul.addr %s185, 32
        %s187 = smul.addr %s186, 4
        %s188 = scalar_lea.vmem %s0, %s187
      $region32: #{bottleneck_forward.5} parent=27 // pred_fallthru
        _
    $region28: #{bottleneck_forward.5} parent=5 // pred_fallthru
      _
    %p189 = scmp.le.s32.totalorder 1, %s12
    %p190 = scmp.lt.s32.totalorder %s12, 3
    %p191 = pnand %p189, %p190
    %p192 = pneg %p191
    // Predicated region
    $region33: #{bottleneck_forward.5} parent=5 // pred_check
      _
    $region34: #{bottleneck_forward.5} parent=5 // pred_check_branch
      %194 = sbr.rel (%p191) target = $region36
    $region35: #{bottleneck_forward.5} parent=5 // pred_region
      %s195 = ssub.s32 %s12, 1
      %p196 = scmp.lt.s32.totalorder %s17, 1
      %s197 = scalar_select %p196, %s17, 1
      %s198 = smul.addr %s197, 32
      %s199 = smul.addr %s198, 4
      %s200 = scalar_lea.vmem %s0, %s199
      %p201 = pneg %p38
      %p202 = pneg %p35
      %p203 = pneg %p59
      %p204 = pneg %p56
      %p205 = pneg %p80
      %p206 = pneg %p77
      %p207 = pneg %p101
      %p208 = pneg %p98
      %p209 = pneg %p127
      %p210 = pneg %p124
      %s211 = smul.u32 32, %s17
      %p212 = scmp.lt.s32.totalorder %s211, 63
      %s213 = scalar_select %p212, %s211, 63
      %s214 = smul.addr %s213, 4
      %s215 = scalar_lea.vmem %s4, %s214
      %p216 = pneg %p153
      %p217 = pneg %p150
      %p218 = scmp.lt.s32.totalorder %s17, 1
      %s219 = scalar_select %p218, %s17, 1
      %s220 = smul.addr %s219, 2
      %s221 = scalar_lea.vmem %s5, %s220
      %p222 = scmp.lt.s32.totalorder %s17, 1
      %s223 = scalar_select %p222, %s17, 1
      %s224 = smul.addr %s223, 32
      %s225 = smul.addr %s224, 4
      %s226 = scalar_lea.vmem %s0, %s225
      %s227 = smul.u32 32, %s17
      %p228 = scmp.lt.s32.totalorder %s227, 63
      %s229 = scalar_select %p228, %s227, 63
      %s230 = smul.addr %s229, 4
      %s231 = scalar_lea.vmem %s4, %s230
      %s232 = smul.u32 32, %s17
      %p233 = scmp.lt.s32.totalorder %s17, 1
      %s234 = scalar_select %p233, %s17, 1
      %s235 = smul.addr %s234, 2
      %s236 = scalar_lea.vmem %s5, %s235
      %v238 = vld [vmem:[%s226] sm:$0xf]
      %v239 = vld [vmem:[%s226 + $0x4] sm:$0xf]
      %v240 = vld [vmem:[%s226 + $0x8] sm:$0xf]
      %v241 = vld [vmem:[%s226 + $0xc] sm:$0xf]
      %v242 = vld [vmem:[%s226 + $0x10] sm:$0xf]
      %v243 = vld [vmem:[%s226 + $0x14] sm:$0xf]
      %v244 = vld [vmem:[%s226 + $0x18] sm:$0xf]
      %v245 = vld [vmem:[%s226 + $0x1c] sm:$0xf]
      %v246 = vld [vmem:[%s226 + $0x20] sm:$0xf]
      %v247 = vld [vmem:[%s226 + $0x24] sm:$0xf]
      %v248 = vld [vmem:[%s226 + $0x28] sm:$0xf]
      %v249 = vld [vmem:[%s226 + $0x2c] sm:$0xf]
      %v250 = vld [vmem:[%s226 + $0x30] sm:$0xf]
      %v251 = vld [vmem:[%s226 + $0x34] sm:$0xf]
      %v252 = vld [vmem:[%s226 + $0x38] sm:$0xf]
      %v253 = vld [vmem:[%s226 + $0x3c] sm:$0xf]
      %v254 = vld [vmem:[%s226 + $0x40] sm:$0xf]
      %v255 = vld [vmem:[%s226 + $0x44] sm:$0xf]
      %v256 = vld [vmem:[%s226 + $0x48] sm:$0xf]
      %v257 = vld [vmem:[%s226 + $0x4c] sm:$0xf]
      %v258 = vld [vmem:[%s226 + $0x50] sm:$0xf]
      %v259 = vld [vmem:[%s226 + $0x54] sm:$0xf]
      %v260 = vld [vmem:[%s226 + $0x58] sm:$0xf]
      %v261 = vld [vmem:[%s226 + $0x5c] sm:$0xf]
      %v262 = vld [vmem:[%s226 + $0x60] sm:$0xf]
      %v263 = vld [vmem:[%s226 + $0x64] sm:$0xf]
      %v264 = vld [vmem:[%s226 + $0x68] sm:$0xf]
      %v265 = vld [vmem:[%s226 + $0x6c] sm:$0xf]
      %v266 = vld [vmem:[%s226 + $0x70] sm:$0xf]
      %v267 = vld [vmem:[%s226 + $0x74] sm:$0xf]
      %v268 = vld [vmem:[%s226 + $0x78] sm:$0xf]
      %v269 = vld [vmem:[%s226 + $0x7c] sm:$0xf]
      %v270 = vunpack.c.l.bf16 %v238
      %v271 = vunpack.c.l.bf16 %v239
      %v272 = vunpack.c.l.bf16 %v240
      %v273 = vunpack.c.l.bf16 %v241
      %v274 = vunpack.c.l.bf16 %v242
      %v275 = vunpack.c.l.bf16 %v243
      %v276 = vunpack.c.l.bf16 %v244
      %v277 = vunpack.c.l.bf16 %v245
      %v278 = vunpack.c.l.bf16 %v246
      %v279 = vunpack.c.l.bf16 %v247
      %v280 = vunpack.c.l.bf16 %v248
      %v281 = vunpack.c.l.bf16 %v249
      %v282 = vunpack.c.l.bf16 %v250
      %v283 = vunpack.c.l.bf16 %v251
      %v284 = vunpack.c.l.bf16 %v252
      %v285 = vunpack.c.l.bf16 %v253
      %v286 = vunpack.c.l.bf16 %v254
      %v287 = vunpack.c.l.bf16 %v255
      %v288 = vunpack.c.l.bf16 %v256
      %v289 = vunpack.c.l.bf16 %v257
      %v290 = vunpack.c.l.bf16 %v258
      %v291 = vunpack.c.l.bf16 %v259
      %v292 = vunpack.c.l.bf16 %v260
      %v293 = vunpack.c.l.bf16 %v261
      %v294 = vunpack.c.l.bf16 %v262
      %v295 = vunpack.c.l.bf16 %v263
      %v296 = vunpack.c.l.bf16 %v264
      %v297 = vunpack.c.l.bf16 %v265
      %v298 = vunpack.c.l.bf16 %v266
      %v299 = vunpack.c.l.bf16 %v267
      %v300 = vunpack.c.l.bf16 %v268
      %v301 = vunpack.c.l.bf16 %v269
      %v302 = vld [vmem:[%s1] sm:$0x1]
      %v304 = vlaneseq
      %v305 = vshrl.u32 %v304, 7
      %v306 = vsub.s32 0, %v305
      %v307 = vrot.slane %v302, %v306
      %v309 = vmul.f32 %v270, %v307
      %v310 = vmul.f32 %v271, %v307
      %v311 = vmul.f32 %v272, %v307
      %v312 = vmul.f32 %v273, %v307
      %v313 = vmul.f32 %v274, %v307
      %v314 = vmul.f32 %v275, %v307
      %v315 = vmul.f32 %v276, %v307
      %v316 = vmul.f32 %v277, %v307
      %v317 = vmul.f32 %v278, %v307
      %v318 = vmul.f32 %v279, %v307
      %v319 = vmul.f32 %v280, %v307
      %v320 = vmul.f32 %v281, %v307
      %v321 = vmul.f32 %v282, %v307
      %v322 = vmul.f32 %v283, %v307
      %v323 = vmul.f32 %v284, %v307
      %v324 = vmul.f32 %v285, %v307
      %v325 = vmul.f32 %v286, %v307
      %v326 = vmul.f32 %v287, %v307
      %v327 = vmul.f32 %v288, %v307
      %v328 = vmul.f32 %v289, %v307
      %v329 = vmul.f32 %v290, %v307
      %v330 = vmul.f32 %v291, %v307
      %v331 = vmul.f32 %v292, %v307
      %v332 = vmul.f32 %v293, %v307
      %v333 = vmul.f32 %v294, %v307
      %v334 = vmul.f32 %v295, %v307
      %v335 = vmul.f32 %v296, %v307
      %v336 = vmul.f32 %v297, %v307
      %v337 = vmul.f32 %v298, %v307
      %v338 = vmul.f32 %v299, %v307
      %v339 = vmul.f32 %v300, %v307
      %v340 = vmul.f32 %v301, %v307
      %v341 = vld [vmem:[%s2] sm:$0x1]
      %v343 = vlaneseq
      %v344 = vshrl.u32 %v343, 7
      %v345 = vsub.s32 0, %v344
      %v346 = vrot.slane %v341, %v345
      %v348 = vadd.f32 %v309, %v346
      %v349 = vadd.f32 %v310, %v346
      %v350 = vadd.f32 %v311, %v346
      %v351 = vadd.f32 %v312, %v346
      %v352 = vadd.f32 %v313, %v346
      %v353 = vadd.f32 %v314, %v346
      %v354 = vadd.f32 %v315, %v346
      %v355 = vadd.f32 %v316, %v346
      %v356 = vadd.f32 %v317, %v346
      %v357 = vadd.f32 %v318, %v346
      %v358 = vadd.f32 %v319, %v346
      %v359 = vadd.f32 %v320, %v346
      %v360 = vadd.f32 %v321, %v346
      %v361 = vadd.f32 %v322, %v346
      %v362 = vadd.f32 %v323, %v346
      %v363 = vadd.f32 %v324, %v346
      %v364 = vadd.f32 %v325, %v346
      %v365 = vadd.f32 %v326, %v346
      %v366 = vadd.f32 %v327, %v346
      %v367 = vadd.f32 %v328, %v346
      %v368 = vadd.f32 %v329, %v346
      %v369 = vadd.f32 %v330, %v346
      %v370 = vadd.f32 %v331, %v346
      %v371 = vadd.f32 %v332, %v346
      %v372 = vadd.f32 %v333, %v346
      %v373 = vadd.f32 %v334, %v346
      %v374 = vadd.f32 %v335, %v346
      %v375 = vadd.f32 %v336, %v346
      %v376 = vadd.f32 %v337, %v346
      %v377 = vadd.f32 %v338, %v346
      %v378 = vadd.f32 %v339, %v346
      %v379 = vadd.f32 %v340, %v346
      %v380 = vmax.f32 %v348, 0.0
      %v381 = vmax.f32 %v349, 0.0
      %v382 = vmax.f32 %v350, 0.0
      %v383 = vmax.f32 %v351, 0.0
      %v384 = vmax.f32 %v352, 0.0
      %v385 = vmax.f32 %v353, 0.0
      %v386 = vmax.f32 %v354, 0.0
      %v387 = vmax.f32 %v355, 0.0
      %v388 = vmax.f32 %v356, 0.0
      %v389 = vmax.f32 %v357, 0.0
      %v390 = vmax.f32 %v358, 0.0
      %v391 = vmax.f32 %v359, 0.0
      %v392 = vmax.f32 %v360, 0.0
      %v393 = vmax.f32 %v361, 0.0
      %v394 = vmax.f32 %v362, 0.0
      %v395 = vmax.f32 %v363, 0.0
      %v396 = vmax.f32 %v364, 0.0
      %v397 = vmax.f32 %v365, 0.0
      %v398 = vmax.f32 %v366, 0.0
      %v399 = vmax.f32 %v367, 0.0
      %v400 = vmax.f32 %v368, 0.0
      %v401 = vmax.f32 %v369, 0.0
      %v402 = vmax.f32 %v370, 0.0
      %v403 = vmax.f32 %v371, 0.0
      %v404 = vmax.f32 %v372, 0.0
      %v405 = vmax.f32 %v373, 0.0
      %v406 = vmax.f32 %v374, 0.0
      %v407 = vmax.f32 %v375, 0.0
      %v408 = vmax.f32 %v376, 0.0
      %v409 = vmax.f32 %v377, 0.0
      %v410 = vmax.f32 %v378, 0.0
      %v411 = vmax.f32 %v379, 0.0
      %vm412 = vcmask 257024
      %413 = vst.msk [vmem:[#allocation2] sm:$0xf] %vm412, 0
      %414 = vst.msk [vmem:[#allocation2 + $0x4] sm:$0xf] %vm412, 0
      %vm415 = vcmask 253952
      %416 = vst.msk [vmem:[#allocation2 + $0x8] sm:$0x1] %vm415, 0
      %417 = vst.msk [vmem:[#allocation2 + $0xc] sm:$0xf] %vm412, 0
      %418 = vst.msk [vmem:[#allocation2 + $0x10] sm:$0xf] %vm412, 0
      %419 = vst.msk [vmem:[#allocation2 + $0x14] sm:$0x1] %vm415, 0
      %420 = vst.msk [vmem:[#allocation2 + $0x18] sm:$0xf] %vm412, 0
      %421 = vst.msk [vmem:[#allocation2 + $0x1c] sm:$0xf] %vm412, 0
      %422 = vst.msk [vmem:[#allocation2 + $0x20] sm:$0x1] %vm415, 0
      %423 = vst.msk [vmem:[#allocation2 + $0x24] sm:$0xf] %vm412, 0
      %424 = vst.msk [vmem:[#allocation2 + $0x28] sm:$0xf] %vm412, 0
      %425 = vst.msk [vmem:[#allocation2 + $0x2c] sm:$0x1] %vm415, 0
      %426 = vst.msk [vmem:[#allocation2 + $0x30] sm:$0xf] %vm412, 0
      %427 = vst.msk [vmem:[#allocation2 + $0x34] sm:$0xf] %vm412, 0
      %428 = vst.msk [vmem:[#allocation2 + $0x38] sm:$0x1] %vm415, 0
      %429 = vst.msk [vmem:[#allocation2 + $0x3c] sm:$0xf] %vm412, 0
      %430 = vst.msk [vmem:[#allocation2 + $0x40] sm:$0xf] %vm412, 0
      %431 = vst.msk [vmem:[#allocation2 + $0x44] sm:$0x1] %vm415, 0
      %432 = vst.msk [vmem:[#allocation2 + $0x48] sm:$0xf] %vm412, 0
      %433 = vst.msk [vmem:[#allocation2 + $0x4c] sm:$0xf] %vm412, 0
      %434 = vst.msk [vmem:[#allocation2 + $0x50] sm:$0x1] %vm415, 0
      %435 = vst.msk [vmem:[#allocation2 + $0x54] sm:$0xf] %vm412, 0
      %436 = vst.msk [vmem:[#allocation2 + $0x58] sm:$0xf] %vm412, 0
      %437 = vst.msk [vmem:[#allocation2 + $0x5c] sm:$0x1] %vm415, 0
      %438 = vst.msk [vmem:[#allocation2 + $0x60] sm:$0xf] %vm412, 0
      %439 = vst.msk [vmem:[#allocation2 + $0x64] sm:$0xf] %vm412, 0
      %440 = vst.msk [vmem:[#allocation2 + $0x68] sm:$0x1] %vm415, 0
      %441 = vst.msk [vmem:[#allocation2 + $0x6c] sm:$0xf] %vm412, 0
      %442 = vst.msk [vmem:[#allocation2 + $0x70] sm:$0xf] %vm412, 0
      %443 = vst.msk [vmem:[#allocation2 + $0x74] sm:$0x1] %vm415, 0
      %444 = vst.msk [vmem:[#allocation2 + $0x78] sm:$0xf] %vm412, 0
      %445 = vst.msk [vmem:[#allocation2 + $0x7c] sm:$0xf] %vm412, 0
      %446 = vst.msk [vmem:[#allocation2 + $0x80] sm:$0x1] %vm415, 0
      %447 = vst.msk [vmem:[#allocation2 + $0x84] sm:$0xf] %vm412, 0
      %448 = vst.msk [vmem:[#allocation2 + $0x88] sm:$0xf] %vm412, 0
      %449 = vst.msk [vmem:[#allocation2 + $0x8c] sm:$0x1] %vm415, 0
      %450 = vst.msk [vmem:[#allocation2 + $0x90] sm:$0xf] %vm412, 0
      %451 = vst.msk [vmem:[#allocation2 + $0x94] sm:$0xf] %vm412, 0
      %452 = vst.msk [vmem:[#allocation2 + $0x98] sm:$0x1] %vm415, 0
      %453 = vst.msk [vmem:[#allocation2 + $0x9c] sm:$0xf] %vm412, 0
      %454 = vst.msk [vmem:[#allocation2 + $0xa0] sm:$0xf] %vm412, 0
      %455 = vst.msk [vmem:[#allocation2 + $0xa4] sm:$0x1] %vm415, 0
      %456 = vst.msk [vmem:[#allocation2 + $0xa8] sm:$0xf] %vm412, 0
      %457 = vst.msk [vmem:[#allocation2 + $0xac] sm:$0xf] %vm412, 0
      %458 = vst.msk [vmem:[#allocation2 + $0xb0] sm:$0x1] %vm415, 0
      %459 = vst.msk [vmem:[#allocation2 + $0xb4] sm:$0xf] %vm412, 0
      %460 = vst.msk [vmem:[#allocation2 + $0xb8] sm:$0xf] %vm412, 0
      %461 = vst.msk [vmem:[#allocation2 + $0xbc] sm:$0x1] %vm415, 0
      %462 = vst.msk [vmem:[#allocation2 + $0xc0] sm:$0xf] %vm412, 0
      %463 = vst.msk [vmem:[#allocation2 + $0xc4] sm:$0xf] %vm412, 0
      %464 = vst.msk [vmem:[#allocation2 + $0xc8] sm:$0x1] %vm415, 0
      %465 = vst.msk [vmem:[#allocation2 + $0xcc] sm:$0xf] %vm412, 0
      %466 = vst.msk [vmem:[#allocation2 + $0xd0] sm:$0xf] %vm412, 0
      %467 = vst.msk [vmem:[#allocation2 + $0xd4] sm:$0x1] %vm415, 0
      %v468 = vpack.c.bf16 %v381, %v380
      %v469 = vpack.c.bf16 %v383, %v382
      %v470 = vpack.c.bf16 %v385, %v384
      %v471 = vpack.c.bf16 %v387, %v386
      %v472 = vpack.c.bf16 %v389, %v388
      %v473 = vpack.c.bf16 %v391, %v390
      %v474 = vpack.c.bf16 %v393, %v392
      %v475 = vpack.c.bf16 %v395, %v394
      %v476 = vpack.c.bf16 %v397, %v396
      %v477 = vpack.c.bf16 %v399, %v398
      %v478 = vpack.c.bf16 %v401, %v400
      %v479 = vpack.c.bf16 %v403, %v402
      %v480 = vpack.c.bf16 %v405, %v404
      %v481 = vpack.c.bf16 %v407, %v406
      %v482 = vpack.c.bf16 %v409, %v408
      %v483 = vpack.c.bf16 %v411, %v410
      %v500 = vunpack.c.l.b16 %v468
      %v501 = vunpack.c.h.b16 %v468
      %v502 = vunpack.c.l.b16 %v469
      %v503 = vunpack.c.h.b16 %v469
      %v504 = vunpack.c.l.b16 %v470
      %v505 = vunpack.c.h.b16 %v470
      %v506 = vunpack.c.l.b16 %v471
      %v507 = vunpack.c.h.b16 %v471
      %v508 = vunpack.c.l.b16 %v472
      %v509 = vunpack.c.h.b16 %v472
      %v510 = vunpack.c.l.b16 %v473
      %v511 = vunpack.c.h.b16 %v473
      %v512 = vunpack.c.l.b16 %v474
      %v513 = vunpack.c.h.b16 %v474
      %v514 = vunpack.c.l.b16 %v475
      %v515 = vunpack.c.h.b16 %v475
      %v516 = vunpack.c.l.b16 %v476
      %v517 = vunpack.c.h.b16 %v476
      %v518 = vunpack.c.l.b16 %v477
      %v519 = vunpack.c.h.b16 %v477
      %v520 = vunpack.c.l.b16 %v478
      %v521 = vunpack.c.h.b16 %v478
      %v522 = vunpack.c.l.b16 %v479
      %v523 = vunpack.c.h.b16 %v479
      %v524 = vunpack.c.l.b16 %v480
      %v525 = vunpack.c.h.b16 %v480
      %v526 = vunpack.c.l.b16 %v481
      %v527 = vunpack.c.h.b16 %v481
      %v528 = vunpack.c.l.b16 %v482
      %v529 = vunpack.c.h.b16 %v482
      %v530 = vunpack.c.l.b16 %v483
      %v531 = vunpack.c.h.b16 %v483
      %v532 = vpack.c.b16 %v500, %v500
      %v533 = vpack.c.b16 %v501, %v501
      %v534 = vpack.c.b16 %v502, %v502
      %v535 = vpack.c.b16 %v503, %v503
      %v536 = vpack.c.b16 %v504, %v504
      %v537 = vpack.c.b16 %v505, %v505
      %v538 = vpack.c.b16 %v506, %v506
      %v539 = vpack.c.b16 %v507, %v507
      %v540 = vpack.c.b16 %v508, %v508
      %v541 = vpack.c.b16 %v509, %v509
      %v542 = vpack.c.b16 %v510, %v510
      %v543 = vpack.c.b16 %v511, %v511
      %v544 = vpack.c.b16 %v512, %v512
      %v545 = vpack.c.b16 %v513, %v513
      %v546 = vpack.c.b16 %v514, %v514
      %v547 = vpack.c.b16 %v515, %v515
      %v548 = vpack.c.b16 %v516, %v516
      %v549 = vpack.c.b16 %v517, %v517
      %v550 = vpack.c.b16 %v518, %v518
      %v551 = vpack.c.b16 %v519, %v519
      %v552 = vpack.c.b16 %v520, %v520
      %v553 = vpack.c.b16 %v521, %v521
      %v554 = vpack.c.b16 %v522, %v522
      %v555 = vpack.c.b16 %v523, %v523
      %v556 = vpack.c.b16 %v524, %v524
      %v557 = vpack.c.b16 %v525, %v525
      %v558 = vpack.c.b16 %v526, %v526
      %v559 = vpack.c.b16 %v527, %v527
      %v560 = vpack.c.b16 %v528, %v528
      %v561 = vpack.c.b16 %v529, %v529
      %v562 = vpack.c.b16 %v530, %v530
      %v563 = vpack.c.b16 %v531, %v531
      %vm564 = vsmask.f32 256
      %vm565 = vsmask.f32 4368
      %vm566 = vmor %vm564, %vm565
      %v568 = vshrl.u32 %v532, 16
      %v570 = vrot.slane %v568, 7
      %v571 = vshll.u32 %v532, 16
      %v573 = vor.u32 %v570, %v571
      %v574 = vrot.slane %v570, 4
      %v576 = vshrl.u32 %v533, 16
      %v578 = vrot.slane %v576, 7
      %v579 = vshll.u32 %v533, 16
      %v581 = vor.u32 %v578, %v579
      %v582 = vsel %vm566, %v574, %v581
      %v583 = vrot.slane %v578, 4
      %v585 = vshrl.u32 %v534, 16
      %v587 = vrot.slane %v585, 7
      %v588 = vshll.u32 %v534, 16
      %v590 = vor.u32 %v587, %v588
      %v591 = vrot.slane %v587, 4
      %v593 = vshrl.u32 %v535, 16
      %v595 = vrot.slane %v593, 7
      %v596 = vshll.u32 %v535, 16
      %v598 = vor.u32 %v595, %v596
      %v599 = vsel %vm566, %v591, %v598
      %v600 = vrot.slane %v595, 4
      %v602 = vshrl.u32 %v536, 16
      %v604 = vrot.slane %v602, 7
      %v605 = vshll.u32 %v536, 16
      %v607 = vor.u32 %v604, %v605
      %v608 = vrot.slane %v604, 4
      %v610 = vshrl.u32 %v537, 16
      %v612 = vrot.slane %v610, 7
      %v613 = vshll.u32 %v537, 16
      %v615 = vor.u32 %v612, %v613
      %v616 = vsel %vm566, %v608, %v615
      %v617 = vrot.slane %v612, 4
      %v619 = vshrl.u32 %v538, 16
      %v621 = vrot.slane %v619, 7
      %v622 = vshll.u32 %v538, 16
      %v624 = vor.u32 %v621, %v622
      %v625 = vrot.slane %v621, 4
      %v627 = vshrl.u32 %v539, 16
      %v629 = vrot.slane %v627, 7
      %v630 = vshll.u32 %v539, 16
      %v632 = vor.u32 %v629, %v630
      %v633 = vsel %vm566, %v625, %v632
      %v634 = vrot.slane %v629, 4
      %v636 = vshrl.u32 %v540, 16
      %v638 = vrot.slane %v636, 7
      %v639 = vshll.u32 %v540, 16
      %v641 = vor.u32 %v638, %v639
      %v642 = vrot.slane %v638, 4
      %v644 = vshrl.u32 %v541, 16
      %v646 = vrot.slane %v644, 7
      %v647 = vshll.u32 %v541, 16
      %v649 = vor.u32 %v646, %v647
      %v650 = vsel %vm566, %v642, %v649
      %v651 = vrot.slane %v646, 4
      %v653 = vshrl.u32 %v542, 16
      %v655 = vrot.slane %v653, 7
      %v656 = vshll.u32 %v542, 16
      %v658 = vor.u32 %v655, %v656
      %v659 = vrot.slane %v655, 4
      %v661 = vshrl.u32 %v543, 16
      %v663 = vrot.slane %v661, 7
      %v664 = vshll.u32 %v543, 16
      %v666 = vor.u32 %v663, %v664
      %v667 = vsel %vm566, %v659, %v666
      %v668 = vrot.slane %v663, 4
      %v670 = vshrl.u32 %v544, 16
      %v672 = vrot.slane %v670, 7
      %v673 = vshll.u32 %v544, 16
      %v675 = vor.u32 %v672, %v673
      %v676 = vrot.slane %v672, 4
      %v678 = vshrl.u32 %v545, 16
      %v680 = vrot.slane %v678, 7
      %v681 = vshll.u32 %v545, 16
      %v683 = vor.u32 %v680, %v681
      %v684 = vsel %vm566, %v676, %v683
      %v685 = vrot.slane %v680, 4
      %v687 = vshrl.u32 %v546, 16
      %v689 = vrot.slane %v687, 7
      %v690 = vshll.u32 %v546, 16
      %v692 = vor.u32 %v689, %v690
      %v693 = vrot.slane %v689, 4
      %v695 = vshrl.u32 %v547, 16
      %v697 = vrot.slane %v695, 7
      %v698 = vshll.u32 %v547, 16
      %v700 = vor.u32 %v697, %v698
      %v701 = vsel %vm566, %v693, %v700
      %v702 = vrot.slane %v697, 4
      %v704 = vshrl.u32 %v548, 16
      %v706 = vrot.slane %v704, 7
      %v707 = vshll.u32 %v548, 16
      %v709 = vor.u32 %v706, %v707
      %v710 = vrot.slane %v706, 4
      %v712 = vshrl.u32 %v549, 16
      %v714 = vrot.slane %v712, 7
      %v715 = vshll.u32 %v549, 16
      %v717 = vor.u32 %v714, %v715
      %v718 = vsel %vm566, %v710, %v717
      %v719 = vrot.slane %v714, 4
      %v721 = vshrl.u32 %v550, 16
      %v723 = vrot.slane %v721, 7
      %v724 = vshll.u32 %v550, 16
      %v726 = vor.u32 %v723, %v724
      %v727 = vrot.slane %v723, 4
      %v729 = vshrl.u32 %v551, 16
      %v731 = vrot.slane %v729, 7
      %v732 = vshll.u32 %v551, 16
      %v734 = vor.u32 %v731, %v732
      %v735 = vsel %vm566, %v727, %v734
      %v736 = vrot.slane %v731, 4
      %v738 = vshrl.u32 %v552, 16
      %v740 = vrot.slane %v738, 7
      %v741 = vshll.u32 %v552, 16
      %v743 = vor.u32 %v740, %v741
      %v744 = vrot.slane %v740, 4
      %v746 = vshrl.u32 %v553, 16
      %v748 = vrot.slane %v746, 7
      %v749 = vshll.u32 %v553, 16
      %v751 = vor.u32 %v748, %v749
      %v752 = vsel %vm566, %v744, %v751
      %v753 = vrot.slane %v748, 4
      %v755 = vshrl.u32 %v554, 16
      %v757 = vrot.slane %v755, 7
      %v758 = vshll.u32 %v554, 16
      %v760 = vor.u32 %v757, %v758
      %v761 = vrot.slane %v757, 4
      %v763 = vshrl.u32 %v555, 16
      %v765 = vrot.slane %v763, 7
      %v766 = vshll.u32 %v555, 16
      %v768 = vor.u32 %v765, %v766
      %v769 = vsel %vm566, %v761, %v768
      %v770 = vrot.slane %v765, 4
      %v772 = vshrl.u32 %v556, 16
      %v774 = vrot.slane %v772, 7
      %v775 = vshll.u32 %v556, 16
      %v777 = vor.u32 %v774, %v775
      %v778 = vrot.slane %v774, 4
      %v780 = vshrl.u32 %v557, 16
      %v782 = vrot.slane %v780, 7
      %v783 = vshll.u32 %v557, 16
      %v785 = vor.u32 %v782, %v783
      %v786 = vsel %vm566, %v778, %v785
      %v787 = vrot.slane %v782, 4
      %v789 = vshrl.u32 %v558, 16
      %v791 = vrot.slane %v789, 7
      %v792 = vshll.u32 %v558, 16
      %v794 = vor.u32 %v791, %v792
      %v795 = vrot.slane %v791, 4
      %v797 = vshrl.u32 %v559, 16
      %v799 = vrot.slane %v797, 7
      %v800 = vshll.u32 %v559, 16
      %v802 = vor.u32 %v799, %v800
      %v803 = vsel %vm566, %v795, %v802
      %v804 = vrot.slane %v799, 4
      %v806 = vshrl.u32 %v560, 16
      %v808 = vrot.slane %v806, 7
      %v809 = vshll.u32 %v560, 16
      %v811 = vor.u32 %v808, %v809
      %v812 = vrot.slane %v808, 4
      %v814 = vshrl.u32 %v561, 16
      %v816 = vrot.slane %v814, 7
      %v817 = vshll.u32 %v561, 16
      %v819 = vor.u32 %v816, %v817
      %v820 = vsel %vm566, %v812, %v819
      %v821 = vrot.slane %v816, 4
      %v823 = vshrl.u32 %v562, 16
      %v825 = vrot.slane %v823, 7
      %v826 = vshll.u32 %v562, 16
      %v828 = vor.u32 %v825, %v826
      %v829 = vrot.slane %v825, 4
      %v831 = vshrl.u32 %v563, 16
      %v833 = vrot.slane %v831, 7
      %v834 = vshll.u32 %v563, 16
      %v836 = vor.u32 %v833, %v834
      %v837 = vsel %vm566, %v829, %v836
      %v838 = vrot.slane %v833, 4
      %s887 = scalar_lea.vmem [#allocation2], 12
      %vm888 = vcmask 257024
      %vm889 = vsmask.f32 7938
      %vm890 = vmand %vm888, %vm889
      %v891 = vld [vmem:[%s887] sm:$0xf]
      %v892 = vsel %vm890, %v573, %v891
      %893 = vst [vmem:[%s887] sm:$0xf] %v892
      %894 = vst.msk [vmem:[%s887 + $0x4] sm:$0xf] %vm412, %v582
      %vm895 = vcmask 253952
      %vm896 = vmand %vm895, %vm564
      %v897 = vld [vmem:[%s887 + $0x8] sm:$0x1]
      %v898 = vsel %vm896, %v583, %v897
      %899 = vst [vmem:[%s887 + $0x8] sm:$0x1] %v898
      %v900 = vld [vmem:[%s887 + $0xc] sm:$0xf]
      %v901 = vsel %vm890, %v590, %v900
      %902 = vst [vmem:[%s887 + $0xc] sm:$0xf] %v901
      %903 = vst.msk [vmem:[%s887 + $0x10] sm:$0xf] %vm412, %v599
      %v904 = vld [vmem:[%s887 + $0x14] sm:$0x1]
      %v905 = vsel %vm896, %v600, %v904
      %906 = vst [vmem:[%s887 + $0x14] sm:$0x1] %v905
      %v907 = vld [vmem:[%s887 + $0x18] sm:$0xf]
      %v908 = vsel %vm890, %v607, %v907
      %909 = vst [vmem:[%s887 + $0x18] sm:$0xf] %v908
      %910 = vst.msk [vmem:[%s887 + $0x1c] sm:$0xf] %vm412, %v616
      %v911 = vld [vmem:[%s887 + $0x20] sm:$0x1]
      %v912 = vsel %vm896, %v617, %v911
      %913 = vst [vmem:[%s887 + $0x20] sm:$0x1] %v912
      %v914 = vld [vmem:[%s887 + $0x24] sm:$0xf]
      %v915 = vsel %vm890, %v624, %v914
      %916 = vst [vmem:[%s887 + $0x24] sm:$0xf] %v915
      %917 = vst.msk [vmem:[%s887 + $0x28] sm:$0xf] %vm412, %v633
      %v918 = vld [vmem:[%s887 + $0x2c] sm:$0x1]
      %v919 = vsel %vm896, %v634, %v918
      %920 = vst [vmem:[%s887 + $0x2c] sm:$0x1] %v919
      %v921 = vld [vmem:[%s887 + $0x30] sm:$0xf]
      %v922 = vsel %vm890, %v641, %v921
      %923 = vst [vmem:[%s887 + $0x30] sm:$0xf] %v922
      %924 = vst.msk [vmem:[%s887 + $0x34] sm:$0xf] %vm412, %v650
      %v925 = vld [vmem:[%s887 + $0x38] sm:$0x1]
      %v926 = vsel %vm896, %v651, %v925
      %927 = vst [vmem:[%s887 + $0x38] sm:$0x1] %v926
      %v928 = vld [vmem:[%s887 + $0x3c] sm:$0xf]
      %v929 = vsel %vm890, %v658, %v928
      %930 = vst [vmem:[%s887 + $0x3c] sm:$0xf] %v929
      %931 = vst.msk [vmem:[%s887 + $0x40] sm:$0xf] %vm412, %v667
      %v932 = vld [vmem:[%s887 + $0x44] sm:$0x1]
      %v933 = vsel %vm896, %v668, %v932
      %934 = vst [vmem:[%s887 + $0x44] sm:$0x1] %v933
      %v935 = vld [vmem:[%s887 + $0x48] sm:$0xf]
      %v936 = vsel %vm890, %v675, %v935
      %937 = vst [vmem:[%s887 + $0x48] sm:$0xf] %v936
      %938 = vst.msk [vmem:[%s887 + $0x4c] sm:$0xf] %vm412, %v684
      %v939 = vld [vmem:[%s887 + $0x50] sm:$0x1]
      %v940 = vsel %vm896, %v685, %v939
      %941 = vst [vmem:[%s887 + $0x50] sm:$0x1] %v940
      %v942 = vld [vmem:[%s887 + $0x54] sm:$0xf]
      %v943 = vsel %vm890, %v692, %v942
      %944 = vst [vmem:[%s887 + $0x54] sm:$0xf] %v943
      %945 = vst.msk [vmem:[%s887 + $0x58] sm:$0xf] %vm412, %v701
      %v946 = vld [vmem:[%s887 + $0x5c] sm:$0x1]
      %v947 = vsel %vm896, %v702, %v946
      %948 = vst [vmem:[%s887 + $0x5c] sm:$0x1] %v947
      %v949 = vld [vmem:[%s887 + $0x60] sm:$0xf]
      %v950 = vsel %vm890, %v709, %v949
      %951 = vst [vmem:[%s887 + $0x60] sm:$0xf] %v950
      %952 = vst.msk [vmem:[%s887 + $0x64] sm:$0xf] %vm412, %v718
      %v953 = vld [vmem:[%s887 + $0x68] sm:$0x1]
      %v954 = vsel %vm896, %v719, %v953
      %955 = vst [vmem:[%s887 + $0x68] sm:$0x1] %v954
      %v956 = vld [vmem:[%s887 + $0x6c] sm:$0xf]
      %v957 = vsel %vm890, %v726, %v956
      %958 = vst [vmem:[%s887 + $0x6c] sm:$0xf] %v957
      %959 = vst.msk [vmem:[%s887 + $0x70] sm:$0xf] %vm412, %v735
      %v960 = vld [vmem:[%s887 + $0x74] sm:$0x1]
      %v961 = vsel %vm896, %v736, %v960
      %962 = vst [vmem:[%s887 + $0x74] sm:$0x1] %v961
      %v963 = vld [vmem:[%s887 + $0x78] sm:$0xf]
      %v964 = vsel %vm890, %v743, %v963
      %965 = vst [vmem:[%s887 + $0x78] sm:$0xf] %v964
      %966 = vst.msk [vmem:[%s887 + $0x7c] sm:$0xf] %vm412, %v752
      %v967 = vld [vmem:[%s887 + $0x80] sm:$0x1]
      %v968 = vsel %vm896, %v753, %v967
      %969 = vst [vmem:[%s887 + $0x80] sm:$0x1] %v968
      %v970 = vld [vmem:[%s887 + $0x84] sm:$0xf]
      %v971 = vsel %vm890, %v760, %v970
      %972 = vst [vmem:[%s887 + $0x84] sm:$0xf] %v971
      %973 = vst.msk [vmem:[%s887 + $0x88] sm:$0xf] %vm412, %v769
      %v974 = vld [vmem:[%s887 + $0x8c] sm:$0x1]
      %v975 = vsel %vm896, %v770, %v974
      %976 = vst [vmem:[%s887 + $0x8c] sm:$0x1] %v975
      %v977 = vld [vmem:[%s887 + $0x90] sm:$0xf]
      %v978 = vsel %vm890, %v777, %v977
      %979 = vst [vmem:[%s887 + $0x90] sm:$0xf] %v978
      %980 = vst.msk [vmem:[%s887 + $0x94] sm:$0xf] %vm412, %v786
      %v981 = vld [vmem:[%s887 + $0x98] sm:$0x1]
      %v982 = vsel %vm896, %v787, %v981
      %983 = vst [vmem:[%s887 + $0x98] sm:$0x1] %v982
      %v984 = vld [vmem:[%s887 + $0x9c] sm:$0xf]
      %v985 = vsel %vm890, %v794, %v984
      %986 = vst [vmem:[%s887 + $0x9c] sm:$0xf] %v985
      %987 = vst.msk [vmem:[%s887 + $0xa0] sm:$0xf] %vm412, %v803
      %v988 = vld [vmem:[%s887 + $0xa4] sm:$0x1]
      %v989 = vsel %vm896, %v804, %v988
      %990 = vst [vmem:[%s887 + $0xa4] sm:$0x1] %v989
      %v991 = vld [vmem:[%s887 + $0xa8] sm:$0xf]
      %v992 = vsel %vm890, %v811, %v991
      %993 = vst [vmem:[%s887 + $0xa8] sm:$0xf] %v992
      %994 = vst.msk [vmem:[%s887 + $0xac] sm:$0xf] %vm412, %v820
      %v995 = vld [vmem:[%s887 + $0xb0] sm:$0x1]
      %v996 = vsel %vm896, %v821, %v995
      %997 = vst [vmem:[%s887 + $0xb0] sm:$0x1] %v996
      %v998 = vld [vmem:[%s887 + $0xb4] sm:$0xf]
      %v999 = vsel %vm890, %v828, %v998
      %1000 = vst [vmem:[%s887 + $0xb4] sm:$0xf] %v999
      %1001 = vst.msk [vmem:[%s887 + $0xb8] sm:$0xf] %vm412, %v837
      %v1002 = vld [vmem:[%s887 + $0xbc] sm:$0x1]
      %v1003 = vsel %vm896, %v838, %v1002
      %1004 = vst [vmem:[%s887 + $0xbc] sm:$0x1] %v1003
      %v1005 = vld [vmem:[#allocation2] sm:$0xf]
      %v1006 = vld [vmem:[#allocation2 + $0x4] sm:$0xf]
      %v1007 = vld [vmem:[#allocation2 + $0xc] sm:$0xf]
      %v1008 = vld [vmem:[#allocation2 + $0x10] sm:$0xf]
      %v1009 = vld [vmem:[#allocation2 + $0x18] sm:$0xf]
      %v1010 = vld [vmem:[#allocation2 + $0x1c] sm:$0xf]
      %v1011 = vld [vmem:[#allocation2 + $0x24] sm:$0xf]
      %v1012 = vld [vmem:[#allocation2 + $0x28] sm:$0xf]
      %v1013 = vld [vmem:[#allocation2 + $0x30] sm:$0xf]
      %v1014 = vld [vmem:[#allocation2 + $0x34] sm:$0xf]
      %v1015 = vld [vmem:[#allocation2 + $0x3c] sm:$0xf]
      %v1016 = vld [vmem:[#allocation2 + $0x40] sm:$0xf]
      %v1017 = vld [vmem:[#allocation2 + $0x48] sm:$0xf]
      %v1018 = vld [vmem:[#allocation2 + $0x4c] sm:$0xf]
      %v1019 = vld [vmem:[#allocation2 + $0x54] sm:$0xf]
      %v1020 = vld [vmem:[#allocation2 + $0x58] sm:$0xf]
      %v1021 = vld [vmem:[#allocation2 + $0x60] sm:$0xf]
      %v1022 = vld [vmem:[#allocation2 + $0x64] sm:$0xf]
      %v1023 = vld [vmem:[#allocation2 + $0x6c] sm:$0xf]
      %v1024 = vld [vmem:[#allocation2 + $0x70] sm:$0xf]
      %v1025 = vld [vmem:[#allocation2 + $0x78] sm:$0xf]
      %v1026 = vld [vmem:[#allocation2 + $0x7c] sm:$0xf]
      %v1027 = vld [vmem:[#allocation2 + $0x84] sm:$0xf]
      %v1028 = vld [vmem:[#allocation2 + $0x88] sm:$0xf]
      %v1029 = vld [vmem:[#allocation2 + $0x90] sm:$0xf]
      %v1030 = vld [vmem:[#allocation2 + $0x94] sm:$0xf]
      %v1031 = vld [vmem:[#allocation2 + $0x9c] sm:$0xf]
      %v1032 = vld [vmem:[#allocation2 + $0xa0] sm:$0xf]
      %v1033 = vld [vmem:[#allocation2 + $0xa8] sm:$0xf]
      %v1034 = vld [vmem:[#allocation2 + $0xac] sm:$0xf]
      %v1035 = vld [vmem:[#allocation2 + $0xb4] sm:$0xf]
      %v1036 = vld [vmem:[#allocation2 + $0xb8] sm:$0xf]
      %v1037 = vld [vmem:[#allocation2 + $0x8] sm:$0x1]
      %v1038 = vld [vmem:[#allocation2 + $0x14] sm:$0x1]
      %v1039 = vld [vmem:[#allocation2 + $0x20] sm:$0x1]
      %v1040 = vld [vmem:[#allocation2 + $0x2c] sm:$0x1]
      %v1041 = vld [vmem:[#allocation2 + $0x38] sm:$0x1]
      %v1042 = vld [vmem:[#allocation2 + $0x44] sm:$0x1]
      %v1043 = vld [vmem:[#allocation2 + $0x50] sm:$0x1]
      %v1044 = vld [vmem:[#allocation2 + $0x5c] sm:$0x1]
      %v1045 = vld [vmem:[#allocation2 + $0x68] sm:$0x1]
      %v1046 = vld [vmem:[#allocation2 + $0x74] sm:$0x1]
      %v1047 = vld [vmem:[#allocation2 + $0x80] sm:$0x1]
      %v1048 = vld [vmem:[#allocation2 + $0x8c] sm:$0x1]
      %v1049 = vld [vmem:[#allocation2 + $0x98] sm:$0x1]
      %v1050 = vld [vmem:[#allocation2 + $0xa4] sm:$0x1]
      %v1051 = vld [vmem:[#allocation2 + $0xb0] sm:$0x1]
      %v1052 = vld [vmem:[#allocation2 + $0xbc] sm:$0x1]
      %vm1053 = vsmask.f32 3328
      %vm1054 = vsmask.f32 7440
      %vm1055 = vmor %vm1053, %vm1054
      %v1057 = vshrl.u32 %v1005, 16
      %v1059 = vrot.slane %v1057, 4
      %v1060 = vshll.u32 %v1005, 16
      %v1062 = vrot.slane %v1060, 5
      %v1063 = vor.u32 %v1059, %v1062
      %v1064 = vrot.slane %v1063, 4
      %v1066 = vshll.u32 %v1006, 16
      %v1068 = vrot.slane %v1066, 5
      %v1069 = vsel %vm1055, %v1064, %v1068
      %v1070 = vshrl.u32 %v1006, 16
      %v1072 = vrot.slane %v1070, 4
      %v1073 = vor.u32 %v1072, %v1068
      %v1074 = vrot.slane %v1073, 4
      %v1076 = vshll.u32 %v1037, 16
      %v1078 = vrot.slane %v1076, 5
      %v1079 = vsel %vm1055, %v1074, %v1078
      %v1081 = vshrl.u32 %v1007, 16
      %v1083 = vrot.slane %v1081, 4
      %v1084 = vshll.u32 %v1007, 16
      %v1086 = vrot.slane %v1084, 5
      %v1087 = vor.u32 %v1083, %v1086
      %v1088 = vrot.slane %v1087, 4
      %v1090 = vshll.u32 %v1008, 16
      %v1092 = vrot.slane %v1090, 5
      %v1093 = vsel %vm1055, %v1088, %v1092
      %v1094 = vshrl.u32 %v1008, 16
      %v1096 = vrot.slane %v1094, 4
      %v1097 = vor.u32 %v1096, %v1092
      %v1098 = vrot.slane %v1097, 4
      %v1100 = vshll.u32 %v1038, 16
      %v1102 = vrot.slane %v1100, 5
      %v1103 = vsel %vm1055, %v1098, %v1102
      %v1105 = vshrl.u32 %v1009, 16
      %v1107 = vrot.slane %v1105, 4
      %v1108 = vshll.u32 %v1009, 16
      %v1110 = vrot.slane %v1108, 5
      %v1111 = vor.u32 %v1107, %v1110
      %v1112 = vrot.slane %v1111, 4
      %v1114 = vshll.u32 %v1010, 16
      %v1116 = vrot.slane %v1114, 5
      %v1117 = vsel %vm1055, %v1112, %v1116
      %v1118 = vshrl.u32 %v1010, 16
      %v1120 = vrot.slane %v1118, 4
      %v1121 = vor.u32 %v1120, %v1116
      %v1122 = vrot.slane %v1121, 4
      %v1124 = vshll.u32 %v1039, 16
      %v1126 = vrot.slane %v1124, 5
      %v1127 = vsel %vm1055, %v1122, %v1126
      %v1129 = vshrl.u32 %v1011, 16
      %v1131 = vrot.slane %v1129, 4
      %v1132 = vshll.u32 %v1011, 16
      %v1134 = vrot.slane %v1132, 5
      %v1135 = vor.u32 %v1131, %v1134
      %v1136 = vrot.slane %v1135, 4
      %v1138 = vshll.u32 %v1012, 16
      %v1140 = vrot.slane %v1138, 5
      %v1141 = vsel %vm1055, %v1136, %v1140
      %v1142 = vshrl.u32 %v1012, 16
      %v1144 = vrot.slane %v1142, 4
      %v1145 = vor.u32 %v1144, %v1140
      %v1146 = vrot.slane %v1145, 4
      %v1148 = vshll.u32 %v1040, 16
      %v1150 = vrot.slane %v1148, 5
      %v1151 = vsel %vm1055, %v1146, %v1150
      %v1153 = vshrl.u32 %v1013, 16
      %v1155 = vrot.slane %v1153, 4
      %v1156 = vshll.u32 %v1013, 16
      %v1158 = vrot.slane %v1156, 5
      %v1159 = vor.u32 %v1155, %v1158
      %v1160 = vrot.slane %v1159, 4
      %v1162 = vshll.u32 %v1014, 16
      %v1164 = vrot.slane %v1162, 5
      %v1165 = vsel %vm1055, %v1160, %v1164
      %v1166 = vshrl.u32 %v1014, 16
      %v1168 = vrot.slane %v1166, 4
      %v1169 = vor.u32 %v1168, %v1164
      %v1170 = vrot.slane %v1169, 4
      %v1172 = vshll.u32 %v1041, 16
      %v1174 = vrot.slane %v1172, 5
      %v1175 = vsel %vm1055, %v1170, %v1174
      %v1177 = vshrl.u32 %v1015, 16
      %v1179 = vrot.slane %v1177, 4
      %v1180 = vshll.u32 %v1015, 16
      %v1182 = vrot.slane %v1180, 5
      %v1183 = vor.u32 %v1179, %v1182
      %v1184 = vrot.slane %v1183, 4
      %v1186 = vshll.u32 %v1016, 16
      %v1188 = vrot.slane %v1186, 5
      %v1189 = vsel %vm1055, %v1184, %v1188
      %v1190 = vshrl.u32 %v1016, 16
      %v1192 = vrot.slane %v1190, 4
      %v1193 = vor.u32 %v1192, %v1188
      %v1194 = vrot.slane %v1193, 4
      %v1196 = vshll.u32 %v1042, 16
      %v1198 = vrot.slane %v1196, 5
      %v1199 = vsel %vm1055, %v1194, %v1198
      %v1201 = vshrl.u32 %v1017, 16
      %v1203 = vrot.slane %v1201, 4
      %v1204 = vshll.u32 %v1017, 16
      %v1206 = vrot.slane %v1204, 5
      %v1207 = vor.u32 %v1203, %v1206
      %v1208 = vrot.slane %v1207, 4
      %v1210 = vshll.u32 %v1018, 16
      %v1212 = vrot.slane %v1210, 5
      %v1213 = vsel %vm1055, %v1208, %v1212
      %v1214 = vshrl.u32 %v1018, 16
      %v1216 = vrot.slane %v1214, 4
      %v1217 = vor.u32 %v1216, %v1212
      %v1218 = vrot.slane %v1217, 4
      %v1220 = vshll.u32 %v1043, 16
      %v1222 = vrot.slane %v1220, 5
      %v1223 = vsel %vm1055, %v1218, %v1222
      %v1225 = vshrl.u32 %v1019, 16
      %v1227 = vrot.slane %v1225, 4
      %v1228 = vshll.u32 %v1019, 16
      %v1230 = vrot.slane %v1228, 5
      %v1231 = vor.u32 %v1227, %v1230
      %v1232 = vrot.slane %v1231, 4
      %v1234 = vshll.u32 %v1020, 16
      %v1236 = vrot.slane %v1234, 5
      %v1237 = vsel %vm1055, %v1232, %v1236
      %v1238 = vshrl.u32 %v1020, 16
      %v1240 = vrot.slane %v1238, 4
      %v1241 = vor.u32 %v1240, %v1236
      %v1242 = vrot.slane %v1241, 4
      %v1244 = vshll.u32 %v1044, 16
      %v1246 = vrot.slane %v1244, 5
      %v1247 = vsel %vm1055, %v1242, %v1246
      %v1249 = vshrl.u32 %v1021, 16
      %v1251 = vrot.slane %v1249, 4
      %v1252 = vshll.u32 %v1021, 16
      %v1254 = vrot.slane %v1252, 5
      %v1255 = vor.u32 %v1251, %v1254
      %v1256 = vrot.slane %v1255, 4
      %v1258 = vshll.u32 %v1022, 16
      %v1260 = vrot.slane %v1258, 5
      %v1261 = vsel %vm1055, %v1256, %v1260
      %v1262 = vshrl.u32 %v1022, 16
      %v1264 = vrot.slane %v1262, 4
      %v1265 = vor.u32 %v1264, %v1260
      %v1266 = vrot.slane %v1265, 4
      %v1268 = vshll.u32 %v1045, 16
      %v1270 = vrot.slane %v1268, 5
      %v1271 = vsel %vm1055, %v1266, %v1270
      %v1273 = vshrl.u32 %v1023, 16
      %v1275 = vrot.slane %v1273, 4
      %v1276 = vshll.u32 %v1023, 16
      %v1278 = vrot.slane %v1276, 5
      %v1279 = vor.u32 %v1275, %v1278
      %v1280 = vrot.slane %v1279, 4
      %v1282 = vshll.u32 %v1024, 16
      %v1284 = vrot.slane %v1282, 5
      %v1285 = vsel %vm1055, %v1280, %v1284
      %v1286 = vshrl.u32 %v1024, 16
      %v1288 = vrot.slane %v1286, 4
      %v1289 = vor.u32 %v1288, %v1284
      %v1290 = vrot.slane %v1289, 4
      %v1292 = vshll.u32 %v1046, 16
      %v1294 = vrot.slane %v1292, 5
      %v1295 = vsel %vm1055, %v1290, %v1294
      %v1297 = vshrl.u32 %v1025, 16
      %v1299 = vrot.slane %v1297, 4
      %v1300 = vshll.u32 %v1025, 16
      %v1302 = vrot.slane %v1300, 5
      %v1303 = vor.u32 %v1299, %v1302
      %v1304 = vrot.slane %v1303, 4
      %v1306 = vshll.u32 %v1026, 16
      %v1308 = vrot.slane %v1306, 5
      %v1309 = vsel %vm1055, %v1304, %v1308
      %v1310 = vshrl.u32 %v1026, 16
      %v1312 = vrot.slane %v1310, 4
      %v1313 = vor.u32 %v1312, %v1308
      %v1314 = vrot.slane %v1313, 4
      %v1316 = vshll.u32 %v1047, 16
      %v1318 = vrot.slane %v1316, 5
      %v1319 = vsel %vm1055, %v1314, %v1318
      %v1321 = vshrl.u32 %v1027, 16
      %v1323 = vrot.slane %v1321, 4
      %v1324 = vshll.u32 %v1027, 16
      %v1326 = vrot.slane %v1324, 5
      %v1327 = vor.u32 %v1323, %v1326
      %v1328 = vrot.slane %v1327, 4
      %v1330 = vshll.u32 %v1028, 16
      %v1332 = vrot.slane %v1330, 5
      %v1333 = vsel %vm1055, %v1328, %v1332
      %v1334 = vshrl.u32 %v1028, 16
      %v1336 = vrot.slane %v1334, 4
      %v1337 = vor.u32 %v1336, %v1332
      %v1338 = vrot.slane %v1337, 4
      %v1340 = vshll.u32 %v1048, 16
      %v1342 = vrot.slane %v1340, 5
      %v1343 = vsel %vm1055, %v1338, %v1342
      %v1345 = vshrl.u32 %v1029, 16
      %v1347 = vrot.slane %v1345, 4
      %v1348 = vshll.u32 %v1029, 16
      %v1350 = vrot.slane %v1348, 5
      %v1351 = vor.u32 %v1347, %v1350
      %v1352 = vrot.slane %v1351, 4
      %v1354 = vshll.u32 %v1030, 16
      %v1356 = vrot.slane %v1354, 5
      %v1357 = vsel %vm1055, %v1352, %v1356
      %v1358 = vshrl.u32 %v1030, 16
      %v1360 = vrot.slane %v1358, 4
      %v1361 = vor.u32 %v1360, %v1356
      %v1362 = vrot.slane %v1361, 4
      %v1364 = vshll.u32 %v1049, 16
      %v1366 = vrot.slane %v1364, 5
      %v1367 = vsel %vm1055, %v1362, %v1366
      %v1369 = vshrl.u32 %v1031, 16
      %v1371 = vrot.slane %v1369, 4
      %v1372 = vshll.u32 %v1031, 16
      %v1374 = vrot.slane %v1372, 5
      %v1375 = vor.u32 %v1371, %v1374
      %v1376 = vrot.slane %v1375, 4
      %v1378 = vshll.u32 %v1032, 16
      %v1380 = vrot.slane %v1378, 5
      %v1381 = vsel %vm1055, %v1376, %v1380
      %v1382 = vshrl.u32 %v1032, 16
      %v1384 = vrot.slane %v1382, 4
      %v1385 = vor.u32 %v1384, %v1380
      %v1386 = vrot.slane %v1385, 4
      %v1388 = vshll.u32 %v1050, 16
      %v1390 = vrot.slane %v1388, 5
      %v1391 = vsel %vm1055, %v1386, %v1390
      %v1393 = vshrl.u32 %v1033, 16
      %v1395 = vrot.slane %v1393, 4
      %v1396 = vshll.u32 %v1033, 16
      %v1398 = vrot.slane %v1396, 5
      %v1399 = vor.u32 %v1395, %v1398
      %v1400 = vrot.slane %v1399, 4
      %v1402 = vshll.u32 %v1034, 16
      %v1404 = vrot.slane %v1402, 5
      %v1405 = vsel %vm1055, %v1400, %v1404
      %v1406 = vshrl.u32 %v1034, 16
      %v1408 = vrot.slane %v1406, 4
      %v1409 = vor.u32 %v1408, %v1404
      %v1410 = vrot.slane %v1409, 4
      %v1412 = vshll.u32 %v1051, 16
      %v1414 = vrot.slane %v1412, 5
      %v1415 = vsel %vm1055, %v1410, %v1414
      %v1417 = vshrl.u32 %v1035, 16
      %v1419 = vrot.slane %v1417, 4
      %v1420 = vshll.u32 %v1035, 16
      %v1422 = vrot.slane %v1420, 5
      %v1423 = vor.u32 %v1419, %v1422
      %v1424 = vrot.slane %v1423, 4
      %v1426 = vshll.u32 %v1036, 16
      %v1428 = vrot.slane %v1426, 5
      %v1429 = vsel %vm1055, %v1424, %v1428
      %v1430 = vshrl.u32 %v1036, 16
      %v1432 = vrot.slane %v1430, 4
      %v1433 = vor.u32 %v1432, %v1428
      %v1434 = vrot.slane %v1433, 4
      %v1436 = vshll.u32 %v1052, 16
      %v1438 = vrot.slane %v1436, 5
      %v1439 = vsel %vm1055, %v1434, %v1438
      %v1440 = vld [vmem:[#allocation2] sm:$0xe]
      %v1441 = vld [vmem:[#allocation2 + $0xc] sm:$0xe]
      %v1442 = vld [vmem:[#allocation2 + $0x18] sm:$0xe]
      %v1443 = vld [vmem:[#allocation2 + $0x24] sm:$0xe]
      %v1444 = vld [vmem:[#allocation2 + $0x30] sm:$0xe]
      %v1445 = vld [vmem:[#allocation2 + $0x3c] sm:$0xe]
      %v1446 = vld [vmem:[#allocation2 + $0x48] sm:$0xe]
      %v1447 = vld [vmem:[#allocation2 + $0x54] sm:$0xe]
      %v1448 = vld [vmem:[#allocation2 + $0x60] sm:$0xe]
      %v1449 = vld [vmem:[#allocation2 + $0x6c] sm:$0xe]
      %v1450 = vld [vmem:[#allocation2 + $0x78] sm:$0xe]
      %v1451 = vld [vmem:[#allocation2 + $0x84] sm:$0xe]
      %v1452 = vld [vmem:[#allocation2 + $0x90] sm:$0xe]
      %v1453 = vld [vmem:[#allocation2 + $0x9c] sm:$0xe]
      %v1454 = vld [vmem:[#allocation2 + $0xa8] sm:$0xe]
      %v1455 = vld [vmem:[#allocation2 + $0xb4] sm:$0xe]
      %vm1504 = vcmask 1042432
      %vm1505 = vcmask 1046532
      %vm1506 = vmor %vm1504, %vm1505
      %v1507 = vrot.slane %v1440, 5
      %v1508 = vrot.slane %v1507, 4
      %v1509 = vrot.slane %v1006, 5
      %v1510 = vsel %vm1506, %v1508, %v1509
      %v1511 = vrot.slane %v1509, 4
      %v1512 = vrot.slane %v1037, 5
      %v1513 = vsel %vm1506, %v1511, %v1512
      %v1514 = vrot.slane %v1441, 5
      %v1515 = vrot.slane %v1514, 4
      %v1516 = vrot.slane %v1008, 5
      %v1517 = vsel %vm1506, %v1515, %v1516
      %v1518 = vrot.slane %v1516, 4
      %v1519 = vrot.slane %v1038, 5
      %v1520 = vsel %vm1506, %v1518, %v1519
      %v1521 = vrot.slane %v1442, 5
      %v1522 = vrot.slane %v1521, 4
      %v1523 = vrot.slane %v1010, 5
      %v1524 = vsel %vm1506, %v1522, %v1523
      %v1525 = vrot.slane %v1523, 4
      %v1526 = vrot.slane %v1039, 5
      %v1527 = vsel %vm1506, %v1525, %v1526
      %v1528 = vrot.slane %v1443, 5
      %v1529 = vrot.slane %v1528, 4
      %v1530 = vrot.slane %v1012, 5
      %v1531 = vsel %vm1506, %v1529, %v1530
      %v1532 = vrot.slane %v1530, 4
      %v1533 = vrot.slane %v1040, 5
      %v1534 = vsel %vm1506, %v1532, %v1533
      %v1535 = vrot.slane %v1444, 5
      %v1536 = vrot.slane %v1535, 4
      %v1537 = vrot.slane %v1014, 5
      %v1538 = vsel %vm1506, %v1536, %v1537
      %v1539 = vrot.slane %v1537, 4
      %v1540 = vrot.slane %v1041, 5
      %v1541 = vsel %vm1506, %v1539, %v1540
      %v1542 = vrot.slane %v1445, 5
      %v1543 = vrot.slane %v1542, 4
      %v1544 = vrot.slane %v1016, 5
      %v1545 = vsel %vm1506, %v1543, %v1544
      %v1546 = vrot.slane %v1544, 4
      %v1547 = vrot.slane %v1042, 5
      %v1548 = vsel %vm1506, %v1546, %v1547
      %v1549 = vrot.slane %v1446, 5
      %v1550 = vrot.slane %v1549, 4
      %v1551 = vrot.slane %v1018, 5
      %v1552 = vsel %vm1506, %v1550, %v1551
      %v1553 = vrot.slane %v1551, 4
      %v1554 = vrot.slane %v1043, 5
      %v1555 = vsel %vm1506, %v1553, %v1554
      %v1556 = vrot.slane %v1447, 5
      %v1557 = vrot.slane %v1556, 4
      %v1558 = vrot.slane %v1020, 5
      %v1559 = vsel %vm1506, %v1557, %v1558
      %v1560 = vrot.slane %v1558, 4
      %v1561 = vrot.slane %v1044, 5
      %v1562 = vsel %vm1506, %v1560, %v1561
      %v1563 = vrot.slane %v1448, 5
      %v1564 = vrot.slane %v1563, 4
      %v1565 = vrot.slane %v1022, 5
      %v1566 = vsel %vm1506, %v1564, %v1565
      %v1567 = vrot.slane %v1565, 4
      %v1568 = vrot.slane %v1045, 5
      %v1569 = vsel %vm1506, %v1567, %v1568
      %v1570 = vrot.slane %v1449, 5
      %v1571 = vrot.slane %v1570, 4
      %v1572 = vrot.slane %v1024, 5
      %v1573 = vsel %vm1506, %v1571, %v1572
      %v1574 = vrot.slane %v1572, 4
      %v1575 = vrot.slane %v1046, 5
      %v1576 = vsel %vm1506, %v1574, %v1575
      %v1577 = vrot.slane %v1450, 5
      %v1578 = vrot.slane %v1577, 4
      %v1579 = vrot.slane %v1026, 5
      %v1580 = vsel %vm1506, %v1578, %v1579
      %v1581 = vrot.slane %v1579, 4
      %v1582 = vrot.slane %v1047, 5
      %v1583 = vsel %vm1506, %v1581, %v1582
      %v1584 = vrot.slane %v1451, 5
      %v1585 = vrot.slane %v1584, 4
      %v1586 = vrot.slane %v1028, 5
      %v1587 = vsel %vm1506, %v1585, %v1586
      %v1588 = vrot.slane %v1586, 4
      %v1589 = vrot.slane %v1048, 5
      %v1590 = vsel %vm1506, %v1588, %v1589
      %v1591 = vrot.slane %v1452, 5
      %v1592 = vrot.slane %v1591, 4
      %v1593 = vrot.slane %v1030, 5
      %v1594 = vsel %vm1506, %v1592, %v1593
      %v1595 = vrot.slane %v1593, 4
      %v1596 = vrot.slane %v1049, 5
      %v1597 = vsel %vm1506, %v1595, %v1596
      %v1598 = vrot.slane %v1453, 5
      %v1599 = vrot.slane %v1598, 4
      %v1600 = vrot.slane %v1032, 5
      %v1601 = vsel %vm1506, %v1599, %v1600
      %v1602 = vrot.slane %v1600, 4
      %v1603 = vrot.slane %v1050, 5
      %v1604 = vsel %vm1506, %v1602, %v1603
      %v1605 = vrot.slane %v1454, 5
      %v1606 = vrot.slane %v1605, 4
      %v1607 = vrot.slane %v1034, 5
      %v1608 = vsel %vm1506, %v1606, %v1607
      %v1609 = vrot.slane %v1607, 4
      %v1610 = vrot.slane %v1051, 5
      %v1611 = vsel %vm1506, %v1609, %v1610
      %v1612 = vrot.slane %v1455, 5
      %v1613 = vrot.slane %v1612, 4
      %v1614 = vrot.slane %v1036, 5
      %v1615 = vsel %vm1506, %v1613, %v1614
      %v1616 = vrot.slane %v1614, 4
      %v1617 = vrot.slane %v1052, 5
      %v1618 = vsel %vm1506, %v1616, %v1617
      %v1619 = vld [vmem:[%s887] sm:$0xf]
      %v1620 = vld [vmem:[%s887 + $0x4] sm:$0xf]
      %v1621 = vld [vmem:[%s887 + $0xc] sm:$0xf]
      %v1622 = vld [vmem:[%s887 + $0x10] sm:$0xf]
      %v1623 = vld [vmem:[%s887 + $0x18] sm:$0xf]
      %v1624 = vld [vmem:[%s887 + $0x1c] sm:$0xf]
      %v1625 = vld [vmem:[%s887 + $0x24] sm:$0xf]
      %v1626 = vld [vmem:[%s887 + $0x28] sm:$0xf]
      %v1627 = vld [vmem:[%s887 + $0x30] sm:$0xf]
      %v1628 = vld [vmem:[%s887 + $0x34] sm:$0xf]
      %v1629 = vld [vmem:[%s887 + $0x3c] sm:$0xf]
      %v1630 = vld [vmem:[%s887 + $0x40] sm:$0xf]
      %v1631 = vld [vmem:[%s887 + $0x48] sm:$0xf]
      %v1632 = vld [vmem:[%s887 + $0x4c] sm:$0xf]
      %v1633 = vld [vmem:[%s887 + $0x54] sm:$0xf]
      %v1634 = vld [vmem:[%s887 + $0x58] sm:$0xf]
      %v1635 = vld [vmem:[%s887 + $0x60] sm:$0xf]
      %v1636 = vld [vmem:[%s887 + $0x64] sm:$0xf]
      %v1637 = vld [vmem:[%s887 + $0x6c] sm:$0xf]
      %v1638 = vld [vmem:[%s887 + $0x70] sm:$0xf]
      %v1639 = vld [vmem:[%s887 + $0x78] sm:$0xf]
      %v1640 = vld [vmem:[%s887 + $0x7c] sm:$0xf]
      %v1641 = vld [vmem:[%s887 + $0x84] sm:$0xf]
      %v1642 = vld [vmem:[%s887 + $0x88] sm:$0xf]
      %v1643 = vld [vmem:[%s887 + $0x90] sm:$0xf]
      %v1644 = vld [vmem:[%s887 + $0x94] sm:$0xf]
      %v1645 = vld [vmem:[%s887 + $0x9c] sm:$0xf]
      %v1646 = vld [vmem:[%s887 + $0xa0] sm:$0xf]
      %v1647 = vld [vmem:[%s887 + $0xa8] sm:$0xf]
      %v1648 = vld [vmem:[%s887 + $0xac] sm:$0xf]
      %v1649 = vld [vmem:[%s887 + $0xb4] sm:$0xf]
      %v1650 = vld [vmem:[%s887 + $0xb8] sm:$0xf]
      %v1651 = vld [vmem:[%s887 + $0x8] sm:$0x1]
      %v1652 = vld [vmem:[%s887 + $0x14] sm:$0x1]
      %v1653 = vld [vmem:[%s887 + $0x20] sm:$0x1]
      %v1654 = vld [vmem:[%s887 + $0x2c] sm:$0x1]
      %v1655 = vld [vmem:[%s887 + $0x38] sm:$0x1]
      %v1656 = vld [vmem:[%s887 + $0x44] sm:$0x1]
      %v1657 = vld [vmem:[%s887 + $0x50] sm:$0x1]
      %v1658 = vld [vmem:[%s887 + $0x5c] sm:$0x1]
      %v1659 = vld [vmem:[%s887 + $0x68] sm:$0x1]
      %v1660 = vld [vmem:[%s887 + $0x74] sm:$0x1]
      %v1661 = vld [vmem:[%s887 + $0x80] sm:$0x1]
      %v1662 = vld [vmem:[%s887 + $0x8c] sm:$0x1]
      %v1663 = vld [vmem:[%s887 + $0x98] sm:$0x1]
      %v1664 = vld [vmem:[%s887 + $0xa4] sm:$0x1]
      %v1665 = vld [vmem:[%s887 + $0xb0] sm:$0x1]
      %v1666 = vld [vmem:[%s887 + $0xbc] sm:$0x1]
      %v1668 = vshrl.u32 %v1619, 16
      %v1670 = vrot.slane %v1668, 4
      %v1671 = vshll.u32 %v1619, 16
      %v1673 = vrot.slane %v1671, 5
      %v1674 = vor.u32 %v1670, %v1673
      %v1675 = vrot.slane %v1674, 4
      %v1677 = vshll.u32 %v1620, 16
      %v1679 = vrot.slane %v1677, 5
      %v1680 = vsel %vm1055, %v1675, %v1679
      %v1681 = vshrl.u32 %v1620, 16
      %v1683 = vrot.slane %v1681, 4
      %v1684 = vor.u32 %v1683, %v1679
      %v1685 = vrot.slane %v1684, 4
      %v1687 = vshll.u32 %v1651, 16
      %v1689 = vrot.slane %v1687, 5
      %v1690 = vsel %vm1055, %v1685, %v1689
      %v1692 = vshrl.u32 %v1621, 16
      %v1694 = vrot.slane %v1692, 4
      %v1695 = vshll.u32 %v1621, 16
      %v1697 = vrot.slane %v1695, 5
      %v1698 = vor.u32 %v1694, %v1697
      %v1699 = vrot.slane %v1698, 4
      %v1701 = vshll.u32 %v1622, 16
      %v1703 = vrot.slane %v1701, 5
      %v1704 = vsel %vm1055, %v1699, %v1703
      %v1705 = vshrl.u32 %v1622, 16
      %v1707 = vrot.slane %v1705, 4
      %v1708 = vor.u32 %v1707, %v1703
      %v1709 = vrot.slane %v1708, 4
      %v1711 = vshll.u32 %v1652, 16
      %v1713 = vrot.slane %v1711, 5
      %v1714 = vsel %vm1055, %v1709, %v1713
      %v1716 = vshrl.u32 %v1623, 16
      %v1718 = vrot.slane %v1716, 4
      %v1719 = vshll.u32 %v1623, 16
      %v1721 = vrot.slane %v1719, 5
      %v1722 = vor.u32 %v1718, %v1721
      %v1723 = vrot.slane %v1722, 4
      %v1725 = vshll.u32 %v1624, 16
      %v1727 = vrot.slane %v1725, 5
      %v1728 = vsel %vm1055, %v1723, %v1727
      %v1729 = vshrl.u32 %v1624, 16
      %v1731 = vrot.slane %v1729, 4
      %v1732 = vor.u32 %v1731, %v1727
      %v1733 = vrot.slane %v1732, 4
      %v1735 = vshll.u32 %v1653, 16
      %v1737 = vrot.slane %v1735, 5
      %v1738 = vsel %vm1055, %v1733, %v1737
      %v1740 = vshrl.u32 %v1625, 16
      %v1742 = vrot.slane %v1740, 4
      %v1743 = vshll.u32 %v1625, 16
      %v1745 = vrot.slane %v1743, 5
      %v1746 = vor.u32 %v1742, %v1745
      %v1747 = vrot.slane %v1746, 4
      %v1749 = vshll.u32 %v1626, 16
      %v1751 = vrot.slane %v1749, 5
      %v1752 = vsel %vm1055, %v1747, %v1751
      %v1753 = vshrl.u32 %v1626, 16
      %v1755 = vrot.slane %v1753, 4
      %v1756 = vor.u32 %v1755, %v1751
      %v1757 = vrot.slane %v1756, 4
      %v1759 = vshll.u32 %v1654, 16
      %v1761 = vrot.slane %v1759, 5
      %v1762 = vsel %vm1055, %v1757, %v1761
      %v1764 = vshrl.u32 %v1627, 16
      %v1766 = vrot.slane %v1764, 4
      %v1767 = vshll.u32 %v1627, 16
      %v1769 = vrot.slane %v1767, 5
      %v1770 = vor.u32 %v1766, %v1769
      %v1771 = vrot.slane %v1770, 4
      %v1773 = vshll.u32 %v1628, 16
      %v1775 = vrot.slane %v1773, 5
      %v1776 = vsel %vm1055, %v1771, %v1775
      %v1777 = vshrl.u32 %v1628, 16
      %v1779 = vrot.slane %v1777, 4
      %v1780 = vor.u32 %v1779, %v1775
      %v1781 = vrot.slane %v1780, 4
      %v1783 = vshll.u32 %v1655, 16
      %v1785 = vrot.slane %v1783, 5
      %v1786 = vsel %vm1055, %v1781, %v1785
      %v1788 = vshrl.u32 %v1629, 16
      %v1790 = vrot.slane %v1788, 4
      %v1791 = vshll.u32 %v1629, 16
      %v1793 = vrot.slane %v1791, 5
      %v1794 = vor.u32 %v1790, %v1793
      %v1795 = vrot.slane %v1794, 4
      %v1797 = vshll.u32 %v1630, 16
      %v1799 = vrot.slane %v1797, 5
      %v1800 = vsel %vm1055, %v1795, %v1799
      %v1801 = vshrl.u32 %v1630, 16
      %v1803 = vrot.slane %v1801, 4
      %v1804 = vor.u32 %v1803, %v1799
      %v1805 = vrot.slane %v1804, 4
      %v1807 = vshll.u32 %v1656, 16
      %v1809 = vrot.slane %v1807, 5
      %v1810 = vsel %vm1055, %v1805, %v1809
      %v1812 = vshrl.u32 %v1631, 16
      %v1814 = vrot.slane %v1812, 4
      %v1815 = vshll.u32 %v1631, 16
      %v1817 = vrot.slane %v1815, 5
      %v1818 = vor.u32 %v1814, %v1817
      %v1819 = vrot.slane %v1818, 4
      %v1821 = vshll.u32 %v1632, 16
      %v1823 = vrot.slane %v1821, 5
      %v1824 = vsel %vm1055, %v1819, %v1823
      %v1825 = vshrl.u32 %v1632, 16
      %v1827 = vrot.slane %v1825, 4
      %v1828 = vor.u32 %v1827, %v1823
      %v1829 = vrot.slane %v1828, 4
      %v1831 = vshll.u32 %v1657, 16
      %v1833 = vrot.slane %v1831, 5
      %v1834 = vsel %vm1055, %v1829, %v1833
      %v1836 = vshrl.u32 %v1633, 16
      %v1838 = vrot.slane %v1836, 4
      %v1839 = vshll.u32 %v1633, 16
      %v1841 = vrot.slane %v1839, 5
      %v1842 = vor.u32 %v1838, %v1841
      %v1843 = vrot.slane %v1842, 4
      %v1845 = vshll.u32 %v1634, 16
      %v1847 = vrot.slane %v1845, 5
      %v1848 = vsel %vm1055, %v1843, %v1847
      %v1849 = vshrl.u32 %v1634, 16
      %v1851 = vrot.slane %v1849, 4
      %v1852 = vor.u32 %v1851, %v1847
      %v1853 = vrot.slane %v1852, 4
      %v1855 = vshll.u32 %v1658, 16
      %v1857 = vrot.slane %v1855, 5
      %v1858 = vsel %vm1055, %v1853, %v1857
      %v1860 = vshrl.u32 %v1635, 16
      %v1862 = vrot.slane %v1860, 4
      %v1863 = vshll.u32 %v1635, 16
      %v1865 = vrot.slane %v1863, 5
      %v1866 = vor.u32 %v1862, %v1865
      %v1867 = vrot.slane %v1866, 4
      %v1869 = vshll.u32 %v1636, 16
      %v1871 = vrot.slane %v1869, 5
      %v1872 = vsel %vm1055, %v1867, %v1871
      %v1873 = vshrl.u32 %v1636, 16
      %v1875 = vrot.slane %v1873, 4
      %v1876 = vor.u32 %v1875, %v1871
      %v1877 = vrot.slane %v1876, 4
      %v1879 = vshll.u32 %v1659, 16
      %v1881 = vrot.slane %v1879, 5
      %v1882 = vsel %vm1055, %v1877, %v1881
      %v1884 = vshrl.u32 %v1637, 16
      %v1886 = vrot.slane %v1884, 4
      %v1887 = vshll.u32 %v1637, 16
      %v1889 = vrot.slane %v1887, 5
      %v1890 = vor.u32 %v1886, %v1889
      %v1891 = vrot.slane %v1890, 4
      %v1893 = vshll.u32 %v1638, 16
      %v1895 = vrot.slane %v1893, 5
      %v1896 = vsel %vm1055, %v1891, %v1895
      %v1897 = vshrl.u32 %v1638, 16
      %v1899 = vrot.slane %v1897, 4
      %v1900 = vor.u32 %v1899, %v1895
      %v1901 = vrot.slane %v1900, 4
      %v1903 = vshll.u32 %v1660, 16
      %v1905 = vrot.slane %v1903, 5
      %v1906 = vsel %vm1055, %v1901, %v1905
      %v1908 = vshrl.u32 %v1639, 16
      %v1910 = vrot.slane %v1908, 4
      %v1911 = vshll.u32 %v1639, 16
      %v1913 = vrot.slane %v1911, 5
      %v1914 = vor.u32 %v1910, %v1913
      %v1915 = vrot.slane %v1914, 4
      %v1917 = vshll.u32 %v1640, 16
      %v1919 = vrot.slane %v1917, 5
      %v1920 = vsel %vm1055, %v1915, %v1919
      %v1921 = vshrl.u32 %v1640, 16
      %v1923 = vrot.slane %v1921, 4
      %v1924 = vor.u32 %v1923, %v1919
      %v1925 = vrot.slane %v1924, 4
      %v1927 = vshll.u32 %v1661, 16
      %v1929 = vrot.slane %v1927, 5
      %v1930 = vsel %vm1055, %v1925, %v1929
      %v1932 = vshrl.u32 %v1641, 16
      %v1934 = vrot.slane %v1932, 4
      %v1935 = vshll.u32 %v1641, 16
      %v1937 = vrot.slane %v1935, 5
      %v1938 = vor.u32 %v1934, %v1937
      %v1939 = vrot.slane %v1938, 4
      %v1941 = vshll.u32 %v1642, 16
      %v1943 = vrot.slane %v1941, 5
      %v1944 = vsel %vm1055, %v1939, %v1943
      %v1945 = vshrl.u32 %v1642, 16
      %v1947 = vrot.slane %v1945, 4
      %v1948 = vor.u32 %v1947, %v1943
      %v1949 = vrot.slane %v1948, 4
      %v1951 = vshll.u32 %v1662, 16
      %v1953 = vrot.slane %v1951, 5
      %v1954 = vsel %vm1055, %v1949, %v1953
      %v1956 = vshrl.u32 %v1643, 16
      %v1958 = vrot.slane %v1956, 4
      %v1959 = vshll.u32 %v1643, 16
      %v1961 = vrot.slane %v1959, 5
      %v1962 = vor.u32 %v1958, %v1961
      %v1963 = vrot.slane %v1962, 4
      %v1965 = vshll.u32 %v1644, 16
      %v1967 = vrot.slane %v1965, 5
      %v1968 = vsel %vm1055, %v1963, %v1967
      %v1969 = vshrl.u32 %v1644, 16
      %v1971 = vrot.slane %v1969, 4
      %v1972 = vor.u32 %v1971, %v1967
      %v1973 = vrot.slane %v1972, 4
      %v1975 = vshll.u32 %v1663, 16
      %v1977 = vrot.slane %v1975, 5
      %v1978 = vsel %vm1055, %v1973, %v1977
      %v1980 = vshrl.u32 %v1645, 16
      %v1982 = vrot.slane %v1980, 4
      %v1983 = vshll.u32 %v1645, 16
      %v1985 = vrot.slane %v1983, 5
      %v1986 = vor.u32 %v1982, %v1985
      %v1987 = vrot.slane %v1986, 4
      %v1989 = vshll.u32 %v1646, 16
      %v1991 = vrot.slane %v1989, 5
      %v1992 = vsel %vm1055, %v1987, %v1991
      %v1993 = vshrl.u32 %v1646, 16
      %v1995 = vrot.slane %v1993, 4
      %v1996 = vor.u32 %v1995, %v1991
      %v1997 = vrot.slane %v1996, 4
      %v1999 = vshll.u32 %v1664, 16
      %v2001 = vrot.slane %v1999, 5
      %v2002 = vsel %vm1055, %v1997, %v2001
      %v2004 = vshrl.u32 %v1647, 16
      %v2006 = vrot.slane %v2004, 4
      %v2007 = vshll.u32 %v1647, 16
      %v2009 = vrot.slane %v2007, 5
      %v2010 = vor.u32 %v2006, %v2009
      %v2011 = vrot.slane %v2010, 4
      %v2013 = vshll.u32 %v1648, 16
      %v2015 = vrot.slane %v2013, 5
      %v2016 = vsel %vm1055, %v2011, %v2015
      %v2017 = vshrl.u32 %v1648, 16
      %v2019 = vrot.slane %v2017, 4
      %v2020 = vor.u32 %v2019, %v2015
      %v2021 = vrot.slane %v2020, 4
      %v2023 = vshll.u32 %v1665, 16
      %v2025 = vrot.slane %v2023, 5
      %v2026 = vsel %vm1055, %v2021, %v2025
      %v2028 = vshrl.u32 %v1649, 16
      %v2030 = vrot.slane %v2028, 4
      %v2031 = vshll.u32 %v1649, 16
      %v2033 = vrot.slane %v2031, 5
      %v2034 = vor.u32 %v2030, %v2033
      %v2035 = vrot.slane %v2034, 4
      %v2037 = vshll.u32 %v1650, 16
      %v2039 = vrot.slane %v2037, 5
      %v2040 = vsel %vm1055, %v2035, %v2039
      %v2041 = vshrl.u32 %v1650, 16
      %v2043 = vrot.slane %v2041, 4
      %v2044 = vor.u32 %v2043, %v2039
      %v2045 = vrot.slane %v2044, 4
      %v2047 = vshll.u32 %v1666, 16
      %v2049 = vrot.slane %v2047, 5
      %v2050 = vsel %vm1055, %v2045, %v2049
      %v2051 = vld [vmem:[%s887] sm:$0xe]
      %v2052 = vld [vmem:[%s887 + $0xc] sm:$0xe]
      %v2053 = vld [vmem:[%s887 + $0x18] sm:$0xe]
      %v2054 = vld [vmem:[%s887 + $0x24] sm:$0xe]
      %v2055 = vld [vmem:[%s887 + $0x30] sm:$0xe]
      %v2056 = vld [vmem:[%s887 + $0x3c] sm:$0xe]
      %v2057 = vld [vmem:[%s887 + $0x48] sm:$0xe]
      %v2058 = vld [vmem:[%s887 + $0x54] sm:$0xe]
      %v2059 = vld [vmem:[%s887 + $0x60] sm:$0xe]
      %v2060 = vld [vmem:[%s887 + $0x6c] sm:$0xe]
      %v2061 = vld [vmem:[%s887 + $0x78] sm:$0xe]
      %v2062 = vld [vmem:[%s887 + $0x84] sm:$0xe]
      %v2063 = vld [vmem:[%s887 + $0x90] sm:$0xe]
      %v2064 = vld [vmem:[%s887 + $0x9c] sm:$0xe]
      %v2065 = vld [vmem:[%s887 + $0xa8] sm:$0xe]
      %v2066 = vld [vmem:[%s887 + $0xb4] sm:$0xe]
      %v2115 = vrot.slane %v2051, 5
      %v2116 = vrot.slane %v2115, 4
      %v2117 = vrot.slane %v1620, 5
      %v2118 = vsel %vm1506, %v2116, %v2117
      %v2119 = vrot.slane %v2117, 4
      %v2120 = vrot.slane %v1651, 5
      %v2121 = vsel %vm1506, %v2119, %v2120
      %v2122 = vrot.slane %v2052, 5
      %v2123 = vrot.slane %v2122, 4
      %v2124 = vrot.slane %v1622, 5
      %v2125 = vsel %vm1506, %v2123, %v2124
      %v2126 = vrot.slane %v2124, 4
      %v2127 = vrot.slane %v1652, 5
      %v2128 = vsel %vm1506, %v2126, %v2127
      %v2129 = vrot.slane %v2053, 5
      %v2130 = vrot.slane %v2129, 4
      %v2131 = vrot.slane %v1624, 5
      %v2132 = vsel %vm1506, %v2130, %v2131
      %v2133 = vrot.slane %v2131, 4
      %v2134 = vrot.slane %v1653, 5
      %v2135 = vsel %vm1506, %v2133, %v2134
      %v2136 = vrot.slane %v2054, 5
      %v2137 = vrot.slane %v2136, 4
      %v2138 = vrot.slane %v1626, 5
      %v2139 = vsel %vm1506, %v2137, %v2138
      %v2140 = vrot.slane %v2138, 4
      %v2141 = vrot.slane %v1654, 5
      %v2142 = vsel %vm1506, %v2140, %v2141
      %v2143 = vrot.slane %v2055, 5
      %v2144 = vrot.slane %v2143, 4
      %v2145 = vrot.slane %v1628, 5
      %v2146 = vsel %vm1506, %v2144, %v2145
      %v2147 = vrot.slane %v2145, 4
      %v2148 = vrot.slane %v1655, 5
      %v2149 = vsel %vm1506, %v2147, %v2148
      %v2150 = vrot.slane %v2056, 5
      %v2151 = vrot.slane %v2150, 4
      %v2152 = vrot.slane %v1630, 5
      %v2153 = vsel %vm1506, %v2151, %v2152
      %v2154 = vrot.slane %v2152, 4
      %v2155 = vrot.slane %v1656, 5
      %v2156 = vsel %vm1506, %v2154, %v2155
      %v2157 = vrot.slane %v2057, 5
      %v2158 = vrot.slane %v2157, 4
      %v2159 = vrot.slane %v1632, 5
      %v2160 = vsel %vm1506, %v2158, %v2159
      %v2161 = vrot.slane %v2159, 4
      %v2162 = vrot.slane %v1657, 5
      %v2163 = vsel %vm1506, %v2161, %v2162
      %v2164 = vrot.slane %v2058, 5
      %v2165 = vrot.slane %v2164, 4
      %v2166 = vrot.slane %v1634, 5
      %v2167 = vsel %vm1506, %v2165, %v2166
      %v2168 = vrot.slane %v2166, 4
      %v2169 = vrot.slane %v1658, 5
      %v2170 = vsel %vm1506, %v2168, %v2169
      %v2171 = vrot.slane %v2059, 5
      %v2172 = vrot.slane %v2171, 4
      %v2173 = vrot.slane %v1636, 5
      %v2174 = vsel %vm1506, %v2172, %v2173
      %v2175 = vrot.slane %v2173, 4
      %v2176 = vrot.slane %v1659, 5
      %v2177 = vsel %vm1506, %v2175, %v2176
      %v2178 = vrot.slane %v2060, 5
      %v2179 = vrot.slane %v2178, 4
      %v2180 = vrot.slane %v1638, 5
      %v2181 = vsel %vm1506, %v2179, %v2180
      %v2182 = vrot.slane %v2180, 4
      %v2183 = vrot.slane %v1660, 5
      %v2184 = vsel %vm1506, %v2182, %v2183
      %v2185 = vrot.slane %v2061, 5
      %v2186 = vrot.slane %v2185, 4
      %v2187 = vrot.slane %v1640, 5
      %v2188 = vsel %vm1506, %v2186, %v2187
      %v2189 = vrot.slane %v2187, 4
      %v2190 = vrot.slane %v1661, 5
      %v2191 = vsel %vm1506, %v2189, %v2190
      %v2192 = vrot.slane %v2062, 5
      %v2193 = vrot.slane %v2192, 4
      %v2194 = vrot.slane %v1642, 5
      %v2195 = vsel %vm1506, %v2193, %v2194
      %v2196 = vrot.slane %v2194, 4
      %v2197 = vrot.slane %v1662, 5
      %v2198 = vsel %vm1506, %v2196, %v2197
      %v2199 = vrot.slane %v2063, 5
      %v2200 = vrot.slane %v2199, 4
      %v2201 = vrot.slane %v1644, 5
      %v2202 = vsel %vm1506, %v2200, %v2201
      %v2203 = vrot.slane %v2201, 4
      %v2204 = vrot.slane %v1663, 5
      %v2205 = vsel %vm1506, %v2203, %v2204
      %v2206 = vrot.slane %v2064, 5
      %v2207 = vrot.slane %v2206, 4
      %v2208 = vrot.slane %v1646, 5
      %v2209 = vsel %vm1506, %v2207, %v2208
      %v2210 = vrot.slane %v2208, 4
      %v2211 = vrot.slane %v1664, 5
      %v2212 = vsel %vm1506, %v2210, %v2211
      %v2213 = vrot.slane %v2065, 5
      %v2214 = vrot.slane %v2213, 4
      %v2215 = vrot.slane %v1648, 5
      %v2216 = vsel %vm1506, %v2214, %v2215
      %v2217 = vrot.slane %v2215, 4
      %v2218 = vrot.slane %v1665, 5
      %v2219 = vsel %vm1506, %v2217, %v2218
      %v2220 = vrot.slane %v2066, 5
      %v2221 = vrot.slane %v2220, 4
      %v2222 = vrot.slane %v1650, 5
      %v2223 = vsel %vm1506, %v2221, %v2222
      %v2224 = vrot.slane %v2222, 4
      %v2225 = vrot.slane %v1666, 5
      %v2226 = vsel %vm1506, %v2224, %v2225
      %s2227 = scalar_lea.vmem [#allocation2], 24
      %v2228 = vld [vmem:[%s2227] sm:$0xf]
      %v2229 = vld [vmem:[%s2227 + $0x4] sm:$0xf]
      %v2230 = vld [vmem:[%s2227 + $0xc] sm:$0xf]
      %v2231 = vld [vmem:[%s2227 + $0x10] sm:$0xf]
      %v2232 = vld [vmem:[%s2227 + $0x18] sm:$0xf]
      %v2233 = vld [vmem:[%s2227 + $0x1c] sm:$0xf]
      %v2234 = vld [vmem:[%s2227 + $0x24] sm:$0xf]
      %v2235 = vld [vmem:[%s2227 + $0x28] sm:$0xf]
      %v2236 = vld [vmem:[%s2227 + $0x30] sm:$0xf]
      %v2237 = vld [vmem:[%s2227 + $0x34] sm:$0xf]
      %v2238 = vld [vmem:[%s2227 + $0x3c] sm:$0xf]
      %v2239 = vld [vmem:[%s2227 + $0x40] sm:$0xf]
      %v2240 = vld [vmem:[%s2227 + $0x48] sm:$0xf]
      %v2241 = vld [vmem:[%s2227 + $0x4c] sm:$0xf]
      %v2242 = vld [vmem:[%s2227 + $0x54] sm:$0xf]
      %v2243 = vld [vmem:[%s2227 + $0x58] sm:$0xf]
      %v2244 = vld [vmem:[%s2227 + $0x60] sm:$0xf]
      %v2245 = vld [vmem:[%s2227 + $0x64] sm:$0xf]
      %v2246 = vld [vmem:[%s2227 + $0x6c] sm:$0xf]
      %v2247 = vld [vmem:[%s2227 + $0x70] sm:$0xf]
      %v2248 = vld [vmem:[%s2227 + $0x78] sm:$0xf]
      %v2249 = vld [vmem:[%s2227 + $0x7c] sm:$0xf]
      %v2250 = vld [vmem:[%s2227 + $0x84] sm:$0xf]
      %v2251 = vld [vmem:[%s2227 + $0x88] sm:$0xf]
      %v2252 = vld [vmem:[%s2227 + $0x90] sm:$0xf]
      %v2253 = vld [vmem:[%s2227 + $0x94] sm:$0xf]
      %v2254 = vld [vmem:[%s2227 + $0x9c] sm:$0xf]
      %v2255 = vld [vmem:[%s2227 + $0xa0] sm:$0xf]
      %v2256 = vld [vmem:[%s2227 + $0xa8] sm:$0xf]
      %v2257 = vld [vmem:[%s2227 + $0xac] sm:$0xf]
      %v2258 = vld [vmem:[%s2227 + $0xb4] sm:$0xf]
      %v2259 = vld [vmem:[%s2227 + $0xb8] sm:$0xf]
      %v2260 = vld [vmem:[%s2227 + $0x8] sm:$0x1]
      %v2261 = vld [vmem:[%s2227 + $0x14] sm:$0x1]
      %v2262 = vld [vmem:[%s2227 + $0x20] sm:$0x1]
      %v2263 = vld [vmem:[%s2227 + $0x2c] sm:$0x1]
      %v2264 = vld [vmem:[%s2227 + $0x38] sm:$0x1]
      %v2265 = vld [vmem:[%s2227 + $0x44] sm:$0x1]
      %v2266 = vld [vmem:[%s2227 + $0x50] sm:$0x1]
      %v2267 = vld [vmem:[%s2227 + $0x5c] sm:$0x1]
      %v2268 = vld [vmem:[%s2227 + $0x68] sm:$0x1]
      %v2269 = vld [vmem:[%s2227 + $0x74] sm:$0x1]
      %v2270 = vld [vmem:[%s2227 + $0x80] sm:$0x1]
      %v2271 = vld [vmem:[%s2227 + $0x8c] sm:$0x1]
      %v2272 = vld [vmem:[%s2227 + $0x98] sm:$0x1]
      %v2273 = vld [vmem:[%s2227 + $0xa4] sm:$0x1]
      %v2274 = vld [vmem:[%s2227 + $0xb0] sm:$0x1]
      %v2275 = vld [vmem:[%s2227 + $0xbc] sm:$0x1]
      %v2277 = vshrl.u32 %v2228, 16
      %v2279 = vrot.slane %v2277, 4
      %v2280 = vshll.u32 %v2228, 16
      %v2282 = vrot.slane %v2280, 5
      %v2283 = vor.u32 %v2279, %v2282
      %v2284 = vrot.slane %v2283, 4
      %v2286 = vshll.u32 %v2229, 16
      %v2288 = vrot.slane %v2286, 5
      %v2289 = vsel %vm1055, %v2284, %v2288
      %v2290 = vshrl.u32 %v2229, 16
      %v2292 = vrot.slane %v2290, 4
      %v2293 = vor.u32 %v2292, %v2288
      %v2294 = vrot.slane %v2293, 4
      %v2296 = vshll.u32 %v2260, 16
      %v2298 = vrot.slane %v2296, 5
      %v2299 = vsel %vm1055, %v2294, %v2298
      %v2301 = vshrl.u32 %v2230, 16
      %v2303 = vrot.slane %v2301, 4
      %v2304 = vshll.u32 %v2230, 16
      %v2306 = vrot.slane %v2304, 5
      %v2307 = vor.u32 %v2303, %v2306
      %v2308 = vrot.slane %v2307, 4
      %v2310 = vshll.u32 %v2231, 16
      %v2312 = vrot.slane %v2310, 5
      %v2313 = vsel %vm1055, %v2308, %v2312
      %v2314 = vshrl.u32 %v2231, 16
      %v2316 = vrot.slane %v2314, 4
      %v2317 = vor.u32 %v2316, %v2312
      %v2318 = vrot.slane %v2317, 4
      %v2320 = vshll.u32 %v2261, 16
      %v2322 = vrot.slane %v2320, 5
      %v2323 = vsel %vm1055, %v2318, %v2322
      %v2325 = vshrl.u32 %v2232, 16
      %v2327 = vrot.slane %v2325, 4
      %v2328 = vshll.u32 %v2232, 16
      %v2330 = vrot.slane %v2328, 5
      %v2331 = vor.u32 %v2327, %v2330
      %v2332 = vrot.slane %v2331, 4
      %v2334 = vshll.u32 %v2233, 16
      %v2336 = vrot.slane %v2334, 5
      %v2337 = vsel %vm1055, %v2332, %v2336
      %v2338 = vshrl.u32 %v2233, 16
      %v2340 = vrot.slane %v2338, 4
      %v2341 = vor.u32 %v2340, %v2336
      %v2342 = vrot.slane %v2341, 4
      %v2344 = vshll.u32 %v2262, 16
      %v2346 = vrot.slane %v2344, 5
      %v2347 = vsel %vm1055, %v2342, %v2346
      %v2349 = vshrl.u32 %v2234, 16
      %v2351 = vrot.slane %v2349, 4
      %v2352 = vshll.u32 %v2234, 16
      %v2354 = vrot.slane %v2352, 5
      %v2355 = vor.u32 %v2351, %v2354
      %v2356 = vrot.slane %v2355, 4
      %v2358 = vshll.u32 %v2235, 16
      %v2360 = vrot.slane %v2358, 5
      %v2361 = vsel %vm1055, %v2356, %v2360
      %v2362 = vshrl.u32 %v2235, 16
      %v2364 = vrot.slane %v2362, 4
      %v2365 = vor.u32 %v2364, %v2360
      %v2366 = vrot.slane %v2365, 4
      %v2368 = vshll.u32 %v2263, 16
      %v2370 = vrot.slane %v2368, 5
      %v2371 = vsel %vm1055, %v2366, %v2370
      %v2373 = vshrl.u32 %v2236, 16
      %v2375 = vrot.slane %v2373, 4
      %v2376 = vshll.u32 %v2236, 16
      %v2378 = vrot.slane %v2376, 5
      %v2379 = vor.u32 %v2375, %v2378
      %v2380 = vrot.slane %v2379, 4
      %v2382 = vshll.u32 %v2237, 16
      %v2384 = vrot.slane %v2382, 5
      %v2385 = vsel %vm1055, %v2380, %v2384
      %v2386 = vshrl.u32 %v2237, 16
      %v2388 = vrot.slane %v2386, 4
      %v2389 = vor.u32 %v2388, %v2384
      %v2390 = vrot.slane %v2389, 4
      %v2392 = vshll.u32 %v2264, 16
      %v2394 = vrot.slane %v2392, 5
      %v2395 = vsel %vm1055, %v2390, %v2394
      %v2397 = vshrl.u32 %v2238, 16
      %v2399 = vrot.slane %v2397, 4
      %v2400 = vshll.u32 %v2238, 16
      %v2402 = vrot.slane %v2400, 5
      %v2403 = vor.u32 %v2399, %v2402
      %v2404 = vrot.slane %v2403, 4
      %v2406 = vshll.u32 %v2239, 16
      %v2408 = vrot.slane %v2406, 5
      %v2409 = vsel %vm1055, %v2404, %v2408
      %v2410 = vshrl.u32 %v2239, 16
      %v2412 = vrot.slane %v2410, 4
      %v2413 = vor.u32 %v2412, %v2408
      %v2414 = vrot.slane %v2413, 4
      %v2416 = vshll.u32 %v2265, 16
      %v2418 = vrot.slane %v2416, 5
      %v2419 = vsel %vm1055, %v2414, %v2418
      %v2421 = vshrl.u32 %v2240, 16
      %v2423 = vrot.slane %v2421, 4
      %v2424 = vshll.u32 %v2240, 16
      %v2426 = vrot.slane %v2424, 5
      %v2427 = vor.u32 %v2423, %v2426
      %v2428 = vrot.slane %v2427, 4
      %v2430 = vshll.u32 %v2241, 16
      %v2432 = vrot.slane %v2430, 5
      %v2433 = vsel %vm1055, %v2428, %v2432
      %v2434 = vshrl.u32 %v2241, 16
      %v2436 = vrot.slane %v2434, 4
      %v2437 = vor.u32 %v2436, %v2432
      %v2438 = vrot.slane %v2437, 4
      %v2440 = vshll.u32 %v2266, 16
      %v2442 = vrot.slane %v2440, 5
      %v2443 = vsel %vm1055, %v2438, %v2442
      %v2445 = vshrl.u32 %v2242, 16
      %v2447 = vrot.slane %v2445, 4
      %v2448 = vshll.u32 %v2242, 16
      %v2450 = vrot.slane %v2448, 5
      %v2451 = vor.u32 %v2447, %v2450
      %v2452 = vrot.slane %v2451, 4
      %v2454 = vshll.u32 %v2243, 16
      %v2456 = vrot.slane %v2454, 5
      %v2457 = vsel %vm1055, %v2452, %v2456
      %v2458 = vshrl.u32 %v2243, 16
      %v2460 = vrot.slane %v2458, 4
      %v2461 = vor.u32 %v2460, %v2456
      %v2462 = vrot.slane %v2461, 4
      %v2464 = vshll.u32 %v2267, 16
      %v2466 = vrot.slane %v2464, 5
      %v2467 = vsel %vm1055, %v2462, %v2466
      %v2469 = vshrl.u32 %v2244, 16
      %v2471 = vrot.slane %v2469, 4
      %v2472 = vshll.u32 %v2244, 16
      %v2474 = vrot.slane %v2472, 5
      %v2475 = vor.u32 %v2471, %v2474
      %v2476 = vrot.slane %v2475, 4
      %v2478 = vshll.u32 %v2245, 16
      %v2480 = vrot.slane %v2478, 5
      %v2481 = vsel %vm1055, %v2476, %v2480
      %v2482 = vshrl.u32 %v2245, 16
      %v2484 = vrot.slane %v2482, 4
      %v2485 = vor.u32 %v2484, %v2480
      %v2486 = vrot.slane %v2485, 4
      %v2488 = vshll.u32 %v2268, 16
      %v2490 = vrot.slane %v2488, 5
      %v2491 = vsel %vm1055, %v2486, %v2490
      %v2493 = vshrl.u32 %v2246, 16
      %v2495 = vrot.slane %v2493, 4
      %v2496 = vshll.u32 %v2246, 16
      %v2498 = vrot.slane %v2496, 5
      %v2499 = vor.u32 %v2495, %v2498
      %v2500 = vrot.slane %v2499, 4
      %v2502 = vshll.u32 %v2247, 16
      %v2504 = vrot.slane %v2502, 5
      %v2505 = vsel %vm1055, %v2500, %v2504
      %v2506 = vshrl.u32 %v2247, 16
      %v2508 = vrot.slane %v2506, 4
      %v2509 = vor.u32 %v2508, %v2504
      %v2510 = vrot.slane %v2509, 4
      %v2512 = vshll.u32 %v2269, 16
      %v2514 = vrot.slane %v2512, 5
      %v2515 = vsel %vm1055, %v2510, %v2514
      %v2517 = vshrl.u32 %v2248, 16
      %v2519 = vrot.slane %v2517, 4
      %v2520 = vshll.u32 %v2248, 16
      %v2522 = vrot.slane %v2520, 5
      %v2523 = vor.u32 %v2519, %v2522
      %v2524 = vrot.slane %v2523, 4
      %v2526 = vshll.u32 %v2249, 16
      %v2528 = vrot.slane %v2526, 5
      %v2529 = vsel %vm1055, %v2524, %v2528
      %v2530 = vshrl.u32 %v2249, 16
      %v2532 = vrot.slane %v2530, 4
      %v2533 = vor.u32 %v2532, %v2528
      %v2534 = vrot.slane %v2533, 4
      %v2536 = vshll.u32 %v2270, 16
      %v2538 = vrot.slane %v2536, 5
      %v2539 = vsel %vm1055, %v2534, %v2538
      %v2541 = vshrl.u32 %v2250, 16
      %v2543 = vrot.slane %v2541, 4
      %v2544 = vshll.u32 %v2250, 16
      %v2546 = vrot.slane %v2544, 5
      %v2547 = vor.u32 %v2543, %v2546
      %v2548 = vrot.slane %v2547, 4
      %v2550 = vshll.u32 %v2251, 16
      %v2552 = vrot.slane %v2550, 5
      %v2553 = vsel %vm1055, %v2548, %v2552
      %v2554 = vshrl.u32 %v2251, 16
      %v2556 = vrot.slane %v2554, 4
      %v2557 = vor.u32 %v2556, %v2552
      %v2558 = vrot.slane %v2557, 4
      %v2560 = vshll.u32 %v2271, 16
      %v2562 = vrot.slane %v2560, 5
      %v2563 = vsel %vm1055, %v2558, %v2562
      %v2565 = vshrl.u32 %v2252, 16
      %v2567 = vrot.slane %v2565, 4
      %v2568 = vshll.u32 %v2252, 16
      %v2570 = vrot.slane %v2568, 5
      %v2571 = vor.u32 %v2567, %v2570
      %v2572 = vrot.slane %v2571, 4
      %v2574 = vshll.u32 %v2253, 16
      %v2576 = vrot.slane %v2574, 5
      %v2577 = vsel %vm1055, %v2572, %v2576
      %v2578 = vshrl.u32 %v2253, 16
      %v2580 = vrot.slane %v2578, 4
      %v2581 = vor.u32 %v2580, %v2576
      %v2582 = vrot.slane %v2581, 4
      %v2584 = vshll.u32 %v2272, 16
      %v2586 = vrot.slane %v2584, 5
      %v2587 = vsel %vm1055, %v2582, %v2586
      %v2589 = vshrl.u32 %v2254, 16
      %v2591 = vrot.slane %v2589, 4
      %v2592 = vshll.u32 %v2254, 16
      %v2594 = vrot.slane %v2592, 5
      %v2595 = vor.u32 %v2591, %v2594
      %v2596 = vrot.slane %v2595, 4
      %v2598 = vshll.u32 %v2255, 16
      %v2600 = vrot.slane %v2598, 5
      %v2601 = vsel %vm1055, %v2596, %v2600
      %v2602 = vshrl.u32 %v2255, 16
      %v2604 = vrot.slane %v2602, 4
      %v2605 = vor.u32 %v2604, %v2600
      %v2606 = vrot.slane %v2605, 4
      %v2608 = vshll.u32 %v2273, 16
      %v2610 = vrot.slane %v2608, 5
      %v2611 = vsel %vm1055, %v2606, %v2610
      %v2613 = vshrl.u32 %v2256, 16
      %v2615 = vrot.slane %v2613, 4
      %v2616 = vshll.u32 %v2256, 16
      %v2618 = vrot.slane %v2616, 5
      %v2619 = vor.u32 %v2615, %v2618
      %v2620 = vrot.slane %v2619, 4
      %v2622 = vshll.u32 %v2257, 16
      %v2624 = vrot.slane %v2622, 5
      %v2625 = vsel %vm1055, %v2620, %v2624
      %v2626 = vshrl.u32 %v2257, 16
      %v2628 = vrot.slane %v2626, 4
      %v2629 = vor.u32 %v2628, %v2624
      %v2630 = vrot.slane %v2629, 4
      %v2632 = vshll.u32 %v2274, 16
      %v2634 = vrot.slane %v2632, 5
      %v2635 = vsel %vm1055, %v2630, %v2634
      %v2637 = vshrl.u32 %v2258, 16
      %v2639 = vrot.slane %v2637, 4
      %v2640 = vshll.u32 %v2258, 16
      %v2642 = vrot.slane %v2640, 5
      %v2643 = vor.u32 %v2639, %v2642
      %v2644 = vrot.slane %v2643, 4
      %v2646 = vshll.u32 %v2259, 16
      %v2648 = vrot.slane %v2646, 5
      %v2649 = vsel %vm1055, %v2644, %v2648
      %v2650 = vshrl.u32 %v2259, 16
      %v2652 = vrot.slane %v2650, 4
      %v2653 = vor.u32 %v2652, %v2648
      %v2654 = vrot.slane %v2653, 4
      %v2656 = vshll.u32 %v2275, 16
      %v2658 = vrot.slane %v2656, 5
      %v2659 = vsel %vm1055, %v2654, %v2658
      %v2660 = vld [vmem:[%s2227] sm:$0xe]
      %v2661 = vld [vmem:[%s2227 + $0xc] sm:$0xe]
      %v2662 = vld [vmem:[%s2227 + $0x18] sm:$0xe]
      %v2663 = vld [vmem:[%s2227 + $0x24] sm:$0xe]
      %v2664 = vld [vmem:[%s2227 + $0x30] sm:$0xe]
      %v2665 = vld [vmem:[%s2227 + $0x3c] sm:$0xe]
      %v2666 = vld [vmem:[%s2227 + $0x48] sm:$0xe]
      %v2667 = vld [vmem:[%s2227 + $0x54] sm:$0xe]
      %v2668 = vld [vmem:[%s2227 + $0x60] sm:$0xe]
      %v2669 = vld [vmem:[%s2227 + $0x6c] sm:$0xe]
      %v2670 = vld [vmem:[%s2227 + $0x78] sm:$0xe]
      %v2671 = vld [vmem:[%s2227 + $0x84] sm:$0xe]
      %v2672 = vld [vmem:[%s2227 + $0x90] sm:$0xe]
      %v2673 = vld [vmem:[%s2227 + $0x9c] sm:$0xe]
      %v2674 = vld [vmem:[%s2227 + $0xa8] sm:$0xe]
      %v2675 = vld [vmem:[%s2227 + $0xb4] sm:$0xe]
      %v2724 = vrot.slane %v2660, 5
      %v2725 = vrot.slane %v2724, 4
      %v2726 = vrot.slane %v2229, 5
      %v2727 = vsel %vm1506, %v2725, %v2726
      %v2728 = vrot.slane %v2726, 4
      %v2729 = vrot.slane %v2260, 5
      %v2730 = vsel %vm1506, %v2728, %v2729
      %v2731 = vrot.slane %v2661, 5
      %v2732 = vrot.slane %v2731, 4
      %v2733 = vrot.slane %v2231, 5
      %v2734 = vsel %vm1506, %v2732, %v2733
      %v2735 = vrot.slane %v2733, 4
      %v2736 = vrot.slane %v2261, 5
      %v2737 = vsel %vm1506, %v2735, %v2736
      %v2738 = vrot.slane %v2662, 5
      %v2739 = vrot.slane %v2738, 4
      %v2740 = vrot.slane %v2233, 5
      %v2741 = vsel %vm1506, %v2739, %v2740
      %v2742 = vrot.slane %v2740, 4
      %v2743 = vrot.slane %v2262, 5
      %v2744 = vsel %vm1506, %v2742, %v2743
      %v2745 = vrot.slane %v2663, 5
      %v2746 = vrot.slane %v2745, 4
      %v2747 = vrot.slane %v2235, 5
      %v2748 = vsel %vm1506, %v2746, %v2747
      %v2749 = vrot.slane %v2747, 4
      %v2750 = vrot.slane %v2263, 5
      %v2751 = vsel %vm1506, %v2749, %v2750
      %v2752 = vrot.slane %v2664, 5
      %v2753 = vrot.slane %v2752, 4
      %v2754 = vrot.slane %v2237, 5
      %v2755 = vsel %vm1506, %v2753, %v2754
      %v2756 = vrot.slane %v2754, 4
      %v2757 = vrot.slane %v2264, 5
      %v2758 = vsel %vm1506, %v2756, %v2757
      %v2759 = vrot.slane %v2665, 5
      %v2760 = vrot.slane %v2759, 4
      %v2761 = vrot.slane %v2239, 5
      %v2762 = vsel %vm1506, %v2760, %v2761
      %v2763 = vrot.slane %v2761, 4
      %v2764 = vrot.slane %v2265, 5
      %v2765 = vsel %vm1506, %v2763, %v2764
      %v2766 = vrot.slane %v2666, 5
      %v2767 = vrot.slane %v2766, 4
      %v2768 = vrot.slane %v2241, 5
      %v2769 = vsel %vm1506, %v2767, %v2768
      %v2770 = vrot.slane %v2768, 4
      %v2771 = vrot.slane %v2266, 5
      %v2772 = vsel %vm1506, %v2770, %v2771
      %v2773 = vrot.slane %v2667, 5
      %v2774 = vrot.slane %v2773, 4
      %v2775 = vrot.slane %v2243, 5
      %v2776 = vsel %vm1506, %v2774, %v2775
      %v2777 = vrot.slane %v2775, 4
      %v2778 = vrot.slane %v2267, 5
      %v2779 = vsel %vm1506, %v2777, %v2778
      %v2780 = vrot.slane %v2668, 5
      %v2781 = vrot.slane %v2780, 4
      %v2782 = vrot.slane %v2245, 5
      %v2783 = vsel %vm1506, %v2781, %v2782
      %v2784 = vrot.slane %v2782, 4
      %v2785 = vrot.slane %v2268, 5
      %v2786 = vsel %vm1506, %v2784, %v2785
      %v2787 = vrot.slane %v2669, 5
      %v2788 = vrot.slane %v2787, 4
      %v2789 = vrot.slane %v2247, 5
      %v2790 = vsel %vm1506, %v2788, %v2789
      %v2791 = vrot.slane %v2789, 4
      %v2792 = vrot.slane %v2269, 5
      %v2793 = vsel %vm1506, %v2791, %v2792
      %v2794 = vrot.slane %v2670, 5
      %v2795 = vrot.slane %v2794, 4
      %v2796 = vrot.slane %v2249, 5
      %v2797 = vsel %vm1506, %v2795, %v2796
      %v2798 = vrot.slane %v2796, 4
      %v2799 = vrot.slane %v2270, 5
      %v2800 = vsel %vm1506, %v2798, %v2799
      %v2801 = vrot.slane %v2671, 5
      %v2802 = vrot.slane %v2801, 4
      %v2803 = vrot.slane %v2251, 5
      %v2804 = vsel %vm1506, %v2802, %v2803
      %v2805 = vrot.slane %v2803, 4
      %v2806 = vrot.slane %v2271, 5
      %v2807 = vsel %vm1506, %v2805, %v2806
      %v2808 = vrot.slane %v2672, 5
      %v2809 = vrot.slane %v2808, 4
      %v2810 = vrot.slane %v2253, 5
      %v2811 = vsel %vm1506, %v2809, %v2810
      %v2812 = vrot.slane %v2810, 4
      %v2813 = vrot.slane %v2272, 5
      %v2814 = vsel %vm1506, %v2812, %v2813
      %v2815 = vrot.slane %v2673, 5
      %v2816 = vrot.slane %v2815, 4
      %v2817 = vrot.slane %v2255, 5
      %v2818 = vsel %vm1506, %v2816, %v2817
      %v2819 = vrot.slane %v2817, 4
      %v2820 = vrot.slane %v2273, 5
      %v2821 = vsel %vm1506, %v2819, %v2820
      %v2822 = vrot.slane %v2674, 5
      %v2823 = vrot.slane %v2822, 4
      %v2824 = vrot.slane %v2257, 5
      %v2825 = vsel %vm1506, %v2823, %v2824
      %v2826 = vrot.slane %v2824, 4
      %v2827 = vrot.slane %v2274, 5
      %v2828 = vsel %vm1506, %v2826, %v2827
      %v2829 = vrot.slane %v2675, 5
      %v2830 = vrot.slane %v2829, 4
      %v2831 = vrot.slane %v2259, 5
      %v2832 = vsel %vm1506, %v2830, %v2831
      %v2833 = vrot.slane %v2831, 4
      %v2834 = vrot.slane %v2275, 5
      %v2835 = vsel %vm1506, %v2833, %v2834
      %v2852 = vunpack.c.l.b16 %v1005
      %v2853 = vunpack.c.l.b16 %v1006
      %v2854 = vunpack.c.l.b16 %v1007
      %v2855 = vunpack.c.l.b16 %v1008
      %v2856 = vunpack.c.l.b16 %v1009
      %v2857 = vunpack.c.l.b16 %v1010
      %v2858 = vunpack.c.l.b16 %v1011
      %v2859 = vunpack.c.l.b16 %v1012
      %v2860 = vunpack.c.l.b16 %v1013
      %v2861 = vunpack.c.l.b16 %v1014
      %v2862 = vunpack.c.l.b16 %v1015
      %v2863 = vunpack.c.l.b16 %v1016
      %v2864 = vunpack.c.l.b16 %v1017
      %v2865 = vunpack.c.l.b16 %v1018
      %v2866 = vunpack.c.l.b16 %v1019
      %v2867 = vunpack.c.l.b16 %v1020
      %v2868 = vunpack.c.l.b16 %v1021
      %v2869 = vunpack.c.l.b16 %v1022
      %v2870 = vunpack.c.l.b16 %v1023
      %v2871 = vunpack.c.l.b16 %v1024
      %v2872 = vunpack.c.l.b16 %v1025
      %v2873 = vunpack.c.l.b16 %v1026
      %v2874 = vunpack.c.l.b16 %v1027
      %v2875 = vunpack.c.l.b16 %v1028
      %v2876 = vunpack.c.l.b16 %v1029
      %v2877 = vunpack.c.l.b16 %v1030
      %v2878 = vunpack.c.l.b16 %v1031
      %v2879 = vunpack.c.l.b16 %v1032
      %v2880 = vunpack.c.l.b16 %v1033
      %v2881 = vunpack.c.l.b16 %v1034
      %v2882 = vunpack.c.l.b16 %v1035
      %v2883 = vunpack.c.l.b16 %v1036
      %v2884 = vpack.c.b16 %v2853, %v2852
      %v2885 = vpack.c.b16 %v2855, %v2854
      %v2886 = vpack.c.b16 %v2857, %v2856
      %v2887 = vpack.c.b16 %v2859, %v2858
      %v2888 = vpack.c.b16 %v2861, %v2860
      %v2889 = vpack.c.b16 %v2863, %v2862
      %v2890 = vpack.c.b16 %v2865, %v2864
      %v2891 = vpack.c.b16 %v2867, %v2866
      %v2892 = vpack.c.b16 %v2869, %v2868
      %v2893 = vpack.c.b16 %v2871, %v2870
      %v2894 = vpack.c.b16 %v2873, %v2872
      %v2895 = vpack.c.b16 %v2875, %v2874
      %v2896 = vpack.c.b16 %v2877, %v2876
      %v2897 = vpack.c.b16 %v2879, %v2878
      %v2898 = vpack.c.b16 %v2881, %v2880
      %v2899 = vpack.c.b16 %v2883, %v2882
      %v2900 = vunpack.c.l.b16 %v1069
      %v2901 = vunpack.c.l.b16 %v1079
      %v2902 = vunpack.c.l.b16 %v1093
      %v2903 = vunpack.c.l.b16 %v1103
      %v2904 = vunpack.c.l.b16 %v1117
      %v2905 = vunpack.c.l.b16 %v1127
      %v2906 = vunpack.c.l.b16 %v1141
      %v2907 = vunpack.c.l.b16 %v1151
      %v2908 = vunpack.c.l.b16 %v1165
      %v2909 = vunpack.c.l.b16 %v1175
      %v2910 = vunpack.c.l.b16 %v1189
      %v2911 = vunpack.c.l.b16 %v1199
      %v2912 = vunpack.c.l.b16 %v1213
      %v2913 = vunpack.c.l.b16 %v1223
      %v2914 = vunpack.c.l.b16 %v1237
      %v2915 = vunpack.c.l.b16 %v1247
      %v2916 = vunpack.c.l.b16 %v1261
      %v2917 = vunpack.c.l.b16 %v1271
      %v2918 = vunpack.c.l.b16 %v1285
      %v2919 = vunpack.c.l.b16 %v1295
      %v2920 = vunpack.c.l.b16 %v1309
      %v2921 = vunpack.c.l.b16 %v1319
      %v2922 = vunpack.c.l.b16 %v1333
      %v2923 = vunpack.c.l.b16 %v1343
      %v2924 = vunpack.c.l.b16 %v1357
      %v2925 = vunpack.c.l.b16 %v1367
      %v2926 = vunpack.c.l.b16 %v1381
      %v2927 = vunpack.c.l.b16 %v1391
      %v2928 = vunpack.c.l.b16 %v1405
      %v2929 = vunpack.c.l.b16 %v1415
      %v2930 = vunpack.c.l.b16 %v1429
      %v2931 = vunpack.c.l.b16 %v1439
      %v2932 = vpack.c.b16 %v2901, %v2900
      %v2933 = vpack.c.b16 %v2903, %v2902
      %v2934 = vpack.c.b16 %v2905, %v2904
      %v2935 = vpack.c.b16 %v2907, %v2906
      %v2936 = vpack.c.b16 %v2909, %v2908
      %v2937 = vpack.c.b16 %v2911, %v2910
      %v2938 = vpack.c.b16 %v2913, %v2912
      %v2939 = vpack.c.b16 %v2915, %v2914
      %v2940 = vpack.c.b16 %v2917, %v2916
      %v2941 = vpack.c.b16 %v2919, %v2918
      %v2942 = vpack.c.b16 %v2921, %v2920
      %v2943 = vpack.c.b16 %v2923, %v2922
      %v2944 = vpack.c.b16 %v2925, %v2924
      %v2945 = vpack.c.b16 %v2927, %v2926
      %v2946 = vpack.c.b16 %v2929, %v2928
      %v2947 = vpack.c.b16 %v2931, %v2930
      %2948 = vrot.lane.b32.xlu0 %v2932, 32
      %v2949 = vpop.permute.xlu0 %2948
      %2950 = vrot.lane.b32.xlu0 %v2933, 32
      %v2951 = vpop.permute.xlu0 %2950
      %2952 = vrot.lane.b32.xlu0 %v2934, 32
      %v2953 = vpop.permute.xlu0 %2952
      %2954 = vrot.lane.b32.xlu0 %v2935, 32
      %v2955 = vpop.permute.xlu0 %2954
      %2956 = vrot.lane.b32.xlu0 %v2936, 32
      %v2957 = vpop.permute.xlu0 %2956
      %2958 = vrot.lane.b32.xlu0 %v2937, 32
      %v2959 = vpop.permute.xlu0 %2958
      %2960 = vrot.lane.b32.xlu0 %v2938, 32
      %v2961 = vpop.permute.xlu0 %2960
      %2962 = vrot.lane.b32.xlu0 %v2939, 32
      %v2963 = vpop.permute.xlu0 %2962
      %2964 = vrot.lane.b32.xlu0 %v2940, 32
      %v2965 = vpop.permute.xlu0 %2964
      %2966 = vrot.lane.b32.xlu0 %v2941, 32
      %v2967 = vpop.permute.xlu0 %2966
      %2968 = vrot.lane.b32.xlu0 %v2942, 32
      %v2969 = vpop.permute.xlu0 %2968
      %2970 = vrot.lane.b32.xlu0 %v2943, 32
      %v2971 = vpop.permute.xlu0 %2970
      %2972 = vrot.lane.b32.xlu0 %v2944, 32
      %v2973 = vpop.permute.xlu0 %2972
      %2974 = vrot.lane.b32.xlu0 %v2945, 32
      %v2975 = vpop.permute.xlu0 %2974
      %2976 = vrot.lane.b32.xlu0 %v2946, 32
      %v2977 = vpop.permute.xlu0 %2976
      %2978 = vrot.lane.b32.xlu0 %v2947, 32
      %v2979 = vpop.permute.xlu0 %2978
      %v2980 = vunpack.c.l.b16 %v1510
      %v2981 = vunpack.c.l.b16 %v1513
      %v2982 = vunpack.c.l.b16 %v1517
      %v2983 = vunpack.c.l.b16 %v1520
      %v2984 = vunpack.c.l.b16 %v1524
      %v2985 = vunpack.c.l.b16 %v1527
      %v2986 = vunpack.c.l.b16 %v1531
      %v2987 = vunpack.c.l.b16 %v1534
      %v2988 = vunpack.c.l.b16 %v1538
      %v2989 = vunpack.c.l.b16 %v1541
      %v2990 = vunpack.c.l.b16 %v1545
      %v2991 = vunpack.c.l.b16 %v1548
      %v2992 = vunpack.c.l.b16 %v1552
      %v2993 = vunpack.c.l.b16 %v1555
      %v2994 = vunpack.c.l.b16 %v1559
      %v2995 = vunpack.c.l.b16 %v1562
      %v2996 = vunpack.c.l.b16 %v1566
      %v2997 = vunpack.c.l.b16 %v1569
      %v2998 = vunpack.c.l.b16 %v1573
      %v2999 = vunpack.c.l.b16 %v1576
      %v3000 = vunpack.c.l.b16 %v1580
      %v3001 = vunpack.c.l.b16 %v1583
      %v3002 = vunpack.c.l.b16 %v1587
      %v3003 = vunpack.c.l.b16 %v1590
      %v3004 = vunpack.c.l.b16 %v1594
      %v3005 = vunpack.c.l.b16 %v1597
      %v3006 = vunpack.c.l.b16 %v1601
      %v3007 = vunpack.c.l.b16 %v1604
      %v3008 = vunpack.c.l.b16 %v1608
      %v3009 = vunpack.c.l.b16 %v1611
      %v3010 = vunpack.c.l.b16 %v1615
      %v3011 = vunpack.c.l.b16 %v1618
      %v3012 = vpack.c.b16 %v2981, %v2980
      %v3013 = vpack.c.b16 %v2983, %v2982
      %v3014 = vpack.c.b16 %v2985, %v2984
      %v3015 = vpack.c.b16 %v2987, %v2986
      %v3016 = vpack.c.b16 %v2989, %v2988
      %v3017 = vpack.c.b16 %v2991, %v2990
      %v3018 = vpack.c.b16 %v2993, %v2992
      %v3019 = vpack.c.b16 %v2995, %v2994
      %v3020 = vpack.c.b16 %v2997, %v2996
      %v3021 = vpack.c.b16 %v2999, %v2998
      %v3022 = vpack.c.b16 %v3001, %v3000
      %v3023 = vpack.c.b16 %v3003, %v3002
      %v3024 = vpack.c.b16 %v3005, %v3004
      %v3025 = vpack.c.b16 %v3007, %v3006
      %v3026 = vpack.c.b16 %v3009, %v3008
      %v3027 = vpack.c.b16 %v3011, %v3010
      %3028 = vrot.lane.b32.xlu0 %v3012, 64
      %v3029 = vpop.permute.xlu0 %3028
      %3030 = vrot.lane.b32.xlu0 %v3013, 64
      %v3031 = vpop.permute.xlu0 %3030
      %3032 = vrot.lane.b32.xlu0 %v3014, 64
      %v3033 = vpop.permute.xlu0 %3032
      %3034 = vrot.lane.b32.xlu0 %v3015, 64
      %v3035 = vpop.permute.xlu0 %3034
      %3036 = vrot.lane.b32.xlu0 %v3016, 64
      %v3037 = vpop.permute.xlu0 %3036
      %3038 = vrot.lane.b32.xlu0 %v3017, 64
      %v3039 = vpop.permute.xlu0 %3038
      %3040 = vrot.lane.b32.xlu0 %v3018, 64
      %v3041 = vpop.permute.xlu0 %3040
      %3042 = vrot.lane.b32.xlu0 %v3019, 64
      %v3043 = vpop.permute.xlu0 %3042
      %3044 = vrot.lane.b32.xlu0 %v3020, 64
      %v3045 = vpop.permute.xlu0 %3044
      %3046 = vrot.lane.b32.xlu0 %v3021, 64
      %v3047 = vpop.permute.xlu0 %3046
      %3048 = vrot.lane.b32.xlu0 %v3022, 64
      %v3049 = vpop.permute.xlu0 %3048
      %3050 = vrot.lane.b32.xlu0 %v3023, 64
      %v3051 = vpop.permute.xlu0 %3050
      %3052 = vrot.lane.b32.xlu0 %v3024, 64
      %v3053 = vpop.permute.xlu0 %3052
      %3054 = vrot.lane.b32.xlu0 %v3025, 64
      %v3055 = vpop.permute.xlu0 %3054
      %3056 = vrot.lane.b32.xlu0 %v3026, 64
      %v3057 = vpop.permute.xlu0 %3056
      %3058 = vrot.lane.b32.xlu0 %v3027, 64
      %v3059 = vpop.permute.xlu0 %3058
      %v3076 = vunpack.c.l.b16 %v1619
      %v3077 = vunpack.c.l.b16 %v1620
      %v3078 = vunpack.c.l.b16 %v1621
      %v3079 = vunpack.c.l.b16 %v1622
      %v3080 = vunpack.c.l.b16 %v1623
      %v3081 = vunpack.c.l.b16 %v1624
      %v3082 = vunpack.c.l.b16 %v1625
      %v3083 = vunpack.c.l.b16 %v1626
      %v3084 = vunpack.c.l.b16 %v1627
      %v3085 = vunpack.c.l.b16 %v1628
      %v3086 = vunpack.c.l.b16 %v1629
      %v3087 = vunpack.c.l.b16 %v1630
      %v3088 = vunpack.c.l.b16 %v1631
      %v3089 = vunpack.c.l.b16 %v1632
      %v3090 = vunpack.c.l.b16 %v1633
      %v3091 = vunpack.c.l.b16 %v1634
      %v3092 = vunpack.c.l.b16 %v1635
      %v3093 = vunpack.c.l.b16 %v1636
      %v3094 = vunpack.c.l.b16 %v1637
      %v3095 = vunpack.c.l.b16 %v1638
      %v3096 = vunpack.c.l.b16 %v1639
      %v3097 = vunpack.c.l.b16 %v1640
      %v3098 = vunpack.c.l.b16 %v1641
      %v3099 = vunpack.c.l.b16 %v1642
      %v3100 = vunpack.c.l.b16 %v1643
      %v3101 = vunpack.c.l.b16 %v1644
      %v3102 = vunpack.c.l.b16 %v1645
      %v3103 = vunpack.c.l.b16 %v1646
      %v3104 = vunpack.c.l.b16 %v1647
      %v3105 = vunpack.c.l.b16 %v1648
      %v3106 = vunpack.c.l.b16 %v1649
      %v3107 = vunpack.c.l.b16 %v1650
      %v3108 = vpack.c.b16 %v3077, %v3076
      %v3109 = vpack.c.b16 %v3079, %v3078
      %v3110 = vpack.c.b16 %v3081, %v3080
      %v3111 = vpack.c.b16 %v3083, %v3082
      %v3112 = vpack.c.b16 %v3085, %v3084
      %v3113 = vpack.c.b16 %v3087, %v3086
      %v3114 = vpack.c.b16 %v3089, %v3088
      %v3115 = vpack.c.b16 %v3091, %v3090
      %v3116 = vpack.c.b16 %v3093, %v3092
      %v3117 = vpack.c.b16 %v3095, %v3094
      %v3118 = vpack.c.b16 %v3097, %v3096
      %v3119 = vpack.c.b16 %v3099, %v3098
      %v3120 = vpack.c.b16 %v3101, %v3100
      %v3121 = vpack.c.b16 %v3103, %v3102
      %v3122 = vpack.c.b16 %v3105, %v3104
      %v3123 = vpack.c.b16 %v3107, %v3106
      %3124 = vrot.lane.b32.xlu0 %v3108, 96
      %v3125 = vpop.permute.xlu0 %3124
      %3126 = vrot.lane.b32.xlu0 %v3109, 96
      %v3127 = vpop.permute.xlu0 %3126
      %3128 = vrot.lane.b32.xlu0 %v3110, 96
      %v3129 = vpop.permute.xlu0 %3128
      %3130 = vrot.lane.b32.xlu0 %v3111, 96
      %v3131 = vpop.permute.xlu0 %3130
      %3132 = vrot.lane.b32.xlu0 %v3112, 96
      %v3133 = vpop.permute.xlu0 %3132
      %3134 = vrot.lane.b32.xlu0 %v3113, 96
      %v3135 = vpop.permute.xlu0 %3134
      %3136 = vrot.lane.b32.xlu0 %v3114, 96
      %v3137 = vpop.permute.xlu0 %3136
      %3138 = vrot.lane.b32.xlu0 %v3115, 96
      %v3139 = vpop.permute.xlu0 %3138
      %3140 = vrot.lane.b32.xlu0 %v3116, 96
      %v3141 = vpop.permute.xlu0 %3140
      %3142 = vrot.lane.b32.xlu0 %v3117, 96
      %v3143 = vpop.permute.xlu0 %3142
      %3144 = vrot.lane.b32.xlu0 %v3118, 96
      %v3145 = vpop.permute.xlu0 %3144
      %3146 = vrot.lane.b32.xlu0 %v3119, 96
      %v3147 = vpop.permute.xlu0 %3146
      %3148 = vrot.lane.b32.xlu0 %v3120, 96
      %v3149 = vpop.permute.xlu0 %3148
      %3150 = vrot.lane.b32.xlu0 %v3121, 96
      %v3151 = vpop.permute.xlu0 %3150
      %3152 = vrot.lane.b32.xlu0 %v3122, 96
      %v3153 = vpop.permute.xlu0 %3152
      %3154 = vrot.lane.b32.xlu0 %v3123, 96
      %v3155 = vpop.permute.xlu0 %3154
      %v3156 = vunpack.c.l.b16 %v1680
      %v3157 = vunpack.c.l.b16 %v1690
      %v3158 = vunpack.c.l.b16 %v1704
      %v3159 = vunpack.c.l.b16 %v1714
      %v3160 = vunpack.c.l.b16 %v1728
      %v3161 = vunpack.c.l.b16 %v1738
      %v3162 = vunpack.c.l.b16 %v1752
      %v3163 = vunpack.c.l.b16 %v1762
      %v3164 = vunpack.c.l.b16 %v1776
      %v3165 = vunpack.c.l.b16 %v1786
      %v3166 = vunpack.c.l.b16 %v1800
      %v3167 = vunpack.c.l.b16 %v1810
      %v3168 = vunpack.c.l.b16 %v1824
      %v3169 = vunpack.c.l.b16 %v1834
      %v3170 = vunpack.c.l.b16 %v1848
      %v3171 = vunpack.c.l.b16 %v1858
      %v3172 = vunpack.c.l.b16 %v1872
      %v3173 = vunpack.c.l.b16 %v1882
      %v3174 = vunpack.c.l.b16 %v1896
      %v3175 = vunpack.c.l.b16 %v1906
      %v3176 = vunpack.c.l.b16 %v1920
      %v3177 = vunpack.c.l.b16 %v1930
      %v3178 = vunpack.c.l.b16 %v1944
      %v3179 = vunpack.c.l.b16 %v1954
      %v3180 = vunpack.c.l.b16 %v1968
      %v3181 = vunpack.c.l.b16 %v1978
      %v3182 = vunpack.c.l.b16 %v1992
      %v3183 = vunpack.c.l.b16 %v2002
      %v3184 = vunpack.c.l.b16 %v2016
      %v3185 = vunpack.c.l.b16 %v2026
      %v3186 = vunpack.c.l.b16 %v2040
      %v3187 = vunpack.c.l.b16 %v2050
      %v3188 = vpack.c.b16 %v3157, %v3156
      %v3189 = vpack.c.b16 %v3159, %v3158
      %v3190 = vpack.c.b16 %v3161, %v3160
      %v3191 = vpack.c.b16 %v3163, %v3162
      %v3192 = vpack.c.b16 %v3165, %v3164
      %v3193 = vpack.c.b16 %v3167, %v3166
      %v3194 = vpack.c.b16 %v3169, %v3168
      %v3195 = vpack.c.b16 %v3171, %v3170
      %v3196 = vpack.c.b16 %v3173, %v3172
      %v3197 = vpack.c.b16 %v3175, %v3174
      %v3198 = vpack.c.b16 %v3177, %v3176
      %v3199 = vpack.c.b16 %v3179, %v3178
      %v3200 = vpack.c.b16 %v3181, %v3180
      %v3201 = vpack.c.b16 %v3183, %v3182
      %v3202 = vpack.c.b16 %v3185, %v3184
      %v3203 = vpack.c.b16 %v3187, %v3186
      %v3204 = vunpack.c.l.b16 %v2118
      %v3205 = vunpack.c.l.b16 %v2121
      %v3206 = vunpack.c.l.b16 %v2125
      %v3207 = vunpack.c.l.b16 %v2128
      %v3208 = vunpack.c.l.b16 %v2132
      %v3209 = vunpack.c.l.b16 %v2135
      %v3210 = vunpack.c.l.b16 %v2139
      %v3211 = vunpack.c.l.b16 %v2142
      %v3212 = vunpack.c.l.b16 %v2146
      %v3213 = vunpack.c.l.b16 %v2149
      %v3214 = vunpack.c.l.b16 %v2153
      %v3215 = vunpack.c.l.b16 %v2156
      %v3216 = vunpack.c.l.b16 %v2160
      %v3217 = vunpack.c.l.b16 %v2163
      %v3218 = vunpack.c.l.b16 %v2167
      %v3219 = vunpack.c.l.b16 %v2170
      %v3220 = vunpack.c.l.b16 %v2174
      %v3221 = vunpack.c.l.b16 %v2177
      %v3222 = vunpack.c.l.b16 %v2181
      %v3223 = vunpack.c.l.b16 %v2184
      %v3224 = vunpack.c.l.b16 %v2188
      %v3225 = vunpack.c.l.b16 %v2191
      %v3226 = vunpack.c.l.b16 %v2195
      %v3227 = vunpack.c.l.b16 %v2198
      %v3228 = vunpack.c.l.b16 %v2202
      %v3229 = vunpack.c.l.b16 %v2205
      %v3230 = vunpack.c.l.b16 %v2209
      %v3231 = vunpack.c.l.b16 %v2212
      %v3232 = vunpack.c.l.b16 %v2216
      %v3233 = vunpack.c.l.b16 %v2219
      %v3234 = vunpack.c.l.b16 %v2223
      %v3235 = vunpack.c.l.b16 %v2226
      %v3236 = vpack.c.b16 %v3205, %v3204
      %v3237 = vpack.c.b16 %v3207, %v3206
      %v3238 = vpack.c.b16 %v3209, %v3208
      %v3239 = vpack.c.b16 %v3211, %v3210
      %v3240 = vpack.c.b16 %v3213, %v3212
      %v3241 = vpack.c.b16 %v3215, %v3214
      %v3242 = vpack.c.b16 %v3217, %v3216
      %v3243 = vpack.c.b16 %v3219, %v3218
      %v3244 = vpack.c.b16 %v3221, %v3220
      %v3245 = vpack.c.b16 %v3223, %v3222
      %v3246 = vpack.c.b16 %v3225, %v3224
      %v3247 = vpack.c.b16 %v3227, %v3226
      %v3248 = vpack.c.b16 %v3229, %v3228
      %v3249 = vpack.c.b16 %v3231, %v3230
      %v3250 = vpack.c.b16 %v3233, %v3232
      %v3251 = vpack.c.b16 %v3235, %v3234
      %3252 = vrot.lane.b32.xlu0 %v3236, 32
      %v3253 = vpop.permute.xlu0 %3252
      %3254 = vrot.lane.b32.xlu0 %v3237, 32
      %v3255 = vpop.permute.xlu0 %3254
      %3256 = vrot.lane.b32.xlu0 %v3238, 32
      %v3257 = vpop.permute.xlu0 %3256
      %3258 = vrot.lane.b32.xlu0 %v3239, 32
      %v3259 = vpop.permute.xlu0 %3258
      %3260 = vrot.lane.b32.xlu0 %v3240, 32
      %v3261 = vpop.permute.xlu0 %3260
      %3262 = vrot.lane.b32.xlu0 %v3241, 32
      %v3263 = vpop.permute.xlu0 %3262
      %3264 = vrot.lane.b32.xlu0 %v3242, 32
      %v3265 = vpop.permute.xlu0 %3264
      %3266 = vrot.lane.b32.xlu0 %v3243, 32
      %v3267 = vpop.permute.xlu0 %3266
      %3268 = vrot.lane.b32.xlu0 %v3244, 32
      %v3269 = vpop.permute.xlu0 %3268
      %3270 = vrot.lane.b32.xlu0 %v3245, 32
      %v3271 = vpop.permute.xlu0 %3270
      %3272 = vrot.lane.b32.xlu0 %v3246, 32
      %v3273 = vpop.permute.xlu0 %3272
      %3274 = vrot.lane.b32.xlu0 %v3247, 32
      %v3275 = vpop.permute.xlu0 %3274
      %3276 = vrot.lane.b32.xlu0 %v3248, 32
      %v3277 = vpop.permute.xlu0 %3276
      %3278 = vrot.lane.b32.xlu0 %v3249, 32
      %v3279 = vpop.permute.xlu0 %3278
      %3280 = vrot.lane.b32.xlu0 %v3250, 32
      %v3281 = vpop.permute.xlu0 %3280
      %3282 = vrot.lane.b32.xlu0 %v3251, 32
      %v3283 = vpop.permute.xlu0 %3282
      %v3300 = vunpack.c.l.b16 %v2228
      %v3301 = vunpack.c.l.b16 %v2229
      %v3302 = vunpack.c.l.b16 %v2230
      %v3303 = vunpack.c.l.b16 %v2231
      %v3304 = vunpack.c.l.b16 %v2232
      %v3305 = vunpack.c.l.b16 %v2233
      %v3306 = vunpack.c.l.b16 %v2234
      %v3307 = vunpack.c.l.b16 %v2235
      %v3308 = vunpack.c.l.b16 %v2236
      %v3309 = vunpack.c.l.b16 %v2237
      %v3310 = vunpack.c.l.b16 %v2238
      %v3311 = vunpack.c.l.b16 %v2239
      %v3312 = vunpack.c.l.b16 %v2240
      %v3313 = vunpack.c.l.b16 %v2241
      %v3314 = vunpack.c.l.b16 %v2242
      %v3315 = vunpack.c.l.b16 %v2243
      %v3316 = vunpack.c.l.b16 %v2244
      %v3317 = vunpack.c.l.b16 %v2245
      %v3318 = vunpack.c.l.b16 %v2246
      %v3319 = vunpack.c.l.b16 %v2247
      %v3320 = vunpack.c.l.b16 %v2248
      %v3321 = vunpack.c.l.b16 %v2249
      %v3322 = vunpack.c.l.b16 %v2250
      %v3323 = vunpack.c.l.b16 %v2251
      %v3324 = vunpack.c.l.b16 %v2252
      %v3325 = vunpack.c.l.b16 %v2253
      %v3326 = vunpack.c.l.b16 %v2254
      %v3327 = vunpack.c.l.b16 %v2255
      %v3328 = vunpack.c.l.b16 %v2256
      %v3329 = vunpack.c.l.b16 %v2257
      %v3330 = vunpack.c.l.b16 %v2258
      %v3331 = vunpack.c.l.b16 %v2259
      %v3332 = vpack.c.b16 %v3301, %v3300
      %v3333 = vpack.c.b16 %v3303, %v3302
      %v3334 = vpack.c.b16 %v3305, %v3304
      %v3335 = vpack.c.b16 %v3307, %v3306
      %v3336 = vpack.c.b16 %v3309, %v3308
      %v3337 = vpack.c.b16 %v3311, %v3310
      %v3338 = vpack.c.b16 %v3313, %v3312
      %v3339 = vpack.c.b16 %v3315, %v3314
      %v3340 = vpack.c.b16 %v3317, %v3316
      %v3341 = vpack.c.b16 %v3319, %v3318
      %v3342 = vpack.c.b16 %v3321, %v3320
      %v3343 = vpack.c.b16 %v3323, %v3322
      %v3344 = vpack.c.b16 %v3325, %v3324
      %v3345 = vpack.c.b16 %v3327, %v3326
      %v3346 = vpack.c.b16 %v3329, %v3328
      %v3347 = vpack.c.b16 %v3331, %v3330
      %3348 = vrot.lane.b32.xlu0 %v3332, 64
      %v3349 = vpop.permute.xlu0 %3348
      %3350 = vrot.lane.b32.xlu0 %v3333, 64
      %v3351 = vpop.permute.xlu0 %3350
      %3352 = vrot.lane.b32.xlu0 %v3334, 64
      %v3353 = vpop.permute.xlu0 %3352
      %3354 = vrot.lane.b32.xlu0 %v3335, 64
      %v3355 = vpop.permute.xlu0 %3354
      %3356 = vrot.lane.b32.xlu0 %v3336, 64
      %v3357 = vpop.permute.xlu0 %3356
      %3358 = vrot.lane.b32.xlu0 %v3337, 64
      %v3359 = vpop.permute.xlu0 %3358
      %3360 = vrot.lane.b32.xlu0 %v3338, 64
      %v3361 = vpop.permute.xlu0 %3360
      %3362 = vrot.lane.b32.xlu0 %v3339, 64
      %v3363 = vpop.permute.xlu0 %3362
      %3364 = vrot.lane.b32.xlu0 %v3340, 64
      %v3365 = vpop.permute.xlu0 %3364
      %3366 = vrot.lane.b32.xlu0 %v3341, 64
      %v3367 = vpop.permute.xlu0 %3366
      %3368 = vrot.lane.b32.xlu0 %v3342, 64
      %v3369 = vpop.permute.xlu0 %3368
      %3370 = vrot.lane.b32.xlu0 %v3343, 64
      %v3371 = vpop.permute.xlu0 %3370
      %3372 = vrot.lane.b32.xlu0 %v3344, 64
      %v3373 = vpop.permute.xlu0 %3372
      %3374 = vrot.lane.b32.xlu0 %v3345, 64
      %v3375 = vpop.permute.xlu0 %3374
      %3376 = vrot.lane.b32.xlu0 %v3346, 64
      %v3377 = vpop.permute.xlu0 %3376
      %3378 = vrot.lane.b32.xlu0 %v3347, 64
      %v3379 = vpop.permute.xlu0 %3378
      %v3380 = vunpack.c.l.b16 %v2289
      %v3381 = vunpack.c.l.b16 %v2299
      %v3382 = vunpack.c.l.b16 %v2313
      %v3383 = vunpack.c.l.b16 %v2323
      %v3384 = vunpack.c.l.b16 %v2337
      %v3385 = vunpack.c.l.b16 %v2347
      %v3386 = vunpack.c.l.b16 %v2361
      %v3387 = vunpack.c.l.b16 %v2371
      %v3388 = vunpack.c.l.b16 %v2385
      %v3389 = vunpack.c.l.b16 %v2395
      %v3390 = vunpack.c.l.b16 %v2409
      %v3391 = vunpack.c.l.b16 %v2419
      %v3392 = vunpack.c.l.b16 %v2433
      %v3393 = vunpack.c.l.b16 %v2443
      %v3394 = vunpack.c.l.b16 %v2457
      %v3395 = vunpack.c.l.b16 %v2467
      %v3396 = vunpack.c.l.b16 %v2481
      %v3397 = vunpack.c.l.b16 %v2491
      %v3398 = vunpack.c.l.b16 %v2505
      %v3399 = vunpack.c.l.b16 %v2515
      %v3400 = vunpack.c.l.b16 %v2529
      %v3401 = vunpack.c.l.b16 %v2539
      %v3402 = vunpack.c.l.b16 %v2553
      %v3403 = vunpack.c.l.b16 %v2563
      %v3404 = vunpack.c.l.b16 %v2577
      %v3405 = vunpack.c.l.b16 %v2587
      %v3406 = vunpack.c.l.b16 %v2601
      %v3407 = vunpack.c.l.b16 %v2611
      %v3408 = vunpack.c.l.b16 %v2625
      %v3409 = vunpack.c.l.b16 %v2635
      %v3410 = vunpack.c.l.b16 %v2649
      %v3411 = vunpack.c.l.b16 %v2659
      %v3412 = vpack.c.b16 %v3381, %v3380
      %v3413 = vpack.c.b16 %v3383, %v3382
      %v3414 = vpack.c.b16 %v3385, %v3384
      %v3415 = vpack.c.b16 %v3387, %v3386
      %v3416 = vpack.c.b16 %v3389, %v3388
      %v3417 = vpack.c.b16 %v3391, %v3390
      %v3418 = vpack.c.b16 %v3393, %v3392
      %v3419 = vpack.c.b16 %v3395, %v3394
      %v3420 = vpack.c.b16 %v3397, %v3396
      %v3421 = vpack.c.b16 %v3399, %v3398
      %v3422 = vpack.c.b16 %v3401, %v3400
      %v3423 = vpack.c.b16 %v3403, %v3402
      %v3424 = vpack.c.b16 %v3405, %v3404
      %v3425 = vpack.c.b16 %v3407, %v3406
      %v3426 = vpack.c.b16 %v3409, %v3408
      %v3427 = vpack.c.b16 %v3411, %v3410
      %3428 = vrot.lane.b32.xlu0 %v3412, 96
      %v3429 = vpop.permute.xlu0 %3428
      %3430 = vrot.lane.b32.xlu0 %v3413, 96
      %v3431 = vpop.permute.xlu0 %3430
      %3432 = vrot.lane.b32.xlu0 %v3414, 96
      %v3433 = vpop.permute.xlu0 %3432
      %3434 = vrot.lane.b32.xlu0 %v3415, 96
      %v3435 = vpop.permute.xlu0 %3434
      %3436 = vrot.lane.b32.xlu0 %v3416, 96
      %v3437 = vpop.permute.xlu0 %3436
      %3438 = vrot.lane.b32.xlu0 %v3417, 96
      %v3439 = vpop.permute.xlu0 %3438
      %3440 = vrot.lane.b32.xlu0 %v3418, 96
      %v3441 = vpop.permute.xlu0 %3440
      %3442 = vrot.lane.b32.xlu0 %v3419, 96
      %v3443 = vpop.permute.xlu0 %3442
      %3444 = vrot.lane.b32.xlu0 %v3420, 96
      %v3445 = vpop.permute.xlu0 %3444
      %3446 = vrot.lane.b32.xlu0 %v3421, 96
      %v3447 = vpop.permute.xlu0 %3446
      %3448 = vrot.lane.b32.xlu0 %v3422, 96
      %v3449 = vpop.permute.xlu0 %3448
      %3450 = vrot.lane.b32.xlu0 %v3423, 96
      %v3451 = vpop.permute.xlu0 %3450
      %3452 = vrot.lane.b32.xlu0 %v3424, 96
      %v3453 = vpop.permute.xlu0 %3452
      %3454 = vrot.lane.b32.xlu0 %v3425, 96
      %v3455 = vpop.permute.xlu0 %3454
      %3456 = vrot.lane.b32.xlu0 %v3426, 96
      %v3457 = vpop.permute.xlu0 %3456
      %3458 = vrot.lane.b32.xlu0 %v3427, 96
      %v3459 = vpop.permute.xlu0 %3458
      %v3460 = vunpack.c.l.b16 %v2727
      %v3461 = vunpack.c.l.b16 %v2730
      %v3462 = vunpack.c.l.b16 %v2734
      %v3463 = vunpack.c.l.b16 %v2737
      %v3464 = vunpack.c.l.b16 %v2741
      %v3465 = vunpack.c.l.b16 %v2744
      %v3466 = vunpack.c.l.b16 %v2748
      %v3467 = vunpack.c.l.b16 %v2751
      %v3468 = vunpack.c.l.b16 %v2755
      %v3469 = vunpack.c.l.b16 %v2758
      %v3470 = vunpack.c.l.b16 %v2762
      %v3471 = vunpack.c.l.b16 %v2765
      %v3472 = vunpack.c.l.b16 %v2769
      %v3473 = vunpack.c.l.b16 %v2772
      %v3474 = vunpack.c.l.b16 %v2776
      %v3475 = vunpack.c.l.b16 %v2779
      %v3476 = vunpack.c.l.b16 %v2783
      %v3477 = vunpack.c.l.b16 %v2786
      %v3478 = vunpack.c.l.b16 %v2790
      %v3479 = vunpack.c.l.b16 %v2793
      %v3480 = vunpack.c.l.b16 %v2797
      %v3481 = vunpack.c.l.b16 %v2800
      %v3482 = vunpack.c.l.b16 %v2804
      %v3483 = vunpack.c.l.b16 %v2807
      %v3484 = vunpack.c.l.b16 %v2811
      %v3485 = vunpack.c.l.b16 %v2814
      %v3486 = vunpack.c.l.b16 %v2818
      %v3487 = vunpack.c.l.b16 %v2821
      %v3488 = vunpack.c.l.b16 %v2825
      %v3489 = vunpack.c.l.b16 %v2828
      %v3490 = vunpack.c.l.b16 %v2832
      %v3491 = vunpack.c.l.b16 %v2835
      %v3492 = vpack.c.b16 %v3461, %v3460
      %v3493 = vpack.c.b16 %v3463, %v3462
      %v3494 = vpack.c.b16 %v3465, %v3464
      %v3495 = vpack.c.b16 %v3467, %v3466
      %v3496 = vpack.c.b16 %v3469, %v3468
      %v3497 = vpack.c.b16 %v3471, %v3470
      %v3498 = vpack.c.b16 %v3473, %v3472
      %v3499 = vpack.c.b16 %v3475, %v3474
      %v3500 = vpack.c.b16 %v3477, %v3476
      %v3501 = vpack.c.b16 %v3479, %v3478
      %v3502 = vpack.c.b16 %v3481, %v3480
      %v3503 = vpack.c.b16 %v3483, %v3482
      %v3504 = vpack.c.b16 %v3485, %v3484
      %v3505 = vpack.c.b16 %v3487, %v3486
      %v3506 = vpack.c.b16 %v3489, %v3488
      %v3507 = vpack.c.b16 %v3491, %v3490
      %vm3508 = vcmask 261120
      %v3511 = vsel %vm3508, %v2884, %v2949
      %v3514 = vsel %vm3508, %v2885, %v2951
      %v3517 = vsel %vm3508, %v2886, %v2953
      %v3520 = vsel %vm3508, %v2887, %v2955
      %v3523 = vsel %vm3508, %v2888, %v2957
      %v3526 = vsel %vm3508, %v2889, %v2959
      %v3529 = vsel %vm3508, %v2890, %v2961
      %v3532 = vsel %vm3508, %v2891, %v2963
      %v3535 = vsel %vm3508, %v2892, %v2965
      %v3538 = vsel %vm3508, %v2893, %v2967
      %v3541 = vsel %vm3508, %v2894, %v2969
      %v3544 = vsel %vm3508, %v2895, %v2971
      %v3547 = vsel %vm3508, %v2896, %v2973
      %v3550 = vsel %vm3508, %v2897, %v2975
      %v3553 = vsel %vm3508, %v2898, %v2977
      %v3556 = vsel %vm3508, %v2899, %v2979
      %vm3557 = vcmask 523264
      %v3559 = vsel %vm3557, %v3511, %v3029
      %v3561 = vsel %vm3557, %v3514, %v3031
      %v3563 = vsel %vm3557, %v3517, %v3033
      %v3565 = vsel %vm3557, %v3520, %v3035
      %v3567 = vsel %vm3557, %v3523, %v3037
      %v3569 = vsel %vm3557, %v3526, %v3039
      %v3571 = vsel %vm3557, %v3529, %v3041
      %v3573 = vsel %vm3557, %v3532, %v3043
      %v3575 = vsel %vm3557, %v3535, %v3045
      %v3577 = vsel %vm3557, %v3538, %v3047
      %v3579 = vsel %vm3557, %v3541, %v3049
      %v3581 = vsel %vm3557, %v3544, %v3051
      %v3583 = vsel %vm3557, %v3547, %v3053
      %v3585 = vsel %vm3557, %v3550, %v3055
      %v3587 = vsel %vm3557, %v3553, %v3057
      %v3589 = vsel %vm3557, %v3556, %v3059
      %vm3590 = vcmask 785408
      %v3592 = vsel %vm3590, %v3559, %v3125
      %v3595 = vsel %vm3590, %v3561, %v3127
      %v3598 = vsel %vm3590, %v3563, %v3129
      %v3601 = vsel %vm3590, %v3565, %v3131
      %v3604 = vsel %vm3590, %v3567, %v3133
      %v3607 = vsel %vm3590, %v3569, %v3135
      %v3610 = vsel %vm3590, %v3571, %v3137
      %v3613 = vsel %vm3590, %v3573, %v3139
      %v3616 = vsel %vm3590, %v3575, %v3141
      %v3619 = vsel %vm3590, %v3577, %v3143
      %v3622 = vsel %vm3590, %v3579, %v3145
      %v3625 = vsel %vm3590, %v3581, %v3147
      %v3628 = vsel %vm3590, %v3583, %v3149
      %v3631 = vsel %vm3590, %v3585, %v3151
      %v3634 = vsel %vm3590, %v3587, %v3153
      %v3637 = vsel %vm3590, %v3589, %v3155
      %v3641 = vsel %vm3508, %v3188, %v3253
      %v3644 = vsel %vm3508, %v3189, %v3255
      %v3647 = vsel %vm3508, %v3190, %v3257
      %v3650 = vsel %vm3508, %v3191, %v3259
      %v3653 = vsel %vm3508, %v3192, %v3261
      %v3656 = vsel %vm3508, %v3193, %v3263
      %v3659 = vsel %vm3508, %v3194, %v3265
      %v3662 = vsel %vm3508, %v3195, %v3267
      %v3665 = vsel %vm3508, %v3196, %v3269
      %v3668 = vsel %vm3508, %v3197, %v3271
      %v3671 = vsel %vm3508, %v3198, %v3273
      %v3674 = vsel %vm3508, %v3199, %v3275
      %v3677 = vsel %vm3508, %v3200, %v3277
      %v3680 = vsel %vm3508, %v3201, %v3279
      %v3683 = vsel %vm3508, %v3202, %v3281
      %v3686 = vsel %vm3508, %v3203, %v3283
      %v3688 = vsel %vm3557, %v3641, %v3349
      %v3690 = vsel %vm3557, %v3644, %v3351
      %v3692 = vsel %vm3557, %v3647, %v3353
      %v3694 = vsel %vm3557, %v3650, %v3355
      %v3696 = vsel %vm3557, %v3653, %v3357
      %v3698 = vsel %vm3557, %v3656, %v3359
      %v3700 = vsel %vm3557, %v3659, %v3361
      %v3702 = vsel %vm3557, %v3662, %v3363
      %v3704 = vsel %vm3557, %v3665, %v3365
      %v3706 = vsel %vm3557, %v3668, %v3367
      %v3708 = vsel %vm3557, %v3671, %v3369
      %v3710 = vsel %vm3557, %v3674, %v3371
      %v3712 = vsel %vm3557, %v3677, %v3373
      %v3714 = vsel %vm3557, %v3680, %v3375
      %v3716 = vsel %vm3557, %v3683, %v3377
      %v3718 = vsel %vm3557, %v3686, %v3379
      %v3720 = vsel %vm3590, %v3688, %v3429
      %v3723 = vsel %vm3590, %v3690, %v3431
      %v3726 = vsel %vm3590, %v3692, %v3433
      %v3729 = vsel %vm3590, %v3694, %v3435
      %v3732 = vsel %vm3590, %v3696, %v3437
      %v3735 = vsel %vm3590, %v3698, %v3439
      %v3738 = vsel %vm3590, %v3700, %v3441
      %v3741 = vsel %vm3590, %v3702, %v3443
      %v3744 = vsel %vm3590, %v3704, %v3445
      %v3747 = vsel %vm3590, %v3706, %v3447
      %v3750 = vsel %vm3590, %v3708, %v3449
      %v3753 = vsel %vm3590, %v3710, %v3451
      %v3756 = vsel %vm3590, %v3712, %v3453
      %v3759 = vsel %vm3590, %v3714, %v3455
      %v3762 = vsel %vm3590, %v3716, %v3457
      %v3765 = vsel %vm3590, %v3718, %v3459
      %v3767 = vld [vmem:[%s3] sm:$0xf]
      %v3768 = vld [vmem:[%s3 + $0x4] sm:$0xf]
      %v3769 = vld [vmem:[%s3 + $0x8] sm:$0xf]
      %v3770 = vld [vmem:[%s3 + $0xc] sm:$0xf]
      %v3771 = vld [vmem:[%s3 + $0x10] sm:$0xf]
      %v3772 = vld [vmem:[%s3 + $0x14] sm:$0xf]
      %v3773 = vld [vmem:[%s3 + $0x18] sm:$0xf]
      %v3774 = vld [vmem:[%s3 + $0x1c] sm:$0xf]
      %v3775 = vld [vmem:[%s3 + $0x20] sm:$0xf]
      %v3776 = vld [vmem:[%s3 + $0x24] sm:$0xf]
      %v3777 = vld [vmem:[%s3 + $0x28] sm:$0xf]
      %v3778 = vld [vmem:[%s3 + $0x2c] sm:$0xf]
      %v3779 = vld [vmem:[%s3 + $0x30] sm:$0xf]
      %v3780 = vld [vmem:[%s3 + $0x34] sm:$0xf]
      %v3781 = vld [vmem:[%s3 + $0x38] sm:$0xf]
      %v3782 = vld [vmem:[%s3 + $0x3c] sm:$0xf]
      %v3783 = vld [vmem:[%s3 + $0x40] sm:$0xf]
      %v3784 = vld [vmem:[%s3 + $0x44] sm:$0xf]
      %v3785 = vld [vmem:[%s3 + $0x48] sm:$0xf]
      %v3786 = vld [vmem:[%s3 + $0x4c] sm:$0xf]
      %v3787 = vld [vmem:[%s3 + $0x50] sm:$0xf]
      %v3788 = vld [vmem:[%s3 + $0x54] sm:$0xf]
      %v3789 = vld [vmem:[%s3 + $0x58] sm:$0xf]
      %v3790 = vld [vmem:[%s3 + $0x5c] sm:$0xf]
      %v3791 = vld [vmem:[%s3 + $0x60] sm:$0xf]
      %v3792 = vld [vmem:[%s3 + $0x64] sm:$0xf]
      %v3793 = vld [vmem:[%s3 + $0x68] sm:$0xf]
      %v3794 = vld [vmem:[%s3 + $0x6c] sm:$0xf]
      %v3795 = vld [vmem:[%s3 + $0x70] sm:$0xf]
      %v3796 = vld [vmem:[%s3 + $0x74] sm:$0xf]
      %v3797 = vld [vmem:[%s3 + $0x78] sm:$0xf]
      %v3798 = vld [vmem:[%s3 + $0x7c] sm:$0xf]
      %v3799 = vld [vmem:[%s3 + $0x80] sm:$0xf]
      %v3800 = vld [vmem:[%s3 + $0x84] sm:$0xf]
      %v3801 = vld [vmem:[%s3 + $0x88] sm:$0xf]
      %v3802 = vld [vmem:[%s3 + $0x8c] sm:$0xf]
      %v3839 = vunpack.c.l.b16 %v3767
      %v3840 = vunpack.c.l.b16 %v3768
      %v3841 = vunpack.c.l.b16 %v3769
      %v3842 = vunpack.c.l.b16 %v3770
      %v3843 = vunpack.c.l.b16 %v3771
      %v3844 = vunpack.c.l.b16 %v3772
      %v3845 = vunpack.c.l.b16 %v3773
      %v3846 = vunpack.c.l.b16 %v3774
      %v3847 = vunpack.c.l.b16 %v3775
      %v3848 = vunpack.c.l.b16 %v3776
      %v3849 = vunpack.c.l.b16 %v3777
      %v3850 = vunpack.c.l.b16 %v3778
      %v3851 = vunpack.c.l.b16 %v3779
      %v3852 = vunpack.c.l.b16 %v3780
      %v3853 = vunpack.c.l.b16 %v3781
      %v3854 = vunpack.c.l.b16 %v3782
      %v3855 = vunpack.c.l.b16 %v3783
      %v3856 = vunpack.c.l.b16 %v3784
      %v3857 = vunpack.c.l.b16 %v3785
      %v3858 = vunpack.c.l.b16 %v3786
      %v3859 = vunpack.c.l.b16 %v3787
      %v3860 = vunpack.c.l.b16 %v3788
      %v3861 = vunpack.c.l.b16 %v3789
      %v3862 = vunpack.c.l.b16 %v3790
      %v3863 = vunpack.c.l.b16 %v3791
      %v3864 = vunpack.c.l.b16 %v3792
      %v3865 = vunpack.c.l.b16 %v3793
      %v3866 = vunpack.c.l.b16 %v3794
      %v3867 = vunpack.c.l.b16 %v3795
      %v3868 = vunpack.c.l.b16 %v3796
      %v3869 = vunpack.c.l.b16 %v3797
      %v3870 = vunpack.c.l.b16 %v3798
      %v3871 = vunpack.c.l.b16 %v3799
      %v3872 = vunpack.c.l.b16 %v3800
      %v3873 = vunpack.c.l.b16 %v3801
      %v3874 = vunpack.c.l.b16 %v3802
      %v3875 = vpack.c.b16 %v3840, %v3839
      %v3876 = vpack.c.b16 %v3842, %v3841
      %v3877 = vpack.c.b16 %v3844, %v3843
      %v3878 = vpack.c.b16 %v3846, %v3845
      %v3879 = vpack.c.b16 %v3848, %v3847
      %v3880 = vpack.c.b16 %v3850, %v3849
      %v3881 = vpack.c.b16 %v3852, %v3851
      %v3882 = vpack.c.b16 %v3854, %v3853
      %v3883 = vpack.c.b16 %v3856, %v3855
      %v3884 = vpack.c.b16 %v3858, %v3857
      %v3885 = vpack.c.b16 %v3860, %v3859
      %v3886 = vpack.c.b16 %v3862, %v3861
      %v3887 = vpack.c.b16 %v3864, %v3863
      %v3888 = vpack.c.b16 %v3866, %v3865
      %v3889 = vpack.c.b16 %v3868, %v3867
      %v3890 = vpack.c.b16 %v3870, %v3869
      %v3891 = vpack.c.b16 %v3872, %v3871
      %v3892 = vpack.c.b16 %v3874, %v3873
      %v3912 = vsel %vm3508, %v3492, 0
      %v3915 = vsel %vm3508, %v3493, 0
      %v3918 = vsel %vm3508, %v3494, 0
      %v3921 = vsel %vm3508, %v3495, 0
      %v3924 = vsel %vm3508, %v3496, 0
      %v3927 = vsel %vm3508, %v3497, 0
      %v3930 = vsel %vm3508, %v3498, 0
      %v3933 = vsel %vm3508, %v3499, 0
      %v3936 = vsel %vm3508, %v3500, 0
      %v3939 = vsel %vm3508, %v3501, 0
      %v3942 = vsel %vm3508, %v3502, 0
      %v3945 = vsel %vm3508, %v3503, 0
      %v3948 = vsel %vm3508, %v3504, 0
      %v3951 = vsel %vm3508, %v3505, 0
      %v3954 = vsel %vm3508, %v3506, 0
      %v3957 = vsel %vm3508, %v3507, 0
      %3959 = vmatprep.subr.bf16.mxu0 0
      %3960 = vmatpush1.bf16.msra.mxu0 %v3882
      %3961 = vmatprep.subr.bf16.mxu0 0
      %3962 = vmatpush1.bf16.msra.mxu0 %v3881
      %3963 = vmatprep.subr.bf16.mxu0 0
      %3964 = vmatpush1.bf16.msra.mxu0 %v3880
      %3965 = vmatprep.subr.bf16.mxu0 0
      %3966 = vmatpush1.bf16.msra.mxu0 %v3879
      %3967 = vmatprep.subr.bf16.mxu0 0
      %3968 = vmatpush1.bf16.msra.mxu0 %v3878
      %3969 = vmatprep.subr.bf16.mxu0 0
      %3970 = vmatpush1.bf16.msra.mxu0 %v3877
      %3971 = vmatprep.subr.bf16.mxu0 0
      %3972 = vmatpush1.bf16.msra.mxu0 %v3876
      %3973 = vmatprep.subr.bf16.mxu0 0
      %3974 = vmatpush1.bf16.msra.mxu0 %v3875
      %3975 = vmatprep.subr.bf16.mxu0 0
      %3976 = vmatpush2.bf16.msra.mxu0 %v3890
      %3977 = vmatprep.subr.bf16.mxu0 0
      %3978 = vmatpush2.bf16.msra.mxu0 %v3889
      %3979 = vmatprep.subr.bf16.mxu0 0
      %3980 = vmatpush2.bf16.msra.mxu0 %v3888
      %3981 = vmatprep.subr.bf16.mxu0 0
      %3982 = vmatpush2.bf16.msra.mxu0 %v3887
      %3983 = vmatprep.subr.bf16.mxu0 0
      %3984 = vmatpush2.bf16.msra.mxu0 %v3886
      %3985 = vmatprep.subr.bf16.mxu0 0
      %3986 = vmatpush2.bf16.msra.mxu0 %v3885
      %3987 = vmatprep.subr.bf16.mxu0 0
      %3988 = vmatpush2.bf16.msra.mxu0 %v3884
      %3989 = vmatprep.subr.bf16.mxu0 0
      %3990 = vmatpush2.bf16.msra.mxu0 %v3883
      %3991 = vmatprep.mubr.bf16.mxu0 %v3720
      %3992 = vmatmul.mubr.bf16.gmra.mxu0 %v3592
      %v3993 = vpop.f32.mrf.mxu0
      %v3994 = vadd.f32 0.0, %v3993
      %v3995 = vpop.f32.mrf.mxu0
      %v3996 = vpop.f32.mrf.mxu0
      %v3997 = vadd.f32 0.0, %v3996
      %v3998 = vpop.f32.mrf.mxu0
      %3999 = vmatprep.mubr.bf16.mxu0 %v3723
      %4000 = vmatmul.mubr.bf16.gmra.mxu0 %v3595
      %v4001 = vpop.f32.mrf.mxu0
      %v4002 = vadd.f32 0.0, %v4001
      %v4003 = vpop.f32.mrf.mxu0
      %v4004 = vpop.f32.mrf.mxu0
      %v4005 = vadd.f32 0.0, %v4004
      %v4006 = vpop.f32.mrf.mxu0
      %4007 = vmatprep.mubr.bf16.mxu0 %v3726
      %4008 = vmatmul.mubr.bf16.gmra.mxu0 %v3598
      %v4009 = vpop.f32.mrf.mxu0
      %v4010 = vadd.f32 0.0, %v4009
      %v4011 = vpop.f32.mrf.mxu0
      %v4012 = vpop.f32.mrf.mxu0
      %v4013 = vadd.f32 0.0, %v4012
      %v4014 = vpop.f32.mrf.mxu0
      %4015 = vmatprep.mubr.bf16.mxu0 %v3729
      %4016 = vmatmul.mubr.bf16.gmra.mxu0 %v3601
      %v4017 = vpop.f32.mrf.mxu0
      %v4018 = vadd.f32 0.0, %v4017
      %v4019 = vpop.f32.mrf.mxu0
      %v4020 = vpop.f32.mrf.mxu0
      %v4021 = vadd.f32 0.0, %v4020
      %v4022 = vpop.f32.mrf.mxu0
      %4023 = vmatprep.mubr.bf16.mxu0 %v3732
      %4024 = vmatmul.mubr.bf16.gmra.mxu0 %v3604
      %v4025 = vpop.f32.mrf.mxu0
      %v4026 = vadd.f32 0.0, %v4025
      %v4027 = vpop.f32.mrf.mxu0
      %v4028 = vpop.f32.mrf.mxu0
      %v4029 = vadd.f32 0.0, %v4028
      %v4030 = vpop.f32.mrf.mxu0
      %4031 = vmatprep.mubr.bf16.mxu0 %v3735
      %4032 = vmatmul.mubr.bf16.gmra.mxu0 %v3607
      %v4033 = vpop.f32.mrf.mxu0
      %v4034 = vadd.f32 0.0, %v4033
      %v4035 = vpop.f32.mrf.mxu0
      %v4036 = vpop.f32.mrf.mxu0
      %v4037 = vadd.f32 0.0, %v4036
      %v4038 = vpop.f32.mrf.mxu0
      %4039 = vmatprep.mubr.bf16.mxu0 %v3738
      %4040 = vmatmul.mubr.bf16.gmra.mxu0 %v3610
      %v4041 = vpop.f32.mrf.mxu0
      %v4042 = vadd.f32 0.0, %v4041
      %v4043 = vpop.f32.mrf.mxu0
      %v4044 = vpop.f32.mrf.mxu0
      %v4045 = vadd.f32 0.0, %v4044
      %v4046 = vpop.f32.mrf.mxu0
      %4047 = vmatprep.mubr.bf16.mxu0 %v3741
      %4048 = vmatmul.mubr.bf16.gmra.mxu0 %v3613
      %v4049 = vpop.f32.mrf.mxu0
      %v4050 = vadd.f32 0.0, %v4049
      %v4051 = vpop.f32.mrf.mxu0
      %v4052 = vpop.f32.mrf.mxu0
      %v4053 = vadd.f32 0.0, %v4052
      %v4054 = vpop.f32.mrf.mxu0
      %4055 = vmatprep.mubr.bf16.mxu0 %v3744
      %4056 = vmatmul.mubr.bf16.gmra.mxu0 %v3616
      %v4057 = vpop.f32.mrf.mxu0
      %v4058 = vadd.f32 0.0, %v4057
      %v4059 = vpop.f32.mrf.mxu0
      %v4060 = vpop.f32.mrf.mxu0
      %v4061 = vadd.f32 0.0, %v4060
      %v4062 = vpop.f32.mrf.mxu0
      %4063 = vmatprep.mubr.bf16.mxu0 %v3747
      %4064 = vmatmul.mubr.bf16.gmra.mxu0 %v3619
      %v4065 = vpop.f32.mrf.mxu0
      %v4066 = vadd.f32 0.0, %v4065
      %v4067 = vpop.f32.mrf.mxu0
      %v4068 = vpop.f32.mrf.mxu0
      %v4069 = vadd.f32 0.0, %v4068
      %v4070 = vpop.f32.mrf.mxu0
      %4071 = vmatprep.mubr.bf16.mxu0 %v3750
      %4072 = vmatmul.mubr.bf16.gmra.mxu0 %v3622
      %v4073 = vpop.f32.mrf.mxu0
      %v4074 = vadd.f32 0.0, %v4073
      %v4075 = vpop.f32.mrf.mxu0
      %v4076 = vpop.f32.mrf.mxu0
      %v4077 = vadd.f32 0.0, %v4076
      %v4078 = vpop.f32.mrf.mxu0
      %4079 = vmatprep.mubr.bf16.mxu0 %v3753
      %4080 = vmatmul.mubr.bf16.gmra.mxu0 %v3625
      %v4081 = vpop.f32.mrf.mxu0
      %v4082 = vadd.f32 0.0, %v4081
      %v4083 = vpop.f32.mrf.mxu0
      %v4084 = vpop.f32.mrf.mxu0
      %v4085 = vadd.f32 0.0, %v4084
      %v4086 = vpop.f32.mrf.mxu0
      %4087 = vmatprep.mubr.bf16.mxu0 %v3756
      %4088 = vmatmul.mubr.bf16.gmra.mxu0 %v3628
      %v4089 = vpop.f32.mrf.mxu0
      %v4090 = vadd.f32 0.0, %v4089
      %v4091 = vpop.f32.mrf.mxu0
      %v4092 = vpop.f32.mrf.mxu0
      %v4093 = vadd.f32 0.0, %v4092
      %v4094 = vpop.f32.mrf.mxu0
      %4095 = vmatprep.mubr.bf16.mxu0 %v3759
      %4096 = vmatmul.mubr.bf16.gmra.mxu0 %v3631
      %v4097 = vpop.f32.mrf.mxu0
      %v4098 = vadd.f32 0.0, %v4097
      %v4099 = vpop.f32.mrf.mxu0
      %v4100 = vpop.f32.mrf.mxu0
      %v4101 = vadd.f32 0.0, %v4100
      %v4102 = vpop.f32.mrf.mxu0
      %4103 = vmatprep.mubr.bf16.mxu0 %v3762
      %4104 = vmatmul.mubr.bf16.gmra.mxu0 %v3634
      %v4105 = vpop.f32.mrf.mxu0
      %v4106 = vadd.f32 0.0, %v4105
      %v4107 = vpop.f32.mrf.mxu0
      %v4108 = vpop.f32.mrf.mxu0
      %v4109 = vadd.f32 0.0, %v4108
      %v4110 = vpop.f32.mrf.mxu0
      %4111 = vmatprep.mubr.bf16.mxu0 %v3765
      %4112 = vmatmul.mubr.bf16.gmra.mxu0 %v3637
      %v4113 = vpop.f32.mrf.mxu0
      %v4114 = vadd.f32 0.0, %v4113
      %v4115 = vpop.f32.mrf.mxu0
      %v4116 = vpop.f32.mrf.mxu0
      %v4117 = vadd.f32 0.0, %v4116
      %v4118 = vpop.f32.mrf.mxu0
      %4119 = vdwg.mxu0
      %4120 = vmatprep.subr.bf16.mxu0 0
      %4121 = vmatpush1.bf16.msra.mxu0 0
      %4122 = vmatprep.subr.bf16.mxu0 0
      %4123 = vmatpush1.bf16.msra.mxu0 0
      %4124 = vmatprep.subr.bf16.mxu0 0
      %4125 = vmatpush1.bf16.msra.mxu0 0
      %4126 = vmatprep.subr.bf16.mxu0 0
      %4127 = vmatpush1.bf16.msra.mxu0 0
      %4128 = vmatprep.subr.bf16.mxu0 0
      %4129 = vmatpush1.bf16.msra.mxu0 0
      %4130 = vmatprep.subr.bf16.mxu0 0
      %4131 = vmatpush1.bf16.msra.mxu0 0
      %4132 = vmatprep.subr.bf16.mxu0 0
      %4133 = vmatpush1.bf16.msra.mxu0 %v3892
      %4134 = vmatprep.subr.bf16.mxu0 0
      %4135 = vmatpush1.bf16.msra.mxu0 %v3891
      %4136 = vmatprep.subr.bf16.mxu0 0
      %4137 = vmatpush2.bf16.msra.mxu0 0
      %4138 = vmatprep.subr.bf16.mxu0 0
      %4139 = vmatpush2.bf16.msra.mxu0 0
      %4140 = vmatprep.subr.bf16.mxu0 0
      %4141 = vmatpush2.bf16.msra.mxu0 0
      %4142 = vmatprep.subr.bf16.mxu0 0
      %4143 = vmatpush2.bf16.msra.mxu0 0
      %4144 = vmatprep.subr.bf16.mxu0 0
      %4145 = vmatpush2.bf16.msra.mxu0 0
      %4146 = vmatprep.subr.bf16.mxu0 0
      %4147 = vmatpush2.bf16.msra.mxu0 0
      %4148 = vmatprep.subr.bf16.mxu0 0
      %4149 = vmatpush2.bf16.msra.mxu0 0
      %4150 = vmatprep.subr.bf16.mxu0 0
      %4151 = vmatpush2.bf16.msra.mxu0 0
      %4152 = vmatprep.mubr.bf16.mxu0 0
      %4153 = vmatmul.mubr.bf16.gmra.mxu0 %v3912
      %v4154 = vpop.f32.mrf.mxu0
      %v4155 = vadd.f32 %v3994, %v4154
      %v4156 = vpop.f32.mrf.mxu0
      %v4157 = vpop.f32.mrf.mxu0
      %v4158 = vadd.f32 %v3997, %v4157
      %v4159 = vpop.f32.mrf.mxu0
      %4160 = vmatprep.mubr.bf16.mxu0 0
      %4161 = vmatmul.mubr.bf16.gmra.mxu0 %v3915
      %v4162 = vpop.f32.mrf.mxu0
      %v4163 = vadd.f32 %v4002, %v4162
      %v4164 = vpop.f32.mrf.mxu0
      %v4165 = vpop.f32.mrf.mxu0
      %v4166 = vadd.f32 %v4005, %v4165
      %v4167 = vpop.f32.mrf.mxu0
      %4168 = vmatprep.mubr.bf16.mxu0 0
      %4169 = vmatmul.mubr.bf16.gmra.mxu0 %v3918
      %v4170 = vpop.f32.mrf.mxu0
      %v4171 = vadd.f32 %v4010, %v4170
      %v4172 = vpop.f32.mrf.mxu0
      %v4173 = vpop.f32.mrf.mxu0
      %v4174 = vadd.f32 %v4013, %v4173
      %v4175 = vpop.f32.mrf.mxu0
      %4176 = vmatprep.mubr.bf16.mxu0 0
      %4177 = vmatmul.mubr.bf16.gmra.mxu0 %v3921
      %v4178 = vpop.f32.mrf.mxu0
      %v4179 = vadd.f32 %v4018, %v4178
      %v4180 = vpop.f32.mrf.mxu0
      %v4181 = vpop.f32.mrf.mxu0
      %v4182 = vadd.f32 %v4021, %v4181
      %v4183 = vpop.f32.mrf.mxu0
      %4184 = vmatprep.mubr.bf16.mxu0 0
      %4185 = vmatmul.mubr.bf16.gmra.mxu0 %v3924
      %v4186 = vpop.f32.mrf.mxu0
      %v4187 = vadd.f32 %v4026, %v4186
      %v4188 = vpop.f32.mrf.mxu0
      %v4189 = vpop.f32.mrf.mxu0
      %v4190 = vadd.f32 %v4029, %v4189
      %v4191 = vpop.f32.mrf.mxu0
      %4192 = vmatprep.mubr.bf16.mxu0 0
      %4193 = vmatmul.mubr.bf16.gmra.mxu0 %v3927
      %v4194 = vpop.f32.mrf.mxu0
      %v4195 = vadd.f32 %v4034, %v4194
      %v4196 = vpop.f32.mrf.mxu0
      %v4197 = vpop.f32.mrf.mxu0
      %v4198 = vadd.f32 %v4037, %v4197
      %v4199 = vpop.f32.mrf.mxu0
      %4200 = vmatprep.mubr.bf16.mxu0 0
      %4201 = vmatmul.mubr.bf16.gmra.mxu0 %v3930
      %v4202 = vpop.f32.mrf.mxu0
      %v4203 = vadd.f32 %v4042, %v4202
      %v4204 = vpop.f32.mrf.mxu0
      %v4205 = vpop.f32.mrf.mxu0
      %v4206 = vadd.f32 %v4045, %v4205
      %v4207 = vpop.f32.mrf.mxu0
      %4208 = vmatprep.mubr.bf16.mxu0 0
      %4209 = vmatmul.mubr.bf16.gmra.mxu0 %v3933
      %v4210 = vpop.f32.mrf.mxu0
      %v4211 = vadd.f32 %v4050, %v4210
      %v4212 = vpop.f32.mrf.mxu0
      %v4213 = vpop.f32.mrf.mxu0
      %v4214 = vadd.f32 %v4053, %v4213
      %v4215 = vpop.f32.mrf.mxu0
      %4216 = vmatprep.mubr.bf16.mxu0 0
      %4217 = vmatmul.mubr.bf16.gmra.mxu0 %v3936
      %v4218 = vpop.f32.mrf.mxu0
      %v4219 = vadd.f32 %v4058, %v4218
      %v4220 = vpop.f32.mrf.mxu0
      %v4221 = vpop.f32.mrf.mxu0
      %v4222 = vadd.f32 %v4061, %v4221
      %v4223 = vpop.f32.mrf.mxu0
      %4224 = vmatprep.mubr.bf16.mxu0 0
      %4225 = vmatmul.mubr.bf16.gmra.mxu0 %v3939
      %v4226 = vpop.f32.mrf.mxu0
      %v4227 = vadd.f32 %v4066, %v4226
      %v4228 = vpop.f32.mrf.mxu0
      %v4229 = vpop.f32.mrf.mxu0
      %v4230 = vadd.f32 %v4069, %v4229
      %v4231 = vpop.f32.mrf.mxu0
      %4232 = vmatprep.mubr.bf16.mxu0 0
      %4233 = vmatmul.mubr.bf16.gmra.mxu0 %v3942
      %v4234 = vpop.f32.mrf.mxu0
      %v4235 = vadd.f32 %v4074, %v4234
      %v4236 = vpop.f32.mrf.mxu0
      %v4237 = vpop.f32.mrf.mxu0
      %v4238 = vadd.f32 %v4077, %v4237
      %v4239 = vpop.f32.mrf.mxu0
      %4240 = vmatprep.mubr.bf16.mxu0 0
      %4241 = vmatmul.mubr.bf16.gmra.mxu0 %v3945
      %v4242 = vpop.f32.mrf.mxu0
      %v4243 = vadd.f32 %v4082, %v4242
      %v4244 = vpop.f32.mrf.mxu0
      %v4245 = vpop.f32.mrf.mxu0
      %v4246 = vadd.f32 %v4085, %v4245
      %v4247 = vpop.f32.mrf.mxu0
      %4248 = vmatprep.mubr.bf16.mxu0 0
      %4249 = vmatmul.mubr.bf16.gmra.mxu0 %v3948
      %v4250 = vpop.f32.mrf.mxu0
      %v4251 = vadd.f32 %v4090, %v4250
      %v4252 = vpop.f32.mrf.mxu0
      %v4253 = vpop.f32.mrf.mxu0
      %v4254 = vadd.f32 %v4093, %v4253
      %v4255 = vpop.f32.mrf.mxu0
      %4256 = vmatprep.mubr.bf16.mxu0 0
      %4257 = vmatmul.mubr.bf16.gmra.mxu0 %v3951
      %v4258 = vpop.f32.mrf.mxu0
      %v4259 = vadd.f32 %v4098, %v4258
      %v4260 = vpop.f32.mrf.mxu0
      %v4261 = vpop.f32.mrf.mxu0
      %v4262 = vadd.f32 %v4101, %v4261
      %v4263 = vpop.f32.mrf.mxu0
      %4264 = vmatprep.mubr.bf16.mxu0 0
      %4265 = vmatmul.mubr.bf16.gmra.mxu0 %v3954
      %v4266 = vpop.f32.mrf.mxu0
      %v4267 = vadd.f32 %v4106, %v4266
      %v4268 = vpop.f32.mrf.mxu0
      %v4269 = vpop.f32.mrf.mxu0
      %v4270 = vadd.f32 %v4109, %v4269
      %v4271 = vpop.f32.mrf.mxu0
      %4272 = vmatprep.mubr.bf16.mxu0 0
      %4273 = vmatmul.mubr.bf16.gmra.mxu0 %v3957
      %v4274 = vpop.f32.mrf.mxu0
      %v4275 = vadd.f32 %v4114, %v4274
      %v4276 = vpop.f32.mrf.mxu0
      %v4277 = vpop.f32.mrf.mxu0
      %v4278 = vadd.f32 %v4117, %v4277
      %v4279 = vpop.f32.mrf.mxu0
      %4280 = vdwg.mxu0
      %v4281 = vsel %vm3508, %v4155, 0.0
      %v4282 = vsel %vm3508, %v4158, 0.0
      %v4283 = vadd.f32 %v4281, %v4282
      %v4284 = vsel %vm3508, %v4163, 0.0
      %v4285 = vadd.f32 %v4283, %v4284
      %v4286 = vsel %vm3508, %v4166, 0.0
      %v4287 = vadd.f32 %v4285, %v4286
      %v4288 = vsel %vm3508, %v4171, 0.0
      %v4289 = vadd.f32 %v4287, %v4288
      %v4290 = vsel %vm3508, %v4174, 0.0
      %v4291 = vadd.f32 %v4289, %v4290
      %v4292 = vsel %vm3508, %v4179, 0.0
      %v4293 = vadd.f32 %v4291, %v4292
      %v4294 = vsel %vm3508, %v4182, 0.0
      %v4295 = vadd.f32 %v4293, %v4294
      %v4296 = vsel %vm3508, %v4187, 0.0
      %v4297 = vadd.f32 %v4295, %v4296
      %v4298 = vsel %vm3508, %v4190, 0.0
      %v4299 = vadd.f32 %v4297, %v4298
      %v4300 = vsel %vm3508, %v4195, 0.0
      %v4301 = vadd.f32 %v4299, %v4300
      %v4302 = vsel %vm3508, %v4198, 0.0
      %v4303 = vadd.f32 %v4301, %v4302
      %v4304 = vsel %vm3508, %v4203, 0.0
      %v4305 = vadd.f32 %v4303, %v4304
      %v4306 = vsel %vm3508, %v4206, 0.0
      %v4307 = vadd.f32 %v4305, %v4306
      %v4308 = vsel %vm3508, %v4211, 0.0
      %v4309 = vadd.f32 %v4307, %v4308
      %v4310 = vsel %vm3508, %v4214, 0.0
      %v4311 = vadd.f32 %v4309, %v4310
      %v4312 = vsel %vm3508, %v4219, 0.0
      %v4313 = vadd.f32 %v4311, %v4312
      %v4314 = vsel %vm3508, %v4222, 0.0
      %v4315 = vadd.f32 %v4313, %v4314
      %v4316 = vsel %vm3508, %v4227, 0.0
      %v4317 = vadd.f32 %v4315, %v4316
      %v4318 = vsel %vm3508, %v4230, 0.0
      %v4319 = vadd.f32 %v4317, %v4318
      %v4320 = vsel %vm3508, %v4235, 0.0
      %v4321 = vadd.f32 %v4319, %v4320
      %v4322 = vsel %vm3508, %v4238, 0.0
      %v4323 = vadd.f32 %v4321, %v4322
      %v4324 = vsel %vm3508, %v4243, 0.0
      %v4325 = vadd.f32 %v4323, %v4324
      %v4326 = vsel %vm3508, %v4246, 0.0
      %v4327 = vadd.f32 %v4325, %v4326
      %v4328 = vsel %vm3508, %v4251, 0.0
      %v4329 = vadd.f32 %v4327, %v4328
      %v4330 = vsel %vm3508, %v4254, 0.0
      %v4331 = vadd.f32 %v4329, %v4330
      %v4332 = vsel %vm3508, %v4259, 0.0
      %v4333 = vadd.f32 %v4331, %v4332
      %v4334 = vsel %vm3508, %v4262, 0.0
      %v4335 = vadd.f32 %v4333, %v4334
      %v4336 = vsel %vm3508, %v4267, 0.0
      %v4337 = vadd.f32 %v4335, %v4336
      %v4338 = vsel %vm3508, %v4270, 0.0
      %v4339 = vadd.f32 %v4337, %v4338
      %v4340 = vsel %vm3508, %v4275, 0.0
      %v4341 = vadd.f32 %v4339, %v4340
      %v4342 = vsel %vm3508, %v4278, 0.0
      %v4343 = vadd.f32 %v4341, %v4342
      %v4344 = vrot.slane %v4343, 4
      %v4345 = vadd.f32 %v4343, %v4344
      %v4346 = vrot.slane %v4345, 2
      %v4347 = vadd.f32 %v4345, %v4346
      %v4348 = vrot.slane %v4347, 1
      %v4349 = vadd.f32 %v4347, %v4348
      %v4350 = vmul.f32 %v4155, %v4155
      %v4351 = vmul.f32 %v4158, %v4158
      %v4352 = vmul.f32 %v4163, %v4163
      %v4353 = vmul.f32 %v4166, %v4166
      %v4354 = vmul.f32 %v4171, %v4171
      %v4355 = vmul.f32 %v4174, %v4174
      %v4356 = vmul.f32 %v4179, %v4179
      %v4357 = vmul.f32 %v4182, %v4182
      %v4358 = vmul.f32 %v4187, %v4187
      %v4359 = vmul.f32 %v4190, %v4190
      %v4360 = vmul.f32 %v4195, %v4195
      %v4361 = vmul.f32 %v4198, %v4198
      %v4362 = vmul.f32 %v4203, %v4203
      %v4363 = vmul.f32 %v4206, %v4206
      %v4364 = vmul.f32 %v4211, %v4211
      %v4365 = vmul.f32 %v4214, %v4214
      %v4366 = vmul.f32 %v4219, %v4219
      %v4367 = vmul.f32 %v4222, %v4222
      %v4368 = vmul.f32 %v4227, %v4227
      %v4369 = vmul.f32 %v4230, %v4230
      %v4370 = vmul.f32 %v4235, %v4235
      %v4371 = vmul.f32 %v4238, %v4238
      %v4372 = vmul.f32 %v4243, %v4243
      %v4373 = vmul.f32 %v4246, %v4246
      %v4374 = vmul.f32 %v4251, %v4251
      %v4375 = vmul.f32 %v4254, %v4254
      %v4376 = vmul.f32 %v4259, %v4259
      %v4377 = vmul.f32 %v4262, %v4262
      %v4378 = vmul.f32 %v4267, %v4267
      %v4379 = vmul.f32 %v4270, %v4270
      %v4380 = vmul.f32 %v4275, %v4275
      %v4381 = vmul.f32 %v4278, %v4278
      %v4382 = vsel %vm3508, %v4350, 0.0
      %v4383 = vsel %vm3508, %v4351, 0.0
      %v4384 = vadd.f32 %v4382, %v4383
      %v4385 = vsel %vm3508, %v4352, 0.0
      %v4386 = vadd.f32 %v4384, %v4385
      %v4387 = vsel %vm3508, %v4353, 0.0
      %v4388 = vadd.f32 %v4386, %v4387
      %v4389 = vsel %vm3508, %v4354, 0.0
      %v4390 = vadd.f32 %v4388, %v4389
      %v4391 = vsel %vm3508, %v4355, 0.0
      %v4392 = vadd.f32 %v4390, %v4391
      %v4393 = vsel %vm3508, %v4356, 0.0
      %v4394 = vadd.f32 %v4392, %v4393
      %v4395 = vsel %vm3508, %v4357, 0.0
      %v4396 = vadd.f32 %v4394, %v4395
      %v4397 = vsel %vm3508, %v4358, 0.0
      %v4398 = vadd.f32 %v4396, %v4397
      %v4399 = vsel %vm3508, %v4359, 0.0
      %v4400 = vadd.f32 %v4398, %v4399
      %v4401 = vsel %vm3508, %v4360, 0.0
      %v4402 = vadd.f32 %v4400, %v4401
      %v4403 = vsel %vm3508, %v4361, 0.0
      %v4404 = vadd.f32 %v4402, %v4403
      %v4405 = vsel %vm3508, %v4362, 0.0
      %v4406 = vadd.f32 %v4404, %v4405
      %v4407 = vsel %vm3508, %v4363, 0.0
      %v4408 = vadd.f32 %v4406, %v4407
      %v4409 = vsel %vm3508, %v4364, 0.0
      %v4410 = vadd.f32 %v4408, %v4409
      %v4411 = vsel %vm3508, %v4365, 0.0
      %v4412 = vadd.f32 %v4410, %v4411
      %v4413 = vsel %vm3508, %v4366, 0.0
      %v4414 = vadd.f32 %v4412, %v4413
      %v4415 = vsel %vm3508, %v4367, 0.0
      %v4416 = vadd.f32 %v4414, %v4415
      %v4417 = vsel %vm3508, %v4368, 0.0
      %v4418 = vadd.f32 %v4416, %v4417
      %v4419 = vsel %vm3508, %v4369, 0.0
      %v4420 = vadd.f32 %v4418, %v4419
      %v4421 = vsel %vm3508, %v4370, 0.0
      %v4422 = vadd.f32 %v4420, %v4421
      %v4423 = vsel %vm3508, %v4371, 0.0
      %v4424 = vadd.f32 %v4422, %v4423
      %v4425 = vsel %vm3508, %v4372, 0.0
      %v4426 = vadd.f32 %v4424, %v4425
      %v4427 = vsel %vm3508, %v4373, 0.0
      %v4428 = vadd.f32 %v4426, %v4427
      %v4429 = vsel %vm3508, %v4374, 0.0
      %v4430 = vadd.f32 %v4428, %v4429
      %v4431 = vsel %vm3508, %v4375, 0.0
      %v4432 = vadd.f32 %v4430, %v4431
      %v4433 = vsel %vm3508, %v4376, 0.0
      %v4434 = vadd.f32 %v4432, %v4433
      %v4435 = vsel %vm3508, %v4377, 0.0
      %v4436 = vadd.f32 %v4434, %v4435
      %v4437 = vsel %vm3508, %v4378, 0.0
      %v4438 = vadd.f32 %v4436, %v4437
      %v4439 = vsel %vm3508, %v4379, 0.0
      %v4440 = vadd.f32 %v4438, %v4439
      %v4441 = vsel %vm3508, %v4380, 0.0
      %v4442 = vadd.f32 %v4440, %v4441
      %v4443 = vsel %vm3508, %v4381, 0.0
      %v4444 = vadd.f32 %v4442, %v4443
      %v4445 = vrot.slane %v4444, 4
      %v4446 = vadd.f32 %v4444, %v4445
      %v4447 = vrot.slane %v4446, 2
      %v4448 = vadd.f32 %v4446, %v4447
      %v4449 = vrot.slane %v4448, 1
      %v4450 = vadd.f32 %v4448, %v4449
      %vm4451 = vcmask 1040384
      %v4452 = vsel %vm4451, %v4349, %v4450
      %vm4453 = vcmask 254976
      %4454 = vst.msk [vmem:[%s236] sm:$0x3] %vm4453, %v4452
      %v4455 = vpack.c.bf16 %v4158, %v4155
      %v4456 = vpack.c.bf16 %v4166, %v4163
      %v4457 = vpack.c.bf16 %v4174, %v4171
      %v4458 = vpack.c.bf16 %v4182, %v4179
      %v4459 = vpack.c.bf16 %v4190, %v4187
      %v4460 = vpack.c.bf16 %v4198, %v4195
      %v4461 = vpack.c.bf16 %v4206, %v4203
      %v4462 = vpack.c.bf16 %v4214, %v4211
      %v4463 = vpack.c.bf16 %v4222, %v4219
      %v4464 = vpack.c.bf16 %v4230, %v4227
      %v4465 = vpack.c.bf16 %v4238, %v4235
      %v4466 = vpack.c.bf16 %v4246, %v4243
      %v4467 = vpack.c.bf16 %v4254, %v4251
      %v4468 = vpack.c.bf16 %v4262, %v4259
      %v4469 = vpack.c.bf16 %v4270, %v4267
      %v4470 = vpack.c.bf16 %v4278, %v4275
      %v4487 = vunpack.c.l.b16 %v4455
      %v4488 = vunpack.c.h.b16 %v4455
      %v4489 = vunpack.c.l.b16 %v4456
      %v4490 = vunpack.c.h.b16 %v4456
      %v4491 = vunpack.c.l.b16 %v4457
      %v4492 = vunpack.c.h.b16 %v4457
      %v4493 = vunpack.c.l.b16 %v4458
      %v4494 = vunpack.c.h.b16 %v4458
      %v4495 = vunpack.c.l.b16 %v4459
      %v4496 = vunpack.c.h.b16 %v4459
      %v4497 = vunpack.c.l.b16 %v4460
      %v4498 = vunpack.c.h.b16 %v4460
      %v4499 = vunpack.c.l.b16 %v4461
      %v4500 = vunpack.c.h.b16 %v4461
      %v4501 = vunpack.c.l.b16 %v4462
      %v4502 = vunpack.c.h.b16 %v4462
      %v4503 = vunpack.c.l.b16 %v4463
      %v4504 = vunpack.c.h.b16 %v4463
      %v4505 = vunpack.c.l.b16 %v4464
      %v4506 = vunpack.c.h.b16 %v4464
      %v4507 = vunpack.c.l.b16 %v4465
      %v4508 = vunpack.c.h.b16 %v4465
      %v4509 = vunpack.c.l.b16 %v4466
      %v4510 = vunpack.c.h.b16 %v4466
      %v4511 = vunpack.c.l.b16 %v4467
      %v4512 = vunpack.c.h.b16 %v4467
      %v4513 = vunpack.c.l.b16 %v4468
      %v4514 = vunpack.c.h.b16 %v4468
      %v4515 = vunpack.c.l.b16 %v4469
      %v4516 = vunpack.c.h.b16 %v4469
      %v4517 = vunpack.c.l.b16 %v4470
      %v4518 = vunpack.c.h.b16 %v4470
      %v4519 = vpack.c.b16 %v4487, %v4487
      %v4520 = vpack.c.b16 %v4488, %v4488
      %v4521 = vpack.c.b16 %v4489, %v4489
      %v4522 = vpack.c.b16 %v4490, %v4490
      %v4523 = vpack.c.b16 %v4491, %v4491
      %v4524 = vpack.c.b16 %v4492, %v4492
      %v4525 = vpack.c.b16 %v4493, %v4493
      %v4526 = vpack.c.b16 %v4494, %v4494
      %v4527 = vpack.c.b16 %v4495, %v4495
      %v4528 = vpack.c.b16 %v4496, %v4496
      %v4529 = vpack.c.b16 %v4497, %v4497
      %v4530 = vpack.c.b16 %v4498, %v4498
      %v4531 = vpack.c.b16 %v4499, %v4499
      %v4532 = vpack.c.b16 %v4500, %v4500
      %v4533 = vpack.c.b16 %v4501, %v4501
      %v4534 = vpack.c.b16 %v4502, %v4502
      %v4535 = vpack.c.b16 %v4503, %v4503
      %v4536 = vpack.c.b16 %v4504, %v4504
      %v4537 = vpack.c.b16 %v4505, %v4505
      %v4538 = vpack.c.b16 %v4506, %v4506
      %v4539 = vpack.c.b16 %v4507, %v4507
      %v4540 = vpack.c.b16 %v4508, %v4508
      %v4541 = vpack.c.b16 %v4509, %v4509
      %v4542 = vpack.c.b16 %v4510, %v4510
      %v4543 = vpack.c.b16 %v4511, %v4511
      %v4544 = vpack.c.b16 %v4512, %v4512
      %v4545 = vpack.c.b16 %v4513, %v4513
      %v4546 = vpack.c.b16 %v4514, %v4514
      %v4547 = vpack.c.b16 %v4515, %v4515
      %v4548 = vpack.c.b16 %v4516, %v4516
      %v4549 = vpack.c.b16 %v4517, %v4517
      %v4550 = vpack.c.b16 %v4518, %v4518
      %4583 = vst.msk [vmem:[%s231] sm:$0xf] %vm412, %v4519
      %4584 = vst.msk [vmem:[%s231 + $0x4] sm:$0xf] %vm412, %v4520
      %4585 = vst.msk [vmem:[%s231 + $0x8] sm:$0xf] %vm412, %v4521
      %4586 = vst.msk [vmem:[%s231 + $0xc] sm:$0xf] %vm412, %v4522
      %4587 = vst.msk [vmem:[%s231 + $0x10] sm:$0xf] %vm412, %v4523
      %4588 = vst.msk [vmem:[%s231 + $0x14] sm:$0xf] %vm412, %v4524
      %4589 = vst.msk [vmem:[%s231 + $0x18] sm:$0xf] %vm412, %v4525
      %4590 = vst.msk [vmem:[%s231 + $0x1c] sm:$0xf] %vm412, %v4526
      %4591 = vst.msk [vmem:[%s231 + $0x20] sm:$0xf] %vm412, %v4527
      %4592 = vst.msk [vmem:[%s231 + $0x24] sm:$0xf] %vm412, %v4528
      %4593 = vst.msk [vmem:[%s231 + $0x28] sm:$0xf] %vm412, %v4529
      %4594 = vst.msk [vmem:[%s231 + $0x2c] sm:$0xf] %vm412, %v4530
      %4595 = vst.msk [vmem:[%s231 + $0x30] sm:$0xf] %vm412, %v4531
      %4596 = vst.msk [vmem:[%s231 + $0x34] sm:$0xf] %vm412, %v4532
      %4597 = vst.msk [vmem:[%s231 + $0x38] sm:$0xf] %vm412, %v4533
      %4598 = vst.msk [vmem:[%s231 + $0x3c] sm:$0xf] %vm412, %v4534
      %4599 = vst.msk [vmem:[%s231 + $0x40] sm:$0xf] %vm412, %v4535
      %4600 = vst.msk [vmem:[%s231 + $0x44] sm:$0xf] %vm412, %v4536
      %4601 = vst.msk [vmem:[%s231 + $0x48] sm:$0xf] %vm412, %v4537
      %4602 = vst.msk [vmem:[%s231 + $0x4c] sm:$0xf] %vm412, %v4538
      %4603 = vst.msk [vmem:[%s231 + $0x50] sm:$0xf] %vm412, %v4539
      %4604 = vst.msk [vmem:[%s231 + $0x54] sm:$0xf] %vm412, %v4540
      %4605 = vst.msk [vmem:[%s231 + $0x58] sm:$0xf] %vm412, %v4541
      %4606 = vst.msk [vmem:[%s231 + $0x5c] sm:$0xf] %vm412, %v4542
      %4607 = vst.msk [vmem:[%s231 + $0x60] sm:$0xf] %vm412, %v4543
      %4608 = vst.msk [vmem:[%s231 + $0x64] sm:$0xf] %vm412, %v4544
      %4609 = vst.msk [vmem:[%s231 + $0x68] sm:$0xf] %vm412, %v4545
      %4610 = vst.msk [vmem:[%s231 + $0x6c] sm:$0xf] %vm412, %v4546
      %4611 = vst.msk [vmem:[%s231 + $0x70] sm:$0xf] %vm412, %v4547
      %4612 = vst.msk [vmem:[%s231 + $0x74] sm:$0xf] %vm412, %v4548
      %4613 = vst.msk [vmem:[%s231 + $0x78] sm:$0xf] %vm412, %v4549
      %4614 = vst.msk [vmem:[%s231 + $0x7c] sm:$0xf] %vm412, %v4550
      %s4615 = smul.u32 32, %s17
      %p4616 = scmp.lt.s32.totalorder %s4615, 63
      %s4617 = scalar_select %p4616, %s4615, 63
      %s4618 = smul.addr %s4617, 4
      %s4619 = scalar_lea.vmem %s4, %s4618
      %p4620 = scmp.lt.s32.totalorder %s17, 1
      %s4621 = scalar_select %p4620, %s17, 1
      %s4622 = smul.addr %s4621, 2
      %s4623 = scalar_lea.vmem %s5, %s4622
      // Predicated region
      $region37: #{bottleneck_forward.5} parent=35 // pred_check
        %p4624 = pneg %p124
      $region38: #{bottleneck_forward.5} parent=35 // pred_check_branch
        %4626 = sbr.rel (%p4624) target = $region40
      $region39: #{bottleneck_forward.5} parent=35 // pred_region
        %s4627 = smul.u32 32, %s17
      $region40: #{bottleneck_forward.5} parent=35 // pred_fallthru
        _
      // Predicated region
      $region41: #{bottleneck_forward.5} parent=35 // pred_check
        %p4628 = pneg %p150
      $region42: #{bottleneck_forward.5} parent=35 // pred_check_branch
        %4630 = sbr.rel (%p4628) target = $region44
      $region43: #{bottleneck_forward.5} parent=35 // pred_region
        _
      $region44: #{bottleneck_forward.5} parent=35 // pred_fallthru
        _
    $region36: #{bottleneck_forward.5} parent=5 // pred_fallthru
      _
    %p4631 = scmp.le.s32.totalorder 2, %s12
    // Predicated region
    $region45: #{bottleneck_forward.5} parent=5 // pred_check
      %p4632 = pneg %p4631
    $region46: #{bottleneck_forward.5} parent=5 // pred_check_branch
      %4634 = sbr.rel (%p4632) target = $region48
    $region47: #{bottleneck_forward.5} parent=5 // pred_region
      %s4635 = ssub.s32 %s12, 2
      // Predicated region
      $region49: #{bottleneck_forward.5} parent=47 // pred_check
        %p4636 = pneg %p130
      $region50: #{bottleneck_forward.5} parent=47 // pred_check_branch
        %4638 = sbr.rel (%p4636) target = $region52
      $region51: #{bottleneck_forward.5} parent=47 // pred_region
        %s4639 = smul.u32 32, %s18
        %p4640 = scmp.lt.s32.totalorder %s4639, 63
        %s4641 = scalar_select %p4640, %s4639, 63
        %s4642 = smul.addr %s4641, 4
        %s4643 = scalar_lea.vmem %s4, %s4642
      $region52: #{bottleneck_forward.5} parent=47 // pred_fallthru
        _
      // Predicated region
      $region53: #{bottleneck_forward.5} parent=47 // pred_check
        %p4644 = pneg %p156
      $region54: #{bottleneck_forward.5} parent=47 // pred_check_branch
        %4646 = sbr.rel (%p4644) target = $region56
      $region55: #{bottleneck_forward.5} parent=47 // pred_region
        %p4647 = scmp.lt.s32.totalorder %s18, 1
        %s4648 = scalar_select %p4647, %s18, 1
        %s4649 = smul.addr %s4648, 2
        %s4650 = scalar_lea.vmem %s5, %s4649
      $region56: #{bottleneck_forward.5} parent=47 // pred_fallthru
        _
    $region48: #{bottleneck_forward.5} parent=5 // pred_fallthru
      _
  $region6: #{bottleneck_forward.5} parent=0 // loop_footer
    %s16 = sadd.s32 1, %s12
  $region7: #{bottleneck_forward.5} parent=0 // loop_footer_branch
    %11 = sbr.rel target = $region3
  $region8: #{bottleneck_forward.5} parent=0 // loop_exit
    _

</llo_original>
